<compile_context>
chip_gen: v5e
topology: v5e:2x2
jax: 0.10.0
libtpu: 0.0.40
codegen_flags: <defaults>
</compile_context>

<pallas_src>
import functools

import jax
import jax.numpy as jnp
from jax import lax
from jax.experimental import pallas as pl
from jax.experimental.pallas import tpu as pltpu


def _basic_block_kernel(x_ref, m_ref, w1_ref, s1_ref, b1_ref,
                        w2_ref, s2_ref, b2_ref, o_ref,
                        lhs1_ref, lhs2_ref, *, Wp8):
    """One (batch, row-band) grid step of BasicBlockGl."""
    b = pl.program_id(1)
    Cin = x_ref.shape[-1]
    Cmid = s1_ref.shape[-1]
    Cout = o_ref.shape[-1]
    Lb2 = o_ref.shape[1]            # interior rows written by this band
    Lb1 = Lb2 + 2 * Wp8             # conv1 rows (band + one halo grid-row/side)

    # flat-row offset of this band inside the padded/extended input image
    base = pl.multiple_of(b * Lb2, 8)

    # ---- conv1: pack the 3 ky taps along K (one MXU pass instead of three) --
    lhs1_ref[:, 0 * Cin:1 * Cin] = x_ref[0, pl.ds(base, Lb1), :]
    lhs1_ref[:, 1 * Cin:2 * Cin] = x_ref[0, pl.ds(base + Wp8, Lb1), :]
    lhs1_ref[:, 2 * Cin:3 * Cin] = x_ref[0, pl.ds(base + 2 * Wp8, Lb1), :]
    acc1 = jnp.dot(lhs1_ref[...], w1_ref[...],
                   preferred_element_type=jnp.float32)
    # kx taps are packed along the output columns; combine with sublane rolls.
    # (NOTE: for Cmid/Cout not multiples of 128 these lane slices may relayout;
    # acceptable at ResNet stage widths, dominated by the MXU work.)
    conv1 = (pltpu.roll(acc1[:, 0 * Cmid:1 * Cmid], shift=1, axis=0)
             + acc1[:, 1 * Cmid:2 * Cmid]
             + pltpu.roll(acc1[:, 2 * Cmid:3 * Cmid], shift=Lb1 - 1, axis=0))
    # folded bn1 + relu, then zero the rows/cols acting as conv2's zero padding
    h1 = jnp.maximum(conv1 * s1_ref[...] + b1_ref[...], 0.0) * m_ref[0]

    # ---- conv2 LHS: 3 ky-shifted copies of h1, packed along K (bf16) --------
    lhs2_ref[:, 0 * Cmid:1 * Cmid] = h1[0:Lb2].astype(lhs2_ref.dtype)
    lhs2_ref[:, 1 * Cmid:2 * Cmid] = h1[Wp8:Wp8 + Lb2].astype(lhs2_ref.dtype)
    lhs2_ref[:, 2 * Cmid:3 * Cmid] = h1[2 * Wp8:2 * Wp8 + Lb2].astype(lhs2_ref.dtype)

    acc2 = jnp.dot(lhs2_ref[...], w2_ref[...],
                   preferred_element_type=jnp.float32)
    conv2 = (pltpu.roll(acc2[:, 0 * Cout:1 * Cout], shift=1, axis=0)
             + acc2[:, 1 * Cout:2 * Cout]
             + pltpu.roll(acc2[:, 2 * Cout:3 * Cout], shift=Lb2 - 1, axis=0))

    # folded bn2 + identity residual + relu; store interior rows only, in bf16
    residual = x_ref[0, pl.ds(base + 2 * Wp8, Lb2), :].astype(jnp.float32)
    out = conv2 * s2_ref[...] + b2_ref[...] + residual
    o_ref[0] = jnp.maximum(out, 0.0).astype(o_ref.dtype)


def _pick_band_rows(H, Wp8):
    """Band height: >=2 bands per image when possible, per-band matmul M of a
    reasonable size (>=~96 rows, aiming near ~1024 flattened rows)."""
    divs = [d for d in range(1, H + 1) if H % d == 0]
    good = [d for d in divs if d * Wp8 >= 96 and H // d >= 2]
    if good:
        return min(good, key=lambda d: abs(d * Wp8 - 1024))
    return H


def pack_basic_block_params(params, eps=1e-5):
    """Fold eval-mode BN into scale/bias and repack conv weights once.

    Conv weights (Cout, Cin, 3, 3) -> (3*Cin, 3*Cout): the three ky taps are
    stacked along the contraction dim, the three kx taps along the output cols.
    """
    w1, g1, be1, rm1, rv1, w2, g2, be2, rm2, rv2 = params
    s1 = (g1 / jnp.sqrt(rv1 + eps)).astype(jnp.float32)
    b1 = (be1 - rm1 * s1).astype(jnp.float32)
    s2 = (g2 / jnp.sqrt(rv2 + eps)).astype(jnp.float32)
    b2 = (be2 - rm2 * s2).astype(jnp.float32)

    def pack(w):
        co, ci = w.shape[0], w.shape[1]
        wt = jnp.transpose(w, (2, 1, 3, 0))            # (ky, Cin, kx, Cout)
        return wt.reshape(3 * ci, 3 * co).astype(jnp.bfloat16)

    return (pack(w1), s1.reshape(1, -1), b1.reshape(1, -1),
            pack(w2), s2.reshape(1, -1), b2.reshape(1, -1))


def basic_block_gl_flat(x_ext, packed_params, *, H, W):
    """BasicBlockGl on a pre-laid-out input (layout conversion paid once per net).

    x_ext: (N, (H+4)*Wp8, Cin) bf16 -- NHWC flattened and zero padded (conv pad
    + width rounded to Wp8 + one extra zero grid-row per side).
    Returns (N, H*Wp8, Cout) bf16 -- interior rows only (cols 1..W are valid).
    """
    # TODO(synk): chaining consecutive blocks without re-padding the interior
    # output back to the (H+4)*Wp8 extended layout is not implemented here.
    w1p, s1, b1, w2p, s2, b2 = packed_params
    N, Lext, Cin = x_ext.shape
    Cmid = s1.shape[-1]
    Cout = s2.shape[-1]
    Wp8 = Lext // (H + 4)
    assert Wp8 * (H + 4) == Lext and Wp8 % 8 == 0 and Wp8 >= W + 2

    Hb = _pick_band_rows(H, Wp8)
    nb = H // Hb
    Lb2 = Hb * Wp8                      # interior rows per band
    Lb1 = Lb2 + 2 * Wp8                 # conv1 rows per band (with halo)

    # Per-band mask over the conv1-output rows: zeroes the conv-pad columns and
    # (first/last band only) the top/bottom conv-pad rows, so the masked conv1
    # activation is exactly conv2's zero padding.  Grid-invariant per band.
    p = jnp.arange(Lb1, dtype=jnp.int32)
    col_ok = (p % Wp8 >= 1) & (p % Wp8 <= W)
    grow = jnp.arange(nb, dtype=jnp.int32)[:, None] * Hb + (p // Wp8)[None, :]
    band_mask = (col_ok[None, :] & (grow >= 1) & (grow <= H))
    band_mask = band_mask.astype(jnp.float32).reshape(nb, Lb1, 1)

    # Rough per-step VMEM need (double-buffered input/output, single-buffered
    # weights, packed-LHS scratches, f32 accumulators) -> scoped-VMEM limit,
    # capped at ~70% of the device's physical VMEM (64 MiB/core on v7x).
    need = (2 * Lext * Cin * 2
            + (9 * Cin * Cmid + 9 * Cmid * Cout) * 2
            + 2 * Lb2 * Cout * 2 * 2
            + Lb1 * 3 * Cin * 2 + Lb2 * 3 * Cmid * 2
            + Lb1 * 3 * Cmid * 4 + Lb1 * Cmid * 4 + Lb2 * 3 * Cout * 4
            + (1 << 20))
    try:
        cap = int(pltpu.get_tpu_info().vmem_capacity_bytes)
    except Exception:
        cap = 64 * 1024 * 1024
    vmem_limit = int(min(max(2 * need, 32 * 1024 * 1024),
                         max(int(0.7 * cap), 32 * 1024 * 1024)))

    kernel = functools.partial(_basic_block_kernel, Wp8=Wp8)

    def build(single_buffer_consts):
        def const_spec(shape):
            idx = lambda n, b: (0,) * len(shape)
            if single_buffer_consts:
                # grid-invariant blocks: no need for double buffering
                return pl.BlockSpec(shape, idx, pipeline_mode=pl.Buffered(1))
            return pl.BlockSpec(shape, idx)

        return pl.pallas_call(
            kernel,
            out_shape=jax.ShapeDtypeStruct((N, H * Wp8, Cout), jnp.bfloat16),
            grid_spec=pltpu.PrefetchScalarGridSpec(
                num_scalar_prefetch=0,
                grid=(N, nb),
                in_specs=[
                    pl.BlockSpec((1, Lext, Cin), lambda n, b: (n, 0, 0)),
                    pl.BlockSpec((1, Lb1, 1), lambda n, b: (b, 0, 0)),
                    const_spec((3 * Cin, 3 * Cmid)),
                    const_spec((1, Cmid)),
                    const_spec((1, Cmid)),
                    const_spec((3 * Cmid, 3 * Cout)),
                    const_spec((1, Cout)),
                    const_spec((1, Cout)),
                ],
                out_specs=pl.BlockSpec((1, Lb2, Cout), lambda n, b: (n, b, 0)),
                scratch_shapes=[pltpu.VMEM((Lb1, 3 * Cin), jnp.bfloat16),
                                pltpu.VMEM((Lb2, 3 * Cmid), jnp.bfloat16)],
            ),
            compiler_params=pltpu.CompilerParams(
                dimension_semantics=("parallel", "parallel"),
                vmem_limit_bytes=vmem_limit),
        )

    args = (x_ext, band_mask, w1p, s1, b1, w2p, s2, b2)
    try:
        return build(True)(*args)
    except Exception:
        # Older Pallas without BlockSpec.pipeline_mode / pl.Buffered.
        return build(False)(*args)


def basic_block_gl(x_nchw, params, eps=1e-5):
    """BasicBlockGl forward (stride=1, dilation=1, downsample=None, use_se=False)."""
    # TODO(synk): stride>1 / dilation>1, the downsample path and the SEModule
    # (use_se=True) are not exercised by the default constructor args and are
    # not implemented.
    N, Cin, H, W = x_nchw.shape
    Cmid = params[0].shape[0]
    Cout = params[5].shape[0]
    assert Cout == Cin, "identity residual requires downsample=None"

    packed = pack_basic_block_params(params, eps)
    Wp8 = ((W + 2 + 7) // 8) * 8        # conv-padded width rounded up to 8
    # NCHW -> NHWC bf16; one pad supplies the conv padding, the width round-up
    # to a sublane multiple, and one extra zero grid-row top/bottom.
    x = jnp.transpose(x_nchw, (0, 2, 3, 1)).astype(jnp.bfloat16)
    x_ext = jnp.pad(x, ((0, 0), (2, 2), (1, Wp8 - W - 1), (0, 0)))
    x_ext = x_ext.reshape(N, (H + 4) * Wp8, Cin)

    out_flat = basic_block_gl_flat(x_ext, packed, H=H, W=W)
    out = out_flat.reshape(N, H, Wp8, Cout)[:, :, 1:1 + W, :]
    return jnp.transpose(out, (0, 3, 1, 2)).astype(x_nchw.dtype)


def _ref_forward(x, params, eps=1e-5):
    """Pure-JAX reference (conv / BN-eval / relu / residual) for validation."""
    (w1, g1, be1, rm1, rv1, w2, g2, be2, rm2, rv2) = params

    def bn(y, g, b, m, v):
        return ((y - m[None, :, None, None]) /
                jnp.sqrt(v[None, :, None, None] + eps)
                * g[None, :, None, None] + b[None, :, None, None])

    dn = ('NCHW', 'OIHW', 'NCHW')
    out = lax.conv_general_dilated(x, w1, (1, 1), ((1, 1), (1, 1)),
                                   dimension_numbers=dn)
    out = jnp.maximum(bn(out, g1, be1, rm1, rv1), 0.0)
    out = lax.conv_general_dilated(out, w2, (1, 1), ((1, 1), (1, 1)),
                                   dimension_numbers=dn)
    out = bn(out, g2, be2, rm2, rv2) + x
    return jnp.maximum(out, 0.0)


if __name__ == "__main__":
    key = jax.random.PRNGKey(0)
    N, C, H, W = 2, 4, 16, 16          # inplanes = planes = 4, stride = 1
    planes = C
    ks = jax.random.split(key, 11)

    def bf16_round(a):
        # snap to bf16-representable values so the kernel (bf16 activations /
        # weights, f32 accumulation) and the f32 reference see identical data
        return a.astype(jnp.bfloat16).astype(jnp.float32)

    x = bf16_round(jax.random.normal(ks[0], (N, C, H, W), jnp.float32))
    w1 = bf16_round(jax.random.normal(ks[1], (planes, C, 3, 3), jnp.float32) * 0.2)
    g1 = 1.0 + 0.1 * jax.random.normal(ks[2], (planes,), jnp.float32)
    be1 = 0.1 * jax.random.normal(ks[3], (planes,), jnp.float32)
    rm1 = 0.1 * jax.random.normal(ks[4], (planes,), jnp.float32)
    rv1 = jnp.abs(jax.random.normal(ks[5], (planes,), jnp.float32)) * 0.5 + 0.5
    w2 = bf16_round(jax.random.normal(ks[6], (planes, planes, 3, 3), jnp.float32) * 0.2)
    g2 = 1.0 + 0.1 * jax.random.normal(ks[7], (planes,), jnp.float32)
    be2 = 0.1 * jax.random.normal(ks[8], (planes,), jnp.float32)
    rm2 = 0.1 * jax.random.normal(ks[9], (planes,), jnp.float32)
    rv2 = jnp.abs(jax.random.normal(ks[10], (planes,), jnp.float32)) * 0.5 + 0.5
    params = (w1, g1, be1, rm1, rv1, w2, g2, be2, rm2, rv2)

    out = jax.block_until_ready(basic_block_gl(x, params))
    ref = _ref_forward(x, params)
    assert out.shape == (N, C, H, W)
    err = float(jnp.max(jnp.abs(out - ref)))
    # bf16 activations/weights and bf16 output with f32 accumulation (conv2's
    # input and the final store are rounded to bf16), hence the relaxed
    # tolerance vs the f32 reference.
    assert jnp.allclose(out, ref, atol=5e-2, rtol=5e-2), err
    print("KERNEL_OK")
</pallas_src>

<mosaic_0001>
module attributes {stable_mosaic.version = 11 : i64} {
  func.func @_basic_block_kernel(%arg0: i32, %arg1: i32, %arg2: memref<1x480x4xbf16, #tpu.memory_space<vmem>>, %arg3: memref<1x240x1xf32, #tpu.memory_space<vmem>>, %arg4: memref<12x12xbf16, #tpu.memory_space<vmem>>, %arg5: memref<1x4xf32, #tpu.memory_space<vmem>>, %arg6: memref<1x4xf32, #tpu.memory_space<vmem>>, %arg7: memref<12x12xbf16, #tpu.memory_space<vmem>>, %arg8: memref<1x4xf32, #tpu.memory_space<vmem>>, %arg9: memref<1x4xf32, #tpu.memory_space<vmem>>, %arg10: memref<1x192x4xbf16, #tpu.memory_space<vmem>>, %arg11: memref<240x12xbf16, #tpu.memory_space<vmem>>, %arg12: memref<192x12xbf16, #tpu.memory_space<vmem>>) attributes {dimension_semantics = [#tpu.dimension_semantics<parallel>, #tpu.dimension_semantics<parallel>], iteration_bounds = array<i64: 2, 2>, scalar_prefetch = 0 : i64, scratch_operands = 2 : i64, tpu.core_type = #tpu.core_type<tc>, window_params = [{transform_indices = @transform_0, window_bounds = array<i64: 1, 480, 4>}, {transform_indices = @transform_1, window_bounds = array<i64: 1, 240, 1>}, {pipeline_mode = #tpu.pipeline_mode<synchronous>, transform_indices = @transform_2, window_bounds = array<i64: 12, 12>}, {pipeline_mode = #tpu.pipeline_mode<synchronous>, transform_indices = @transform_3, window_bounds = array<i64: 1, 4>}, {pipeline_mode = #tpu.pipeline_mode<synchronous>, transform_indices = @transform_4, window_bounds = array<i64: 1, 4>}, {pipeline_mode = #tpu.pipeline_mode<synchronous>, transform_indices = @transform_5, window_bounds = array<i64: 12, 12>}, {pipeline_mode = #tpu.pipeline_mode<synchronous>, transform_indices = @transform_6, window_bounds = array<i64: 1, 4>}, {pipeline_mode = #tpu.pipeline_mode<synchronous>, transform_indices = @transform_7, window_bounds = array<i64: 1, 4>}, {transform_indices = @transform_8, window_bounds = array<i64: 1, 192, 4>}]} {
    %c192_i32 = arith.constant 192 : i32
    %0 = arith.muli %arg1, %c192_i32 : i32
    %1 = tpu.assume_multiple %0, 8 : i32
    %c0 = arith.constant 0 : index
    %2 = arith.index_cast %1 : i32 to index
    %c0_0 = arith.constant 0 : index
    %3 = vector.load %arg2[%c0, %2, %c0_0] : memref<1x480x4xbf16, #tpu.memory_space<vmem>>, vector<1x240x4xbf16>
    %4 = vector.shape_cast %3 : vector<1x240x4xbf16> to vector<240x4xbf16>
    %c0_1 = arith.constant 0 : index
    %c0_2 = arith.constant 0 : index
    %5 = vector.load %arg11[%c0_1, %c0_2] : memref<240x12xbf16, #tpu.memory_space<vmem>>, vector<240x4xbf16>
    tpu.vector_store %arg11[%c0_1, %c0_2], %4 {strides = array<i32>} : memref<240x12xbf16, #tpu.memory_space<vmem>>, vector<240x4xbf16>,
    %c24_i32 = arith.constant 24 : i32
    %6 = arith.addi %1, %c24_i32 : i32
    %c0_3 = arith.constant 0 : index
    %7 = arith.index_cast %6 : i32 to index
    %c0_4 = arith.constant 0 : index
    %8 = vector.load %arg2[%c0_3, %7, %c0_4] : memref<1x480x4xbf16, #tpu.memory_space<vmem>>, vector<1x240x4xbf16>
    %9 = vector.shape_cast %8 : vector<1x240x4xbf16> to vector<240x4xbf16>
    %c0_5 = arith.constant 0 : index
    %c4 = arith.constant 4 : index
    %10 = vector.load %arg11[%c0_5, %c4] : memref<240x12xbf16, #tpu.memory_space<vmem>>, vector<240x4xbf16>
    tpu.vector_store %arg11[%c0_5, %c4], %9 {strides = array<i32>} : memref<240x12xbf16, #tpu.memory_space<vmem>>, vector<240x4xbf16>,
    %c48_i32 = arith.constant 48 : i32
    %11 = arith.addi %1, %c48_i32 : i32
    %c0_6 = arith.constant 0 : index
    %12 = arith.index_cast %11 : i32 to index
    %c0_7 = arith.constant 0 : index
    %13 = vector.load %arg2[%c0_6, %12, %c0_7] : memref<1x480x4xbf16, #tpu.memory_space<vmem>>, vector<1x240x4xbf16>
    %14 = vector.shape_cast %13 : vector<1x240x4xbf16> to vector<240x4xbf16>
    %c0_8 = arith.constant 0 : index
    %c8 = arith.constant 8 : index
    %15 = vector.load %arg11[%c0_8, %c8] : memref<240x12xbf16, #tpu.memory_space<vmem>>, vector<240x4xbf16>
    tpu.vector_store %arg11[%c0_8, %c8], %14 {strides = array<i32>} : memref<240x12xbf16, #tpu.memory_space<vmem>>, vector<240x4xbf16>,
    %c0_9 = arith.constant 0 : index
    %c0_10 = arith.constant 0 : index
    %16 = vector.load %arg11[%c0_9, %c0_10] : memref<240x12xbf16, #tpu.memory_space<vmem>>, vector<240x12xbf16>
    %c0_11 = arith.constant 0 : index
    %c0_12 = arith.constant 0 : index
    %17 = vector.load %arg4[%c0_11, %c0_12] : memref<12x12xbf16, #tpu.memory_space<vmem>>, vector<12x12xbf16>
    %cst = arith.constant dense<0.000000e+00> : vector<240x12xf32>
    %18 = tpu.matmul %16, %17, %cst {dimension_numbers = #tpu.dot_dimension_numbers<[1], [0], [0], [1], [0, 0, 1, 1], [], []>} : vector<240x12xbf16>, vector<12x12xbf16>, vector<240x12xf32> -> vector<240x12xf32>
    %19 = vector.extract_strided_slice %18 {offsets = [0, 0], sizes = [240, 4], strides = [1, 1]} : vector<240x12xf32> to vector<240x4xf32>
    %c1_i32 = arith.constant 1 : i32
    %20 = tpu.dynamic_rotate %19 by %c1_i32 dim 0 : vector<240x4xf32>, i32 -> vector<240x4xf32>
    %21 = vector.extract_strided_slice %18 {offsets = [0, 4], sizes = [240, 4], strides = [1, 1]} : vector<240x12xf32> to vector<240x4xf32>
    %22 = arith.addf %20, %21 : vector<240x4xf32>
    %23 = vector.extract_strided_slice %18 {offsets = [0, 8], sizes = [240, 4], strides = [1, 1]} : vector<240x12xf32> to vector<240x4xf32>
    %c239_i32 = arith.constant 239 : i32
    %24 = tpu.dynamic_rotate %23 by %c239_i32 dim 0 : vector<240x4xf32>, i32 -> vector<240x4xf32>
    %25 = arith.addf %22, %24 : vector<240x4xf32>
    %c0_13 = arith.constant 0 : index
    %c0_14 = arith.constant 0 : index
    %26 = vector.load %arg5[%c0_13, %c0_14] : memref<1x4xf32, #tpu.memory_space<vmem>>, vector<1x4xf32>
    %27 = vector.broadcast %26 : vector<1x4xf32> to vector<240x4xf32>
    %28 = arith.mulf %25, %27 : vector<240x4xf32>
    %c0_15 = arith.constant 0 : index
    %c0_16 = arith.constant 0 : index
    %29 = vector.load %arg6[%c0_15, %c0_16] : memref<1x4xf32, #tpu.memory_space<vmem>>, vector<1x4xf32>
    %30 = vector.broadcast %29 : vector<1x4xf32> to vector<240x4xf32>
    %31 = arith.addf %28, %30 : vector<240x4xf32>
    %cst_17 = arith.constant 0.000000e+00 : f32
    %32 = vector.broadcast %cst_17 : f32 to vector<240x4xf32>
    %33 = arith.maximumf %31, %32 : vector<240x4xf32>
    %c0_18 = arith.constant 0 : index
    %c0_19 = arith.constant 0 : index
    %c0_20 = arith.constant 0 : index
    %34 = vector.load %arg3[%c0_18, %c0_19, %c0_20] : memref<1x240x1xf32, #tpu.memory_space<vmem>>, vector<1x240x1xf32>
    %35 = vector.shape_cast %34 : vector<1x240x1xf32> to vector<240x1xf32>
    %36 = vector.broadcast %35 : vector<240x1xf32> to vector<240x4xf32>
    %37 = arith.mulf %33, %36 : vector<240x4xf32>
    %38 = vector.extract_strided_slice %37 {offsets = [0, 0], sizes = [192, 4], strides = [1, 1]} : vector<240x4xf32> to vector<192x4xf32>
    %39 = arith.truncf %38 : vector<192x4xf32> to vector<192x4xbf16>
    %c0_21 = arith.constant 0 : index
    %c0_22 = arith.constant 0 : index
    %40 = vector.load %arg12[%c0_21, %c0_22] : memref<192x12xbf16, #tpu.memory_space<vmem>>, vector<192x4xbf16>
    tpu.vector_store %arg12[%c0_21, %c0_22], %39 {strides = array<i32>} : memref<192x12xbf16, #tpu.memory_space<vmem>>, vector<192x4xbf16>,
    %41 = vector.extract_strided_slice %37 {offsets = [24, 0], sizes = [192, 4], strides = [1, 1]} : vector<240x4xf32> to vector<192x4xf32>
    %42 = arith.truncf %41 : vector<192x4xf32> to vector<192x4xbf16>
    %c0_23 = arith.constant 0 : index
    %c4_24 = arith.constant 4 : index
    %43 = vector.load %arg12[%c0_23, %c4_24] : memref<192x12xbf16, #tpu.memory_space<vmem>>, vector<192x4xbf16>
    tpu.vector_store %arg12[%c0_23, %c4_24], %42 {strides = array<i32>} : memref<192x12xbf16, #tpu.memory_space<vmem>>, vector<192x4xbf16>,
    %44 = vector.extract_strided_slice %37 {offsets = [48, 0], sizes = [192, 4], strides = [1, 1]} : vector<240x4xf32> to vector<192x4xf32>
    %45 = arith.truncf %44 : vector<192x4xf32> to vector<192x4xbf16>
    %c0_25 = arith.constant 0 : index
    %c8_26 = arith.constant 8 : index
    %46 = vector.load %arg12[%c0_25, %c8_26] : memref<192x12xbf16, #tpu.memory_space<vmem>>, vector<192x4xbf16>
    tpu.vector_store %arg12[%c0_25, %c8_26], %45 {strides = array<i32>} : memref<192x12xbf16, #tpu.memory_space<vmem>>, vector<192x4xbf16>,
    %c0_27 = arith.constant 0 : index
    %c0_28 = arith.constant 0 : index
    %47 = vector.load %arg12[%c0_27, %c0_28] : memref<192x12xbf16, #tpu.memory_space<vmem>>, vector<192x12xbf16>
    %c0_29 = arith.constant 0 : index
    %c0_30 = arith.constant 0 : index
    %48 = vector.load %arg7[%c0_29, %c0_30] : memref<12x12xbf16, #tpu.memory_space<vmem>>, vector<12x12xbf16>
    %cst_31 = arith.constant dense<0.000000e+00> : vector<192x12xf32>
    %49 = tpu.matmul %47, %48, %cst_31 {dimension_numbers = #tpu.dot_dimension_numbers<[1], [0], [0], [1], [0, 0, 1, 1], [], []>} : vector<192x12xbf16>, vector<12x12xbf16>, vector<192x12xf32> -> vector<192x12xf32>
    %50 = vector.extract_strided_slice %49 {offsets = [0, 0], sizes = [192, 4], strides = [1, 1]} : vector<192x12xf32> to vector<192x4xf32>
    %c1_i32_32 = arith.constant 1 : i32
    %51 = tpu.dynamic_rotate %50 by %c1_i32_32 dim 0 : vector<192x4xf32>, i32 -> vector<192x4xf32>
    %52 = vector.extract_strided_slice %49 {offsets = [0, 4], sizes = [192, 4], strides = [1, 1]} : vector<192x12xf32> to vector<192x4xf32>
    %53 = arith.addf %51, %52 : vector<192x4xf32>
    %54 = vector.extract_strided_slice %49 {offsets = [0, 8], sizes = [192, 4], strides = [1, 1]} : vector<192x12xf32> to vector<192x4xf32>
    %c191_i32 = arith.constant 191 : i32
    %55 = tpu.dynamic_rotate %54 by %c191_i32 dim 0 : vector<192x4xf32>, i32 -> vector<192x4xf32>
    %56 = arith.addf %53, %55 : vector<192x4xf32>
    %c48_i32_33 = arith.constant 48 : i32
    %57 = arith.addi %1, %c48_i32_33 : i32
    %c0_34 = arith.constant 0 : index
    %58 = arith.index_cast %57 : i32 to index
    %c0_35 = arith.constant 0 : index
    %59 = vector.load %arg2[%c0_34, %58, %c0_35] : memref<1x480x4xbf16, #tpu.memory_space<vmem>>, vector<1x192x4xbf16>
    %60 = vector.shape_cast %59 : vector<1x192x4xbf16> to vector<192x4xbf16>
    %61 = arith.extf %60 : vector<192x4xbf16> to vector<192x4xf32>
    %c0_36 = arith.constant 0 : index
    %c0_37 = arith.constant 0 : index
    %62 = vector.load %arg8[%c0_36, %c0_37] : memref<1x4xf32, #tpu.memory_space<vmem>>, vector<1x4xf32>
    %63 = vector.broadcast %62 : vector<1x4xf32> to vector<192x4xf32>
    %64 = arith.mulf %56, %63 : vector<192x4xf32>
    %c0_38 = arith.constant 0 : index
    %c0_39 = arith.constant 0 : index
    %65 = vector.load %arg9[%c0_38, %c0_39] : memref<1x4xf32, #tpu.memory_space<vmem>>, vector<1x4xf32>
    %66 = vector.broadcast %65 : vector<1x4xf32> to vector<192x4xf32>
    %67 = arith.addf %64, %66 : vector<192x4xf32>
    %68 = arith.addf %67, %61 : vector<192x4xf32>
    %cst_40 = arith.constant 0.000000e+00 : f32
    %69 = vector.broadcast %cst_40 : f32 to vector<192x4xf32>
    %70 = arith.maximumf %68, %69 : vector<192x4xf32>
    %71 = arith.truncf %70 : vector<192x4xf32> to vector<192x4xbf16>
    %c0_41 = arith.constant 0 : index
    %c0_42 = arith.constant 0 : index
    %c0_43 = arith.constant 0 : index
    %72 = vector.load %arg10[%c0_41, %c0_42, %c0_43] : memref<1x192x4xbf16, #tpu.memory_space<vmem>>, vector<1x192x4xbf16>
    %73 = vector.shape_cast %72 : vector<1x192x4xbf16> to vector<192x4xbf16>
    %74 = vector.shape_cast %71 : vector<192x4xbf16> to vector<1x192x4xbf16>
    tpu.vector_store %arg10[%c0_41, %c0_42, %c0_43], %74 {strides = array<i32>} : memref<1x192x4xbf16, #tpu.memory_space<vmem>>, vector<1x192x4xbf16>,
    return
  }
  func.func @transform_0(%arg0: i32, %arg1: i32) -> (i32, i32, i32) {
    %c0_i32 = arith.constant 0 : i32
    %c0_i32_0 = arith.constant 0 : i32
    %c0_i32_1 = arith.constant 0 : i32
    return %arg0, %c0_i32, %c0_i32_0 : i32, i32, i32
  }
  func.func @transform_1(%arg0: i32, %arg1: i32) -> (i32, i32, i32) {
    %c0_i32 = arith.constant 0 : i32
    %c0_i32_0 = arith.constant 0 : i32
    %c0_i32_1 = arith.constant 0 : i32
    return %arg1, %c0_i32, %c0_i32_0 : i32, i32, i32
  }
  func.func @transform_2(%arg0: i32, %arg1: i32) -> (i32, i32) {
    %c0_i32 = arith.constant 0 : i32
    %c0_i32_0 = arith.constant 0 : i32
    %c0_i32_1 = arith.constant 0 : i32
    return %c0_i32, %c0_i32_0 : i32, i32
  }
  func.func @transform_3(%arg0: i32, %arg1: i32) -> (i32, i32) {
    %c0_i32 = arith.constant 0 : i32
    %c0_i32_0 = arith.constant 0 : i32
    %c0_i32_1 = arith.constant 0 : i32
    return %c0_i32, %c0_i32_0 : i32, i32
  }
  func.func @transform_4(%arg0: i32, %arg1: i32) -> (i32, i32) {
    %c0_i32 = arith.constant 0 : i32
    %c0_i32_0 = arith.constant 0 : i32
    %c0_i32_1 = arith.constant 0 : i32
    return %c0_i32, %c0_i32_0 : i32, i32
  }
  func.func @transform_5(%arg0: i32, %arg1: i32) -> (i32, i32) {
    %c0_i32 = arith.constant 0 : i32
    %c0_i32_0 = arith.constant 0 : i32
    %c0_i32_1 = arith.constant 0 : i32
    return %c0_i32, %c0_i32_0 : i32, i32
  }
  func.func @transform_6(%arg0: i32, %arg1: i32) -> (i32, i32) {
    %c0_i32 = arith.constant 0 : i32
    %c0_i32_0 = arith.constant 0 : i32
    %c0_i32_1 = arith.constant 0 : i32
    return %c0_i32, %c0_i32_0 : i32, i32
  }
  func.func @transform_7(%arg0: i32, %arg1: i32) -> (i32, i32) {
    %c0_i32 = arith.constant 0 : i32
    %c0_i32_0 = arith.constant 0 : i32
    %c0_i32_1 = arith.constant 0 : i32
    return %c0_i32, %c0_i32_0 : i32, i32
  }
  func.func @transform_8(%arg0: i32, %arg1: i32) -> (i32, i32, i32) {
    %c0_i32 = arith.constant 0 : i32
    %c0_i32_0 = arith.constant 0 : i32
    return %arg0, %arg1, %c0_i32 : i32, i32, i32
  }
}

module attributes {stable_mosaic.version = 11 : i64} {
  func.func @_basic_block_kernel(%arg0: i32, %arg1: i32, %arg2: memref<1x480x4xbf16, #tpu.memory_space<vmem>>, %arg3: memref<1x240x1xf32, #tpu.memory_space<vmem>>, %arg4: memref<12x12xbf16, #tpu.memory_space<vmem>>, %arg5: memref<1x4xf32, #tpu.memory_space<vmem>>, %arg6: memref<1x4xf32, #tpu.memory_space<vmem>>, %arg7: memref<12x12xbf16, #tpu.memory_space<vmem>>, %arg8: memref<1x4xf32, #tpu.memory_space<vmem>>, %arg9: memref<1x4xf32, #tpu.memory_space<vmem>>, %arg10: memref<1x192x4xbf16, #tpu.memory_space<vmem>>, %arg11: memref<240x12xbf16, #tpu.memory_space<vmem>>, %arg12: memref<192x12xbf16, #tpu.memory_space<vmem>>) attributes {dimension_semantics = [#tpu.dimension_semantics<parallel>, #tpu.dimension_semantics<parallel>], iteration_bounds = array<i64: 2, 2>, scalar_prefetch = 0 : i64, scratch_operands = 2 : i64, tpu.core_type = #tpu.core_type<tc>, window_params = [{transform_indices = @transform_0, window_bounds = array<i64: 1, 480, 4>}, {transform_indices = @transform_1, window_bounds = array<i64: 1, 240, 1>}, {pipeline_mode = #tpu.pipeline_mode<synchronous>, transform_indices = @transform_2, window_bounds = array<i64: 12, 12>}, {pipeline_mode = #tpu.pipeline_mode<synchronous>, transform_indices = @transform_3, window_bounds = array<i64: 1, 4>}, {pipeline_mode = #tpu.pipeline_mode<synchronous>, transform_indices = @transform_4, window_bounds = array<i64: 1, 4>}, {pipeline_mode = #tpu.pipeline_mode<synchronous>, transform_indices = @transform_5, window_bounds = array<i64: 12, 12>}, {pipeline_mode = #tpu.pipeline_mode<synchronous>, transform_indices = @transform_6, window_bounds = array<i64: 1, 4>}, {pipeline_mode = #tpu.pipeline_mode<synchronous>, transform_indices = @transform_7, window_bounds = array<i64: 1, 4>}, {transform_indices = @transform_8, window_bounds = array<i64: 1, 192, 4>}]} {
    %c192_i32 = arith.constant 192 : i32
    %0 = arith.muli %arg1, %c192_i32 : i32
    %1 = tpu.assume_multiple %0, 8 : i32
    %c0 = arith.constant 0 : index
    %2 = arith.index_cast %1 : i32 to index
    %c0_0 = arith.constant 0 : index
    %3 = vector.load %arg2[%c0, %2, %c0_0] : memref<1x480x4xbf16, #tpu.memory_space<vmem>>, vector<1x240x4xbf16>
    %4 = vector.shape_cast %3 : vector<1x240x4xbf16> to vector<240x4xbf16>
    %c0_1 = arith.constant 0 : index
    %c0_2 = arith.constant 0 : index
    %5 = vector.load %arg11[%c0_1, %c0_2] : memref<240x12xbf16, #tpu.memory_space<vmem>>, vector<240x4xbf16>
    tpu.vector_store %arg11[%c0_1, %c0_2], %4 {strides = array<i32>} : memref<240x12xbf16, #tpu.memory_space<vmem>>, vector<240x4xbf16>,
    %c24_i32 = arith.constant 24 : i32
    %6 = arith.addi %1, %c24_i32 : i32
    %c0_3 = arith.constant 0 : index
    %7 = arith.index_cast %6 : i32 to index
    %c0_4 = arith.constant 0 : index
    %8 = vector.load %arg2[%c0_3, %7, %c0_4] : memref<1x480x4xbf16, #tpu.memory_space<vmem>>, vector<1x240x4xbf16>
    %9 = vector.shape_cast %8 : vector<1x240x4xbf16> to vector<240x4xbf16>
    %c0_5 = arith.constant 0 : index
    %c4 = arith.constant 4 : index
    %10 = vector.load %arg11[%c0_5, %c4] : memref<240x12xbf16, #tpu.memory_space<vmem>>, vector<240x4xbf16>
    tpu.vector_store %arg11[%c0_5, %c4], %9 {strides = array<i32>} : memref<240x12xbf16, #tpu.memory_space<vmem>>, vector<240x4xbf16>,
    %c48_i32 = arith.constant 48 : i32
    %11 = arith.addi %1, %c48_i32 : i32
    %c0_6 = arith.constant 0 : index
    %12 = arith.index_cast %11 : i32 to index
    %c0_7 = arith.constant 0 : index
    %13 = vector.load %arg2[%c0_6, %12, %c0_7] : memref<1x480x4xbf16, #tpu.memory_space<vmem>>, vector<1x240x4xbf16>
    %14 = vector.shape_cast %13 : vector<1x240x4xbf16> to vector<240x4xbf16>
    %c0_8 = arith.constant 0 : index
    %c8 = arith.constant 8 : index
    %15 = vector.load %arg11[%c0_8, %c8] : memref<240x12xbf16, #tpu.memory_space<vmem>>, vector<240x4xbf16>
    tpu.vector_store %arg11[%c0_8, %c8], %14 {strides = array<i32>} : memref<240x12xbf16, #tpu.memory_space<vmem>>, vector<240x4xbf16>,
    %c0_9 = arith.constant 0 : index
    %c0_10 = arith.constant 0 : index
    %16 = vector.load %arg11[%c0_9, %c0_10] : memref<240x12xbf16, #tpu.memory_space<vmem>>, vector<240x12xbf16>
    %c0_11 = arith.constant 0 : index
    %c0_12 = arith.constant 0 : index
    %17 = vector.load %arg4[%c0_11, %c0_12] : memref<12x12xbf16, #tpu.memory_space<vmem>>, vector<12x12xbf16>
    %cst = arith.constant dense<0.000000e+00> : vector<240x12xf32>
    %18 = tpu.matmul %16, %17, %cst {dimension_numbers = #tpu.dot_dimension_numbers<[1], [0], [0], [1], [0, 0, 1, 1], [], []>} : vector<240x12xbf16>, vector<12x12xbf16>, vector<240x12xf32> -> vector<240x12xf32>
    %19 = vector.extract_strided_slice %18 {offsets = [0, 0], sizes = [240, 4], strides = [1, 1]} : vector<240x12xf32> to vector<240x4xf32>
    %c1_i32 = arith.constant 1 : i32
    %20 = tpu.dynamic_rotate %19 by %c1_i32 dim 0 : vector<240x4xf32>, i32 -> vector<240x4xf32>
    %21 = vector.extract_strided_slice %18 {offsets = [0, 4], sizes = [240, 4], strides = [1, 1]} : vector<240x12xf32> to vector<240x4xf32>
    %22 = arith.addf %20, %21 : vector<240x4xf32>
    %23 = vector.extract_strided_slice %18 {offsets = [0, 8], sizes = [240, 4], strides = [1, 1]} : vector<240x12xf32> to vector<240x4xf32>
    %c239_i32 = arith.constant 239 : i32
    %24 = tpu.dynamic_rotate %23 by %c239_i32 dim 0 : vector<240x4xf32>, i32 -> vector<240x4xf32>
    %25 = arith.addf %22, %24 : vector<240x4xf32>
    %c0_13 = arith.constant 0 : index
    %c0_14 = arith.constant 0 : index
    %26 = vector.load %arg5[%c0_13, %c0_14] : memref<1x4xf32, #tpu.memory_space<vmem>>, vector<1x4xf32>
    %27 = vector.broadcast %26 : vector<1x4xf32> to vector<240x4xf32>
    %28 = arith.mulf %25, %27 : vector<240x4xf32>
    %c0_15 = arith.constant 0 : index
    %c0_16 = arith.constant 0 : index
    %29 = vector.load %arg6[%c0_15, %c0_16] : memref<1x4xf32, #tpu.memory_space<vmem>>, vector<1x4xf32>
    %30 = vector.broadcast %29 : vector<1x4xf32> to vector<240x4xf32>
    %31 = arith.addf %28, %30 : vector<240x4xf32>
    %cst_17 = arith.constant 0.000000e+00 : f32
    %32 = vector.broadcast %cst_17 : f32 to vector<240x4xf32>
    %33 = arith.maximumf %31, %32 : vector<240x4xf32>
    %c0_18 = arith.constant 0 : index
    %c0_19 = arith.constant 0 : index
    %c0_20 = arith.constant 0 : index
    %34 = vector.load %arg3[%c0_18, %c0_19, %c0_20] : memref<1x240x1xf32, #tpu.memory_space<vmem>>, vector<1x240x1xf32>
    %35 = vector.shape_cast %34 : vector<1x240x1xf32> to vector<240x1xf32>
    %36 = vector.broadcast %35 : vector<240x1xf32> to vector<240x4xf32>
    %37 = arith.mulf %33, %36 : vector<240x4xf32>
    %38 = vector.extract_strided_slice %37 {offsets = [0, 0], sizes = [192, 4], strides = [1, 1]} : vector<240x4xf32> to vector<192x4xf32>
    %39 = arith.truncf %38 : vector<192x4xf32> to vector<192x4xbf16>
    %c0_21 = arith.constant 0 : index
    %c0_22 = arith.constant 0 : index
    %40 = vector.load %arg12[%c0_21, %c0_22] : memref<192x12xbf16, #tpu.memory_space<vmem>>, vector<192x4xbf16>
    tpu.vector_store %arg12[%c0_21, %c0_22], %39 {strides = array<i32>} : memref<192x12xbf16, #tpu.memory_space<vmem>>, vector<192x4xbf16>,
    %41 = vector.extract_strided_slice %37 {offsets = [24, 0], sizes = [192, 4], strides = [1, 1]} : vector<240x4xf32> to vector<192x4xf32>
    %42 = arith.truncf %41 : vector<192x4xf32> to vector<192x4xbf16>
    %c0_23 = arith.constant 0 : index
    %c4_24 = arith.constant 4 : index
    %43 = vector.load %arg12[%c0_23, %c4_24] : memref<192x12xbf16, #tpu.memory_space<vmem>>, vector<192x4xbf16>
    tpu.vector_store %arg12[%c0_23, %c4_24], %42 {strides = array<i32>} : memref<192x12xbf16, #tpu.memory_space<vmem>>, vector<192x4xbf16>,
    %44 = vector.extract_strided_slice %37 {offsets = [48, 0], sizes = [192, 4], strides = [1, 1]} : vector<240x4xf32> to vector<192x4xf32>
    %45 = arith.truncf %44 : vector<192x4xf32> to vector<192x4xbf16>
    %c0_25 = arith.constant 0 : index
    %c8_26 = arith.constant 8 : index
    %46 = vector.load %arg12[%c0_25, %c8_26] : memref<192x12xbf16, #tpu.memory_space<vmem>>, vector<192x4xbf16>
    tpu.vector_store %arg12[%c0_25, %c8_26], %45 {strides = array<i32>} : memref<192x12xbf16, #tpu.memory_space<vmem>>, vector<192x4xbf16>,
    %c0_27 = arith.constant 0 : index
    %c0_28 = arith.constant 0 : index
    %47 = vector.load %arg12[%c0_27, %c0_28] : memref<192x12xbf16, #tpu.memory_space<vmem>>, vector<192x12xbf16>
    %c0_29 = arith.constant 0 : index
    %c0_30 = arith.constant 0 : index
    %48 = vector.load %arg7[%c0_29, %c0_30] : memref<12x12xbf16, #tpu.memory_space<vmem>>, vector<12x12xbf16>
    %cst_31 = arith.constant dense<0.000000e+00> : vector<192x12xf32>
    %49 = tpu.matmul %47, %48, %cst_31 {dimension_numbers = #tpu.dot_dimension_numbers<[1], [0], [0], [1], [0, 0, 1, 1], [], []>} : vector<192x12xbf16>, vector<12x12xbf16>, vector<192x12xf32> -> vector<192x12xf32>
    %50 = vector.extract_strided_slice %49 {offsets = [0, 0], sizes = [192, 4], strides = [1, 1]} : vector<192x12xf32> to vector<192x4xf32>
    %c1_i32_32 = arith.constant 1 : i32
    %51 = tpu.dynamic_rotate %50 by %c1_i32_32 dim 0 : vector<192x4xf32>, i32 -> vector<192x4xf32>
    %52 = vector.extract_strided_slice %49 {offsets = [0, 4], sizes = [192, 4], strides = [1, 1]} : vector<192x12xf32> to vector<192x4xf32>
    %53 = arith.addf %51, %52 : vector<192x4xf32>
    %54 = vector.extract_strided_slice %49 {offsets = [0, 8], sizes = [192, 4], strides = [1, 1]} : vector<192x12xf32> to vector<192x4xf32>
    %c191_i32 = arith.constant 191 : i32
    %55 = tpu.dynamic_rotate %54 by %c191_i32 dim 0 : vector<192x4xf32>, i32 -> vector<192x4xf32>
    %56 = arith.addf %53, %55 : vector<192x4xf32>
    %c48_i32_33 = arith.constant 48 : i32
    %57 = arith.addi %1, %c48_i32_33 : i32
    %c0_34 = arith.constant 0 : index
    %58 = arith.index_cast %57 : i32 to index
    %c0_35 = arith.constant 0 : index
    %59 = vector.load %arg2[%c0_34, %58, %c0_35] : memref<1x480x4xbf16, #tpu.memory_space<vmem>>, vector<1x192x4xbf16>
    %60 = vector.shape_cast %59 : vector<1x192x4xbf16> to vector<192x4xbf16>
    %61 = arith.extf %60 : vector<192x4xbf16> to vector<192x4xf32>
    %c0_36 = arith.constant 0 : index
    %c0_37 = arith.constant 0 : index
    %62 = vector.load %arg8[%c0_36, %c0_37] : memref<1x4xf32, #tpu.memory_space<vmem>>, vector<1x4xf32>
    %63 = vector.broadcast %62 : vector<1x4xf32> to vector<192x4xf32>
    %64 = arith.mulf %56, %63 : vector<192x4xf32>
    %c0_38 = arith.constant 0 : index
    %c0_39 = arith.constant 0 : index
    %65 = vector.load %arg9[%c0_38, %c0_39] : memref<1x4xf32, #tpu.memory_space<vmem>>, vector<1x4xf32>
    %66 = vector.broadcast %65 : vector<1x4xf32> to vector<192x4xf32>
    %67 = arith.addf %64, %66 : vector<192x4xf32>
    %68 = arith.addf %67, %61 : vector<192x4xf32>
    %cst_40 = arith.constant 0.000000e+00 : f32
    %69 = vector.broadcast %cst_40 : f32 to vector<192x4xf32>
    %70 = arith.maximumf %68, %69 : vector<192x4xf32>
    %71 = arith.truncf %70 : vector<192x4xf32> to vector<192x4xbf16>
    %c0_41 = arith.constant 0 : index
    %c0_42 = arith.constant 0 : index
    %c0_43 = arith.constant 0 : index
    %72 = vector.load %arg10[%c0_41, %c0_42, %c0_43] : memref<1x192x4xbf16, #tpu.memory_space<vmem>>, vector<1x192x4xbf16>
    %73 = vector.shape_cast %72 : vector<1x192x4xbf16> to vector<192x4xbf16>
    %74 = vector.shape_cast %71 : vector<192x4xbf16> to vector<1x192x4xbf16>
    tpu.vector_store %arg10[%c0_41, %c0_42, %c0_43], %74 {strides = array<i32>} : memref<1x192x4xbf16, #tpu.memory_space<vmem>>, vector<1x192x4xbf16>,
    return
  }
  func.func @transform_0(%arg0: i32, %arg1: i32) -> (i32, i32, i32) {
    %c0_i32 = arith.constant 0 : i32
    %c0_i32_0 = arith.constant 0 : i32
    %c0_i32_1 = arith.constant 0 : i32
    return %arg0, %c0_i32, %c0_i32_0 : i32, i32, i32
  }
  func.func @transform_1(%arg0: i32, %arg1: i32) -> (i32, i32, i32) {
    %c0_i32 = arith.constant 0 : i32
    %c0_i32_0 = arith.constant 0 : i32
    %c0_i32_1 = arith.constant 0 : i32
    return %arg1, %c0_i32, %c0_i32_0 : i32, i32, i32
  }
  func.func @transform_2(%arg0: i32, %arg1: i32) -> (i32, i32) {
    %c0_i32 = arith.constant 0 : i32
    %c0_i32_0 = arith.constant 0 : i32
    %c0_i32_1 = arith.constant 0 : i32
    return %c0_i32, %c0_i32_0 : i32, i32
  }
  func.func @transform_3(%arg0: i32, %arg1: i32) -> (i32, i32) {
    %c0_i32 = arith.constant 0 : i32
    %c0_i32_0 = arith.constant 0 : i32
    %c0_i32_1 = arith.constant 0 : i32
    return %c0_i32, %c0_i32_0 : i32, i32
  }
  func.func @transform_4(%arg0: i32, %arg1: i32) -> (i32, i32) {
    %c0_i32 = arith.constant 0 : i32
    %c0_i32_0 = arith.constant 0 : i32
    %c0_i32_1 = arith.constant 0 : i32
    return %c0_i32, %c0_i32_0 : i32, i32
  }
  func.func @transform_5(%arg0: i32, %arg1: i32) -> (i32, i32) {
    %c0_i32 = arith.constant 0 : i32
    %c0_i32_0 = arith.constant 0 : i32
    %c0_i32_1 = arith.constant 0 : i32
    return %c0_i32, %c0_i32_0 : i32, i32
  }
  func.func @transform_6(%arg0: i32, %arg1: i32) -> (i32, i32) {
    %c0_i32 = arith.constant 0 : i32
    %c0_i32_0 = arith.constant 0 : i32
    %c0_i32_1 = arith.constant 0 : i32
    return %c0_i32, %c0_i32_0 : i32, i32
  }
  func.func @transform_7(%arg0: i32, %arg1: i32) -> (i32, i32) {
    %c0_i32 = arith.constant 0 : i32
    %c0_i32_0 = arith.constant 0 : i32
    %c0_i32_1 = arith.constant 0 : i32
    return %c0_i32, %c0_i32_0 : i32, i32
  }
  func.func @transform_8(%arg0: i32, %arg1: i32) -> (i32, i32, i32) {
    %c0_i32 = arith.constant 0 : i32
    %c0_i32_0 = arith.constant 0 : i32
    return %arg0, %arg1, %c0_i32 : i32, i32, i32
  }
}

</mosaic_0001>

<llo_original>
// kernel: tpu_custom_call.1
$region0: #{tpu_custom_call.1}
  #allocation0 [shape = 'u32[]', space=smem, size = 0x4, offset = 0x4, fixed_abs, tag = 'smem constant byte address 0x4 - core index']
  #allocation1 [shape = 'u32[72,128]{1,0:T(1,128)}', space=vmem, size = 0x9000, scoped, tag = 'internal scratch']
  #allocation2 [shape = 'bf16[240,12]{1,0:T(8,128)(2,1)}', space=vmem, size = 0xf000, scoped, tag = 'scratch operand']
  #allocation3 [shape = 'bf16[192,12]{1,0:T(8,128)(2,1)}', space=vmem, size = 0xc000, scoped, tag = 'scratch operand']
  %s0 = inlined_call_operand.vmem [shape: bf16[2,480,4], index: 0, kind: input, shape index: {}]
  %s1 = inlined_call_operand.vmem [shape: f32[2,240,1], index: 1, kind: input, shape index: {}]
  %s2 = inlined_call_operand.vmem [shape: bf16[12,12], index: 2, kind: input, shape index: {}]
  %s3 = inlined_call_operand.vmem [shape: f32[1,4], index: 3, kind: input, shape index: {}]
  %s4 = inlined_call_operand.vmem [shape: f32[1,4], index: 4, kind: input, shape index: {}]
  %s5 = inlined_call_operand.vmem [shape: bf16[12,12], index: 5, kind: input, shape index: {}]
  %s6 = inlined_call_operand.vmem [shape: f32[1,4], index: 6, kind: input, shape index: {}]
  %s7 = inlined_call_operand.vmem [shape: f32[1,4], index: 7, kind: input, shape index: {}]
  %s8 = inlined_call_operand.vmem [shape: bf16[2,384,4], index: 8, kind: output, shape index: {}]
  %s9 = sld [smem:[#allocation0]]
  $region65: #{tpu_custom_call.1} parent=0
    _
  %s11 = ssub.s32 1, %s9
  %s12 = scalar_select 0, %s11, %s9
  loop: start=0, step=1, limit=6
  $region2: #{tpu_custom_call.1} parent=0 // loop_pre_header
    _
  $region3: #{tpu_custom_call.1} parent=0 // loop_header
    %s14 = sphi 0, %s18
    %p15 = scmp.ge.s32.totalorder %s14, 6
    %s21 = sphi 0, %s33
    %s22 = sphi 0, %s29
    %s23 = sphi 0, %s21
    %s24 = sphi 0, %s22
    %s25 = sphi 0, %s23
    %s26 = sphi 0, %s24
    %s36 = sphi 0, %s38
    %s39 = sphi 0, %s36
    %s40 = sphi 0, %s39
    %s56 = sphi 0, %s40
    %s62 = sphi 0, %s64
    %s65 = sphi 0, %s62
    %s66 = sphi 0, %s65
    %s82 = sphi 0, %s66
    %s86 = sphi 0, %s86
    %s88 = sphi 0, %s86
    %s89 = sphi 0, %s88
    %s103 = sphi 0, %s89
    %s107 = sphi 0, %s107
    %s109 = sphi 0, %s107
    %s110 = sphi 0, %s109
    %s124 = sphi 0, %s110
    %s128 = sphi 0, %s128
    %s130 = sphi 0, %s128
    %s131 = sphi 0, %s130
    %s145 = sphi 0, %s131
    %s149 = sphi 0, %s149
    %s151 = sphi 0, %s149
    %s152 = sphi 0, %s151
    %s166 = sphi 0, %s152
    %s170 = sphi 0, %s170
    %s172 = sphi 0, %s170
    %s173 = sphi 0, %s172
    %s187 = sphi 0, %s173
    %s191 = sphi 0, %s191
    %s193 = sphi 0, %s191
    %s194 = sphi 0, %s193
    %s208 = sphi 0, %s194
    %s216 = sphi 0, %s218
    %s219 = sphi 0, %s216
    %s220 = sphi 0, %s219
    %s236 = sphi 0, %s220
  $region4: #{tpu_custom_call.1} parent=0 // loop_header_branch
    %17 = sbr.rel (%p15) target = $region8
  $region5: #{tpu_custom_call.1} parent=0 // loop_body
    %s19 = ssub.s32 %s14, 1
    %s20 = ssub.s32 %s14, 2
    %s27 = sadd.s32 1, %s22
    %p28 = scmp.ge.s32.totalorder %s27, 2
    %s29 = scalar_select %p28, 0, %s27
    %s30 = sadd.s32 1, %s21
    %s31 = scalar_select %p28, %s30, %s21
    %p32 = scmp.ge.s32.totalorder %s31, 2
    %s33 = scalar_select %p32, 0, %s31
    %s34 = ssub.s32 %s21, %s33
    %p35 = scmp.eq.s32.totalorder %s34, 0
    %s37 = sadd.s32 %s36, 1
    %s38 = scalar_select %p35, %s36, %s37
    %p41 = pneg %p35
    %p42 = scmp.eq.s32.totalorder %s14, 3
    %p43 = por %p41, %p42
    %p44 = scmp.ne.s32.totalorder %s36, %s39
    %p45 = scmp.eq.s32.totalorder %s14, 0
    %p46 = por %p44, %p45
    %p47 = scmp.ne.s32.totalorder %s36, %s39
    %p48 = scmp.eq.s32.totalorder %s19, 3
    %p49 = por %p47, %p48
    %p50 = scmp.ne.s32.totalorder %s39, %s40
    %p51 = scmp.eq.s32.totalorder %s19, 0
    %p52 = por %p50, %p51
    %p53 = scmp.ne.s32.totalorder %s39, %s40
    %p54 = scmp.eq.s32.totalorder %s20, 3
    %p55 = por %p53, %p54
    %p57 = scmp.ne.s32.totalorder %s40, %s56
    %p58 = scmp.eq.s32.totalorder %s20, 0
    %p59 = por %p57, %p58
    %s60 = ssub.s32 %s22, %s29
    %p61 = scmp.eq.s32.totalorder %s60, 0
    %s63 = sadd.s32 %s62, 1
    %s64 = scalar_select %p61, %s62, %s63
    %p67 = pneg %p61
    %p68 = scmp.eq.s32.totalorder %s14, 3
    %p69 = por %p67, %p68
    %p70 = scmp.ne.s32.totalorder %s62, %s65
    %p71 = scmp.eq.s32.totalorder %s14, 0
    %p72 = por %p70, %p71
    %p73 = scmp.ne.s32.totalorder %s62, %s65
    %p74 = scmp.eq.s32.totalorder %s19, 3
    %p75 = por %p73, %p74
    %p76 = scmp.ne.s32.totalorder %s65, %s66
    %p77 = scmp.eq.s32.totalorder %s19, 0
    %p78 = por %p76, %p77
    %p79 = scmp.ne.s32.totalorder %s65, %s66
    %p80 = scmp.eq.s32.totalorder %s20, 3
    %p81 = por %p79, %p80
    %p83 = scmp.ne.s32.totalorder %s66, %s82
    %p84 = scmp.eq.s32.totalorder %s20, 0
    %p85 = por %p83, %p84
    %s87 = sadd.s32 %s86, 1
    %p90 = scmp.eq.s32.totalorder %s14, 3
    %p91 = scmp.ne.s32.totalorder %s86, %s88
    %p92 = scmp.eq.s32.totalorder %s14, 0
    %p93 = por %p91, %p92
    %p94 = scmp.ne.s32.totalorder %s86, %s88
    %p95 = scmp.eq.s32.totalorder %s19, 3
    %p96 = por %p94, %p95
    %p97 = scmp.ne.s32.totalorder %s88, %s89
    %p98 = scmp.eq.s32.totalorder %s19, 0
    %p99 = por %p97, %p98
    %p100 = scmp.ne.s32.totalorder %s88, %s89
    %p101 = scmp.eq.s32.totalorder %s20, 3
    %p102 = por %p100, %p101
    %p104 = scmp.ne.s32.totalorder %s89, %s103
    %p105 = scmp.eq.s32.totalorder %s20, 0
    %p106 = por %p104, %p105
    %s108 = sadd.s32 %s107, 1
    %p111 = scmp.eq.s32.totalorder %s14, 3
    %p112 = scmp.ne.s32.totalorder %s107, %s109
    %p113 = scmp.eq.s32.totalorder %s14, 0
    %p114 = por %p112, %p113
    %p115 = scmp.ne.s32.totalorder %s107, %s109
    %p116 = scmp.eq.s32.totalorder %s19, 3
    %p117 = por %p115, %p116
    %p118 = scmp.ne.s32.totalorder %s109, %s110
    %p119 = scmp.eq.s32.totalorder %s19, 0
    %p120 = por %p118, %p119
    %p121 = scmp.ne.s32.totalorder %s109, %s110
    %p122 = scmp.eq.s32.totalorder %s20, 3
    %p123 = por %p121, %p122
    %p125 = scmp.ne.s32.totalorder %s110, %s124
    %p126 = scmp.eq.s32.totalorder %s20, 0
    %p127 = por %p125, %p126
    %s129 = sadd.s32 %s128, 1
    %p132 = scmp.eq.s32.totalorder %s14, 3
    %p133 = scmp.ne.s32.totalorder %s128, %s130
    %p134 = scmp.eq.s32.totalorder %s14, 0
    %p135 = por %p133, %p134
    %p136 = scmp.ne.s32.totalorder %s128, %s130
    %p137 = scmp.eq.s32.totalorder %s19, 3
    %p138 = por %p136, %p137
    %p139 = scmp.ne.s32.totalorder %s130, %s131
    %p140 = scmp.eq.s32.totalorder %s19, 0
    %p141 = por %p139, %p140
    %p142 = scmp.ne.s32.totalorder %s130, %s131
    %p143 = scmp.eq.s32.totalorder %s20, 3
    %p144 = por %p142, %p143
    %p146 = scmp.ne.s32.totalorder %s131, %s145
    %p147 = scmp.eq.s32.totalorder %s20, 0
    %p148 = por %p146, %p147
    %s150 = sadd.s32 %s149, 1
    %p153 = scmp.eq.s32.totalorder %s14, 3
    %p154 = scmp.ne.s32.totalorder %s149, %s151
    %p155 = scmp.eq.s32.totalorder %s14, 0
    %p156 = por %p154, %p155
    %p157 = scmp.ne.s32.totalorder %s149, %s151
    %p158 = scmp.eq.s32.totalorder %s19, 3
    %p159 = por %p157, %p158
    %p160 = scmp.ne.s32.totalorder %s151, %s152
    %p161 = scmp.eq.s32.totalorder %s19, 0
    %p162 = por %p160, %p161
    %p163 = scmp.ne.s32.totalorder %s151, %s152
    %p164 = scmp.eq.s32.totalorder %s20, 3
    %p165 = por %p163, %p164
    %p167 = scmp.ne.s32.totalorder %s152, %s166
    %p168 = scmp.eq.s32.totalorder %s20, 0
    %p169 = por %p167, %p168
    %s171 = sadd.s32 %s170, 1
    %p174 = scmp.eq.s32.totalorder %s14, 3
    %p175 = scmp.ne.s32.totalorder %s170, %s172
    %p176 = scmp.eq.s32.totalorder %s14, 0
    %p177 = por %p175, %p176
    %p178 = scmp.ne.s32.totalorder %s170, %s172
    %p179 = scmp.eq.s32.totalorder %s19, 3
    %p180 = por %p178, %p179
    %p181 = scmp.ne.s32.totalorder %s172, %s173
    %p182 = scmp.eq.s32.totalorder %s19, 0
    %p183 = por %p181, %p182
    %p184 = scmp.ne.s32.totalorder %s172, %s173
    %p185 = scmp.eq.s32.totalorder %s20, 3
    %p186 = por %p184, %p185
    %p188 = scmp.ne.s32.totalorder %s173, %s187
    %p189 = scmp.eq.s32.totalorder %s20, 0
    %p190 = por %p188, %p189
    %s192 = sadd.s32 %s191, 1
    %p195 = scmp.eq.s32.totalorder %s14, 3
    %p196 = scmp.ne.s32.totalorder %s191, %s193
    %p197 = scmp.eq.s32.totalorder %s14, 0
    %p198 = por %p196, %p197
    %p199 = scmp.ne.s32.totalorder %s191, %s193
    %p200 = scmp.eq.s32.totalorder %s19, 3
    %p201 = por %p199, %p200
    %p202 = scmp.ne.s32.totalorder %s193, %s194
    %p203 = scmp.eq.s32.totalorder %s19, 0
    %p204 = por %p202, %p203
    %p205 = scmp.ne.s32.totalorder %s193, %s194
    %p206 = scmp.eq.s32.totalorder %s20, 3
    %p207 = por %p205, %p206
    %p209 = scmp.ne.s32.totalorder %s194, %s208
    %p210 = scmp.eq.s32.totalorder %s20, 0
    %p211 = por %p209, %p210
    %s212 = ssub.s32 %s21, %s33
    %s213 = ssub.s32 %s22, %s29
    %s214 = sor.u32 %s212, %s213
    %p215 = scmp.eq.s32.totalorder %s214, 0
    %s217 = sadd.s32 %s216, 1
    %s218 = scalar_select %p215, %s216, %s217
    %p221 = pneg %p215
    %p222 = scmp.eq.s32.totalorder %s14, 3
    %p223 = por %p221, %p222
    %p224 = scmp.ne.s32.totalorder %s216, %s219
    %p225 = scmp.eq.s32.totalorder %s14, 0
    %p226 = por %p224, %p225
    %p227 = scmp.ne.s32.totalorder %s216, %s219
    %p228 = scmp.eq.s32.totalorder %s19, 3
    %p229 = por %p227, %p228
    %p230 = scmp.ne.s32.totalorder %s219, %s220
    %p231 = scmp.eq.s32.totalorder %s19, 0
    %p232 = por %p230, %p231
    %p233 = scmp.ne.s32.totalorder %s219, %s220
    %p234 = scmp.eq.s32.totalorder %s20, 3
    %p235 = por %p233, %p234
    %p237 = scmp.ne.s32.totalorder %s220, %s236
    %p238 = scmp.eq.s32.totalorder %s20, 0
    %p239 = por %p237, %p238
    %p240 = scmp.le.s32.totalorder 1, %s14
    %p241 = scmp.lt.s32.totalorder %s14, 5
    %p242 = pnand %p240, %p241
    %p243 = pneg %p242
    // Predicated region
    $region9: #{tpu_custom_call.1} parent=5 // pred_check
      _
    $region10: #{tpu_custom_call.1} parent=5 // pred_check_branch
      %245 = sbr.rel (%p242) target = $region12
    $region11: #{tpu_custom_call.1} parent=5 // pred_region
      %s246 = ssub.s32 %s14, 1
      // Predicated region
      $region13: #{tpu_custom_call.1} parent=11 // pred_check
        %p247 = pneg %p99
      $region14: #{tpu_custom_call.1} parent=11 // pred_check_branch
        %249 = sbr.rel (%p247) target = $region16
      $region15: #{tpu_custom_call.1} parent=11 // pred_region
        _
      $region16: #{tpu_custom_call.1} parent=11 // pred_fallthru
        _
      // Predicated region
      $region17: #{tpu_custom_call.1} parent=11 // pred_check
        %p250 = pneg %p120
      $region18: #{tpu_custom_call.1} parent=11 // pred_check_branch
        %252 = sbr.rel (%p250) target = $region20
      $region19: #{tpu_custom_call.1} parent=11 // pred_region
        _
      $region20: #{tpu_custom_call.1} parent=11 // pred_fallthru
        _
      // Predicated region
      $region21: #{tpu_custom_call.1} parent=11 // pred_check
        %p253 = pneg %p141
      $region22: #{tpu_custom_call.1} parent=11 // pred_check_branch
        %255 = sbr.rel (%p253) target = $region24
      $region23: #{tpu_custom_call.1} parent=11 // pred_region
        _
      $region24: #{tpu_custom_call.1} parent=11 // pred_fallthru
        _
      // Predicated region
      $region25: #{tpu_custom_call.1} parent=11 // pred_check
        %p256 = pneg %p162
      $region26: #{tpu_custom_call.1} parent=11 // pred_check_branch
        %258 = sbr.rel (%p256) target = $region28
      $region27: #{tpu_custom_call.1} parent=11 // pred_region
        _
      $region28: #{tpu_custom_call.1} parent=11 // pred_fallthru
        _
      // Predicated region
      $region29: #{tpu_custom_call.1} parent=11 // pred_check
        %p259 = pneg %p183
      $region30: #{tpu_custom_call.1} parent=11 // pred_check_branch
        %261 = sbr.rel (%p259) target = $region32
      $region31: #{tpu_custom_call.1} parent=11 // pred_region
        _
      $region32: #{tpu_custom_call.1} parent=11 // pred_fallthru
        _
      // Predicated region
      $region33: #{tpu_custom_call.1} parent=11 // pred_check
        %p262 = pneg %p204
      $region34: #{tpu_custom_call.1} parent=11 // pred_check_branch
        %264 = sbr.rel (%p262) target = $region36
      $region35: #{tpu_custom_call.1} parent=11 // pred_region
        _
      $region36: #{tpu_custom_call.1} parent=11 // pred_fallthru
        _
    $region12: #{tpu_custom_call.1} parent=5 // pred_fallthru
      _
    %p265 = scmp.lt.s32.totalorder %s14, 4
    // Predicated region
    $region37: #{tpu_custom_call.1} parent=5 // pred_check
      %p266 = pneg %p265
    $region38: #{tpu_custom_call.1} parent=5 // pred_check_branch
      %268 = sbr.rel (%p266) target = $region40
    $region39: #{tpu_custom_call.1} parent=5 // pred_region
      // Predicated region
      $region41: #{tpu_custom_call.1} parent=39 // pred_check
        %p269 = pneg %p46
      $region42: #{tpu_custom_call.1} parent=39 // pred_check_branch
        %271 = sbr.rel (%p269) target = $region44
      $region43: #{tpu_custom_call.1} parent=39 // pred_region
        %p272 = scmp.lt.s32.totalorder %s21, 1
        %s273 = scalar_select %p272, %s21, 1
        %s274 = smul.addr %s273, 60
        %s275 = smul.addr %s274, 4
        %s276 = scalar_lea.vmem %s0, %s275
      $region44: #{tpu_custom_call.1} parent=39 // pred_fallthru
        _
      // Predicated region
      $region45: #{tpu_custom_call.1} parent=39 // pred_check
        %p277 = pneg %p72
      $region46: #{tpu_custom_call.1} parent=39 // pred_check_branch
        %279 = sbr.rel (%p277) target = $region48
      $region47: #{tpu_custom_call.1} parent=39 // pred_region
        %p280 = scmp.lt.s32.totalorder %s22, 1
        %s281 = scalar_select %p280, %s22, 1
        %s282 = smul.addr %s281, 30
        %s283 = smul.addr %s282, 8
        %s284 = scalar_lea.vmem %s1, %s283
      $region48: #{tpu_custom_call.1} parent=39 // pred_fallthru
        _
    $region40: #{tpu_custom_call.1} parent=5 // pred_fallthru
      _
    %p285 = scmp.le.s32.totalorder 1, %s14
    %p286 = scmp.lt.s32.totalorder %s14, 5
    %p287 = pnand %p285, %p286
    %p288 = pneg %p287
    // Predicated region
    $region49: #{tpu_custom_call.1} parent=5 // pred_check
      _
    $region50: #{tpu_custom_call.1} parent=5 // pred_check_branch
      %290 = sbr.rel (%p287) target = $region52
    $region51: #{tpu_custom_call.1} parent=5 // pred_region
      %s291 = ssub.s32 %s14, 1
      %p292 = scmp.lt.s32.totalorder %s23, 1
      %s293 = scalar_select %p292, %s23, 1
      %s294 = smul.addr %s293, 60
      %s295 = smul.addr %s294, 4
      %s296 = scalar_lea.vmem %s0, %s295
      %p297 = pneg %p52
      %p298 = pneg %p49
      %p299 = scmp.lt.s32.totalorder %s24, 1
      %s300 = scalar_select %p299, %s24, 1
      %s301 = smul.addr %s300, 30
      %s302 = smul.addr %s301, 8
      %s303 = scalar_lea.vmem %s1, %s302
      %p304 = pneg %p78
      %p305 = pneg %p75
      %p306 = pneg %p99
      %p307 = pneg %p96
      %p308 = pneg %p120
      %p309 = pneg %p117
      %p310 = pneg %p141
      %p311 = pneg %p138
      %p312 = pneg %p162
      %p313 = pneg %p159
      %p314 = pneg %p183
      %p315 = pneg %p180
      %p316 = pneg %p204
      %p317 = pneg %p201
      %p318 = pneg %p232
      %p319 = pneg %p229
      %s320 = smul.u32 24, %s24
      %p321 = scmp.lt.s32.totalorder %s23, 1
      %s322 = scalar_select %p321, %s23, 1
      %p323 = scmp.lt.s32.totalorder %s320, 47
      %s324 = scalar_select %p323, %s320, 47
      %s325 = smul.addr %s322, 48
      %s326 = sadd.s32 %s324, %s325
      %s327 = smul.addr %s326, 4
      %s328 = scalar_lea.vmem %s8, %s327
      %p329 = scmp.lt.s32.totalorder %s23, 1
      %s330 = scalar_select %p329, %s23, 1
      %s331 = smul.addr %s330, 60
      %s332 = smul.addr %s331, 4
      %s333 = scalar_lea.vmem %s0, %s332
      %p334 = scmp.lt.s32.totalorder %s24, 1
      %s335 = scalar_select %p334, %s24, 1
      %s336 = smul.addr %s335, 30
      %s337 = smul.addr %s336, 8
      %s338 = scalar_lea.vmem %s1, %s337
      %s339 = smul.u32 24, %s24
      %p340 = scmp.lt.s32.totalorder %s23, 1
      %s341 = scalar_select %p340, %s23, 1
      %p342 = scmp.lt.s32.totalorder %s339, 47
      %s343 = scalar_select %p342, %s339, 47
      %s344 = smul.addr %s341, 48
      %s345 = sadd.s32 %s343, %s344
      %s346 = smul.addr %s345, 4
      %s347 = scalar_lea.vmem %s8, %s346
      %s348 = smul.u32 24, %s24
      %s350 = smul.u32 %s24, 192
      %s351 = sshra.s32 %s350, 3
      %s352 = sand.u32 %s350, 7
      %s353 = smul.addr %s351, 4
      %s354 = scalar_lea.vmem %s333, %s353
      %v355 = vld [vmem:[%s354] sm:$0xf]
      %v356 = vld [vmem:[%s354 + $0x4] sm:$0xf]
      %v357 = vld [vmem:[%s354 + $0x8] sm:$0xf]
      %v358 = vld [vmem:[%s354 + $0xc] sm:$0xf]
      %v359 = vld [vmem:[%s354 + $0x10] sm:$0xf]
      %v360 = vld [vmem:[%s354 + $0x14] sm:$0xf]
      %v361 = vld [vmem:[%s354 + $0x18] sm:$0xf]
      %v362 = vld [vmem:[%s354 + $0x1c] sm:$0xf]
      %v363 = vld [vmem:[%s354 + $0x20] sm:$0xf]
      %v364 = vld [vmem:[%s354 + $0x24] sm:$0xf]
      %v365 = vld [vmem:[%s354 + $0x28] sm:$0xf]
      %v366 = vld [vmem:[%s354 + $0x2c] sm:$0xf]
      %v367 = vld [vmem:[%s354 + $0x30] sm:$0xf]
      %v368 = vld [vmem:[%s354 + $0x34] sm:$0xf]
      %v369 = vld [vmem:[%s354 + $0x38] sm:$0xf]
      %v370 = vld [vmem:[%s354 + $0x3c] sm:$0xf]
      %v371 = vld [vmem:[%s354 + $0x40] sm:$0xf]
      %v372 = vld [vmem:[%s354 + $0x44] sm:$0xf]
      %v373 = vld [vmem:[%s354 + $0x48] sm:$0xf]
      %v374 = vld [vmem:[%s354 + $0x4c] sm:$0xf]
      %v375 = vld [vmem:[%s354 + $0x50] sm:$0xf]
      %v376 = vld [vmem:[%s354 + $0x54] sm:$0xf]
      %v377 = vld [vmem:[%s354 + $0x58] sm:$0xf]
      %v378 = vld [vmem:[%s354 + $0x5c] sm:$0xf]
      %v379 = vld [vmem:[%s354 + $0x60] sm:$0xf]
      %v380 = vld [vmem:[%s354 + $0x64] sm:$0xf]
      %v381 = vld [vmem:[%s354 + $0x68] sm:$0xf]
      %v382 = vld [vmem:[%s354 + $0x6c] sm:$0xf]
      %v383 = vld [vmem:[%s354 + $0x70] sm:$0xf]
      %v384 = vld [vmem:[%s354 + $0x74] sm:$0xf]
      %vm385 = vcmask 27648
      %386 = vst.msk [vmem:[#allocation2] sm:$0xf] %vm385, %v355
      %387 = vst.msk [vmem:[#allocation2 + $0x4] sm:$0xf] %vm385, %v356
      %388 = vst.msk [vmem:[#allocation2 + $0x8] sm:$0xf] %vm385, %v357
      %389 = vst.msk [vmem:[#allocation2 + $0xc] sm:$0xf] %vm385, %v358
      %390 = vst.msk [vmem:[#allocation2 + $0x10] sm:$0xf] %vm385, %v359
      %391 = vst.msk [vmem:[#allocation2 + $0x14] sm:$0xf] %vm385, %v360
      %392 = vst.msk [vmem:[#allocation2 + $0x18] sm:$0xf] %vm385, %v361
      %393 = vst.msk [vmem:[#allocation2 + $0x1c] sm:$0xf] %vm385, %v362
      %394 = vst.msk [vmem:[#allocation2 + $0x20] sm:$0xf] %vm385, %v363
      %395 = vst.msk [vmem:[#allocation2 + $0x24] sm:$0xf] %vm385, %v364
      %396 = vst.msk [vmem:[#allocation2 + $0x28] sm:$0xf] %vm385, %v365
      %397 = vst.msk [vmem:[#allocation2 + $0x2c] sm:$0xf] %vm385, %v366
      %398 = vst.msk [vmem:[#allocation2 + $0x30] sm:$0xf] %vm385, %v367
      %399 = vst.msk [vmem:[#allocation2 + $0x34] sm:$0xf] %vm385, %v368
      %400 = vst.msk [vmem:[#allocation2 + $0x38] sm:$0xf] %vm385, %v369
      %401 = vst.msk [vmem:[#allocation2 + $0x3c] sm:$0xf] %vm385, %v370
      %402 = vst.msk [vmem:[#allocation2 + $0x40] sm:$0xf] %vm385, %v371
      %403 = vst.msk [vmem:[#allocation2 + $0x44] sm:$0xf] %vm385, %v372
      %404 = vst.msk [vmem:[#allocation2 + $0x48] sm:$0xf] %vm385, %v373
      %405 = vst.msk [vmem:[#allocation2 + $0x4c] sm:$0xf] %vm385, %v374
      %406 = vst.msk [vmem:[#allocation2 + $0x50] sm:$0xf] %vm385, %v375
      %407 = vst.msk [vmem:[#allocation2 + $0x54] sm:$0xf] %vm385, %v376
      %408 = vst.msk [vmem:[#allocation2 + $0x58] sm:$0xf] %vm385, %v377
      %409 = vst.msk [vmem:[#allocation2 + $0x5c] sm:$0xf] %vm385, %v378
      %410 = vst.msk [vmem:[#allocation2 + $0x60] sm:$0xf] %vm385, %v379
      %411 = vst.msk [vmem:[#allocation2 + $0x64] sm:$0xf] %vm385, %v380
      %412 = vst.msk [vmem:[#allocation2 + $0x68] sm:$0xf] %vm385, %v381
      %413 = vst.msk [vmem:[#allocation2 + $0x6c] sm:$0xf] %vm385, %v382
      %414 = vst.msk [vmem:[#allocation2 + $0x70] sm:$0xf] %vm385, %v383
      %415 = vst.msk [vmem:[#allocation2 + $0x74] sm:$0xf] %vm385, %v384
      %s416 = sadd.s32 %s350, 24
      %s417 = sshra.s32 %s416, 3
      %s418 = sand.u32 %s416, 7
      %s419 = smul.addr %s417, 4
      %s420 = scalar_lea.vmem %s333, %s419
      %v421 = vld [vmem:[%s420] sm:$0xf]
      %v422 = vld [vmem:[%s420 + $0x4] sm:$0xf]
      %v423 = vld [vmem:[%s420 + $0x8] sm:$0xf]
      %v424 = vld [vmem:[%s420 + $0xc] sm:$0xf]
      %v425 = vld [vmem:[%s420 + $0x10] sm:$0xf]
      %v426 = vld [vmem:[%s420 + $0x14] sm:$0xf]
      %v427 = vld [vmem:[%s420 + $0x18] sm:$0xf]
      %v428 = vld [vmem:[%s420 + $0x1c] sm:$0xf]
      %v429 = vld [vmem:[%s420 + $0x20] sm:$0xf]
      %v430 = vld [vmem:[%s420 + $0x24] sm:$0xf]
      %v431 = vld [vmem:[%s420 + $0x28] sm:$0xf]
      %v432 = vld [vmem:[%s420 + $0x2c] sm:$0xf]
      %v433 = vld [vmem:[%s420 + $0x30] sm:$0xf]
      %v434 = vld [vmem:[%s420 + $0x34] sm:$0xf]
      %v435 = vld [vmem:[%s420 + $0x38] sm:$0xf]
      %v436 = vld [vmem:[%s420 + $0x3c] sm:$0xf]
      %v437 = vld [vmem:[%s420 + $0x40] sm:$0xf]
      %v438 = vld [vmem:[%s420 + $0x44] sm:$0xf]
      %v439 = vld [vmem:[%s420 + $0x48] sm:$0xf]
      %v440 = vld [vmem:[%s420 + $0x4c] sm:$0xf]
      %v441 = vld [vmem:[%s420 + $0x50] sm:$0xf]
      %v442 = vld [vmem:[%s420 + $0x54] sm:$0xf]
      %v443 = vld [vmem:[%s420 + $0x58] sm:$0xf]
      %v444 = vld [vmem:[%s420 + $0x5c] sm:$0xf]
      %v445 = vld [vmem:[%s420 + $0x60] sm:$0xf]
      %v446 = vld [vmem:[%s420 + $0x64] sm:$0xf]
      %v447 = vld [vmem:[%s420 + $0x68] sm:$0xf]
      %v448 = vld [vmem:[%s420 + $0x6c] sm:$0xf]
      %v449 = vld [vmem:[%s420 + $0x70] sm:$0xf]
      %v450 = vld [vmem:[%s420 + $0x74] sm:$0xf]
      %481 = vrot.lane.b32.xlu0 %v421, 4
      %v482 = vpop.permute.xlu0 %481
      %483 = vrot.lane.b32.xlu0 %v422, 4
      %v484 = vpop.permute.xlu0 %483
      %485 = vrot.lane.b32.xlu0 %v423, 4
      %v486 = vpop.permute.xlu0 %485
      %487 = vrot.lane.b32.xlu0 %v424, 4
      %v488 = vpop.permute.xlu0 %487
      %489 = vrot.lane.b32.xlu0 %v425, 4
      %v490 = vpop.permute.xlu0 %489
      %491 = vrot.lane.b32.xlu0 %v426, 4
      %v492 = vpop.permute.xlu0 %491
      %493 = vrot.lane.b32.xlu0 %v427, 4
      %v494 = vpop.permute.xlu0 %493
      %495 = vrot.lane.b32.xlu0 %v428, 4
      %v496 = vpop.permute.xlu0 %495
      %497 = vrot.lane.b32.xlu0 %v429, 4
      %v498 = vpop.permute.xlu0 %497
      %499 = vrot.lane.b32.xlu0 %v430, 4
      %v500 = vpop.permute.xlu0 %499
      %501 = vrot.lane.b32.xlu0 %v431, 4
      %v502 = vpop.permute.xlu0 %501
      %503 = vrot.lane.b32.xlu0 %v432, 4
      %v504 = vpop.permute.xlu0 %503
      %505 = vrot.lane.b32.xlu0 %v433, 4
      %v506 = vpop.permute.xlu0 %505
      %507 = vrot.lane.b32.xlu0 %v434, 4
      %v508 = vpop.permute.xlu0 %507
      %509 = vrot.lane.b32.xlu0 %v435, 4
      %v510 = vpop.permute.xlu0 %509
      %511 = vrot.lane.b32.xlu0 %v436, 4
      %v512 = vpop.permute.xlu0 %511
      %513 = vrot.lane.b32.xlu0 %v437, 4
      %v514 = vpop.permute.xlu0 %513
      %515 = vrot.lane.b32.xlu0 %v438, 4
      %v516 = vpop.permute.xlu0 %515
      %517 = vrot.lane.b32.xlu0 %v439, 4
      %v518 = vpop.permute.xlu0 %517
      %519 = vrot.lane.b32.xlu0 %v440, 4
      %v520 = vpop.permute.xlu0 %519
      %521 = vrot.lane.b32.xlu0 %v441, 4
      %v522 = vpop.permute.xlu0 %521
      %523 = vrot.lane.b32.xlu0 %v442, 4
      %v524 = vpop.permute.xlu0 %523
      %525 = vrot.lane.b32.xlu0 %v443, 4
      %v526 = vpop.permute.xlu0 %525
      %527 = vrot.lane.b32.xlu0 %v444, 4
      %v528 = vpop.permute.xlu0 %527
      %529 = vrot.lane.b32.xlu0 %v445, 4
      %v530 = vpop.permute.xlu0 %529
      %531 = vrot.lane.b32.xlu0 %v446, 4
      %v532 = vpop.permute.xlu0 %531
      %533 = vrot.lane.b32.xlu0 %v447, 4
      %v534 = vpop.permute.xlu0 %533
      %535 = vrot.lane.b32.xlu0 %v448, 4
      %v536 = vpop.permute.xlu0 %535
      %537 = vrot.lane.b32.xlu0 %v449, 4
      %v538 = vpop.permute.xlu0 %537
      %539 = vrot.lane.b32.xlu0 %v450, 4
      %v540 = vpop.permute.xlu0 %539
      %vm571 = vcmask 60448
      %572 = vst.msk [vmem:[#allocation2] sm:$0xf] %vm571, %v482
      %573 = vst.msk [vmem:[#allocation2 + $0x4] sm:$0xf] %vm571, %v484
      %574 = vst.msk [vmem:[#allocation2 + $0x8] sm:$0xf] %vm571, %v486
      %575 = vst.msk [vmem:[#allocation2 + $0xc] sm:$0xf] %vm571, %v488
      %576 = vst.msk [vmem:[#allocation2 + $0x10] sm:$0xf] %vm571, %v490
      %577 = vst.msk [vmem:[#allocation2 + $0x14] sm:$0xf] %vm571, %v492
      %578 = vst.msk [vmem:[#allocation2 + $0x18] sm:$0xf] %vm571, %v494
      %579 = vst.msk [vmem:[#allocation2 + $0x1c] sm:$0xf] %vm571, %v496
      %580 = vst.msk [vmem:[#allocation2 + $0x20] sm:$0xf] %vm571, %v498
      %581 = vst.msk [vmem:[#allocation2 + $0x24] sm:$0xf] %vm571, %v500
      %582 = vst.msk [vmem:[#allocation2 + $0x28] sm:$0xf] %vm571, %v502
      %583 = vst.msk [vmem:[#allocation2 + $0x2c] sm:$0xf] %vm571, %v504
      %584 = vst.msk [vmem:[#allocation2 + $0x30] sm:$0xf] %vm571, %v506
      %585 = vst.msk [vmem:[#allocation2 + $0x34] sm:$0xf] %vm571, %v508
      %586 = vst.msk [vmem:[#allocation2 + $0x38] sm:$0xf] %vm571, %v510
      %587 = vst.msk [vmem:[#allocation2 + $0x3c] sm:$0xf] %vm571, %v512
      %588 = vst.msk [vmem:[#allocation2 + $0x40] sm:$0xf] %vm571, %v514
      %589 = vst.msk [vmem:[#allocation2 + $0x44] sm:$0xf] %vm571, %v516
      %590 = vst.msk [vmem:[#allocation2 + $0x48] sm:$0xf] %vm571, %v518
      %591 = vst.msk [vmem:[#allocation2 + $0x4c] sm:$0xf] %vm571, %v520
      %592 = vst.msk [vmem:[#allocation2 + $0x50] sm:$0xf] %vm571, %v522
      %593 = vst.msk [vmem:[#allocation2 + $0x54] sm:$0xf] %vm571, %v524
      %594 = vst.msk [vmem:[#allocation2 + $0x58] sm:$0xf] %vm571, %v526
      %595 = vst.msk [vmem:[#allocation2 + $0x5c] sm:$0xf] %vm571, %v528
      %596 = vst.msk [vmem:[#allocation2 + $0x60] sm:$0xf] %vm571, %v530
      %597 = vst.msk [vmem:[#allocation2 + $0x64] sm:$0xf] %vm571, %v532
      %598 = vst.msk [vmem:[#allocation2 + $0x68] sm:$0xf] %vm571, %v534
      %599 = vst.msk [vmem:[#allocation2 + $0x6c] sm:$0xf] %vm571, %v536
      %600 = vst.msk [vmem:[#allocation2 + $0x70] sm:$0xf] %vm571, %v538
      %601 = vst.msk [vmem:[#allocation2 + $0x74] sm:$0xf] %vm571, %v540
      %s602 = sadd.s32 %s350, 48
      %s603 = sshra.s32 %s602, 3
      %s604 = sand.u32 %s602, 7
      %s605 = smul.addr %s603, 4
      %s606 = scalar_lea.vmem %s333, %s605
      %v607 = vld [vmem:[%s606] sm:$0xf]
      %v608 = vld [vmem:[%s606 + $0x4] sm:$0xf]
      %v609 = vld [vmem:[%s606 + $0x8] sm:$0xf]
      %v610 = vld [vmem:[%s606 + $0xc] sm:$0xf]
      %v611 = vld [vmem:[%s606 + $0x10] sm:$0xf]
      %v612 = vld [vmem:[%s606 + $0x14] sm:$0xf]
      %v613 = vld [vmem:[%s606 + $0x18] sm:$0xf]
      %v614 = vld [vmem:[%s606 + $0x1c] sm:$0xf]
      %v615 = vld [vmem:[%s606 + $0x20] sm:$0xf]
      %v616 = vld [vmem:[%s606 + $0x24] sm:$0xf]
      %v617 = vld [vmem:[%s606 + $0x28] sm:$0xf]
      %v618 = vld [vmem:[%s606 + $0x2c] sm:$0xf]
      %v619 = vld [vmem:[%s606 + $0x30] sm:$0xf]
      %v620 = vld [vmem:[%s606 + $0x34] sm:$0xf]
      %v621 = vld [vmem:[%s606 + $0x38] sm:$0xf]
      %v622 = vld [vmem:[%s606 + $0x3c] sm:$0xf]
      %v623 = vld [vmem:[%s606 + $0x40] sm:$0xf]
      %v624 = vld [vmem:[%s606 + $0x44] sm:$0xf]
      %v625 = vld [vmem:[%s606 + $0x48] sm:$0xf]
      %v626 = vld [vmem:[%s606 + $0x4c] sm:$0xf]
      %v627 = vld [vmem:[%s606 + $0x50] sm:$0xf]
      %v628 = vld [vmem:[%s606 + $0x54] sm:$0xf]
      %v629 = vld [vmem:[%s606 + $0x58] sm:$0xf]
      %v630 = vld [vmem:[%s606 + $0x5c] sm:$0xf]
      %v631 = vld [vmem:[%s606 + $0x60] sm:$0xf]
      %v632 = vld [vmem:[%s606 + $0x64] sm:$0xf]
      %v633 = vld [vmem:[%s606 + $0x68] sm:$0xf]
      %v634 = vld [vmem:[%s606 + $0x6c] sm:$0xf]
      %v635 = vld [vmem:[%s606 + $0x70] sm:$0xf]
      %v636 = vld [vmem:[%s606 + $0x74] sm:$0xf]
      %667 = vrot.lane.b32.xlu0 %v607, 8
      %v668 = vpop.permute.xlu0 %667
      %669 = vrot.lane.b32.xlu0 %v608, 8
      %v670 = vpop.permute.xlu0 %669
      %671 = vrot.lane.b32.xlu0 %v609, 8
      %v672 = vpop.permute.xlu0 %671
      %673 = vrot.lane.b32.xlu0 %v610, 8
      %v674 = vpop.permute.xlu0 %673
      %675 = vrot.lane.b32.xlu0 %v611, 8
      %v676 = vpop.permute.xlu0 %675
      %677 = vrot.lane.b32.xlu0 %v612, 8
      %v678 = vpop.permute.xlu0 %677
      %679 = vrot.lane.b32.xlu0 %v613, 8
      %v680 = vpop.permute.xlu0 %679
      %681 = vrot.lane.b32.xlu0 %v614, 8
      %v682 = vpop.permute.xlu0 %681
      %683 = vrot.lane.b32.xlu0 %v615, 8
      %v684 = vpop.permute.xlu0 %683
      %685 = vrot.lane.b32.xlu0 %v616, 8
      %v686 = vpop.permute.xlu0 %685
      %687 = vrot.lane.b32.xlu0 %v617, 8
      %v688 = vpop.permute.xlu0 %687
      %689 = vrot.lane.b32.xlu0 %v618, 8
      %v690 = vpop.permute.xlu0 %689
      %691 = vrot.lane.b32.xlu0 %v619, 8
      %v692 = vpop.permute.xlu0 %691
      %693 = vrot.lane.b32.xlu0 %v620, 8
      %v694 = vpop.permute.xlu0 %693
      %695 = vrot.lane.b32.xlu0 %v621, 8
      %v696 = vpop.permute.xlu0 %695
      %697 = vrot.lane.b32.xlu0 %v622, 8
      %v698 = vpop.permute.xlu0 %697
      %699 = vrot.lane.b32.xlu0 %v623, 8
      %v700 = vpop.permute.xlu0 %699
      %701 = vrot.lane.b32.xlu0 %v624, 8
      %v702 = vpop.permute.xlu0 %701
      %703 = vrot.lane.b32.xlu0 %v625, 8
      %v704 = vpop.permute.xlu0 %703
      %705 = vrot.lane.b32.xlu0 %v626, 8
      %v706 = vpop.permute.xlu0 %705
      %707 = vrot.lane.b32.xlu0 %v627, 8
      %v708 = vpop.permute.xlu0 %707
      %709 = vrot.lane.b32.xlu0 %v628, 8
      %v710 = vpop.permute.xlu0 %709
      %711 = vrot.lane.b32.xlu0 %v629, 8
      %v712 = vpop.permute.xlu0 %711
      %713 = vrot.lane.b32.xlu0 %v630, 8
      %v714 = vpop.permute.xlu0 %713
      %715 = vrot.lane.b32.xlu0 %v631, 8
      %v716 = vpop.permute.xlu0 %715
      %717 = vrot.lane.b32.xlu0 %v632, 8
      %v718 = vpop.permute.xlu0 %717
      %719 = vrot.lane.b32.xlu0 %v633, 8
      %v720 = vpop.permute.xlu0 %719
      %721 = vrot.lane.b32.xlu0 %v634, 8
      %v722 = vpop.permute.xlu0 %721
      %723 = vrot.lane.b32.xlu0 %v635, 8
      %v724 = vpop.permute.xlu0 %723
      %725 = vrot.lane.b32.xlu0 %v636, 8
      %v726 = vpop.permute.xlu0 %725
      %vm757 = vcmask 93248
      %758 = vst.msk [vmem:[#allocation2] sm:$0xf] %vm757, %v668
      %759 = vst.msk [vmem:[#allocation2 + $0x4] sm:$0xf] %vm757, %v670
      %760 = vst.msk [vmem:[#allocation2 + $0x8] sm:$0xf] %vm757, %v672
      %761 = vst.msk [vmem:[#allocation2 + $0xc] sm:$0xf] %vm757, %v674
      %762 = vst.msk [vmem:[#allocation2 + $0x10] sm:$0xf] %vm757, %v676
      %763 = vst.msk [vmem:[#allocation2 + $0x14] sm:$0xf] %vm757, %v678
      %764 = vst.msk [vmem:[#allocation2 + $0x18] sm:$0xf] %vm757, %v680
      %765 = vst.msk [vmem:[#allocation2 + $0x1c] sm:$0xf] %vm757, %v682
      %766 = vst.msk [vmem:[#allocation2 + $0x20] sm:$0xf] %vm757, %v684
      %767 = vst.msk [vmem:[#allocation2 + $0x24] sm:$0xf] %vm757, %v686
      %768 = vst.msk [vmem:[#allocation2 + $0x28] sm:$0xf] %vm757, %v688
      %769 = vst.msk [vmem:[#allocation2 + $0x2c] sm:$0xf] %vm757, %v690
      %770 = vst.msk [vmem:[#allocation2 + $0x30] sm:$0xf] %vm757, %v692
      %771 = vst.msk [vmem:[#allocation2 + $0x34] sm:$0xf] %vm757, %v694
      %772 = vst.msk [vmem:[#allocation2 + $0x38] sm:$0xf] %vm757, %v696
      %773 = vst.msk [vmem:[#allocation2 + $0x3c] sm:$0xf] %vm757, %v698
      %774 = vst.msk [vmem:[#allocation2 + $0x40] sm:$0xf] %vm757, %v700
      %775 = vst.msk [vmem:[#allocation2 + $0x44] sm:$0xf] %vm757, %v702
      %776 = vst.msk [vmem:[#allocation2 + $0x48] sm:$0xf] %vm757, %v704
      %777 = vst.msk [vmem:[#allocation2 + $0x4c] sm:$0xf] %vm757, %v706
      %778 = vst.msk [vmem:[#allocation2 + $0x50] sm:$0xf] %vm757, %v708
      %779 = vst.msk [vmem:[#allocation2 + $0x54] sm:$0xf] %vm757, %v710
      %780 = vst.msk [vmem:[#allocation2 + $0x58] sm:$0xf] %vm757, %v712
      %781 = vst.msk [vmem:[#allocation2 + $0x5c] sm:$0xf] %vm757, %v714
      %782 = vst.msk [vmem:[#allocation2 + $0x60] sm:$0xf] %vm757, %v716
      %783 = vst.msk [vmem:[#allocation2 + $0x64] sm:$0xf] %vm757, %v718
      %784 = vst.msk [vmem:[#allocation2 + $0x68] sm:$0xf] %vm757, %v720
      %785 = vst.msk [vmem:[#allocation2 + $0x6c] sm:$0xf] %vm757, %v722
      %786 = vst.msk [vmem:[#allocation2 + $0x70] sm:$0xf] %vm757, %v724
      %787 = vst.msk [vmem:[#allocation2 + $0x74] sm:$0xf] %vm757, %v726
      %v788 = vld [vmem:[#allocation2] sm:$0xf]
      %v789 = vld [vmem:[#allocation2 + $0x4] sm:$0xf]
      %v790 = vld [vmem:[#allocation2 + $0x8] sm:$0xf]
      %v791 = vld [vmem:[#allocation2 + $0xc] sm:$0xf]
      %v792 = vld [vmem:[#allocation2 + $0x10] sm:$0xf]
      %v793 = vld [vmem:[#allocation2 + $0x14] sm:$0xf]
      %v794 = vld [vmem:[#allocation2 + $0x18] sm:$0xf]
      %v795 = vld [vmem:[#allocation2 + $0x1c] sm:$0xf]
      %v796 = vld [vmem:[#allocation2 + $0x20] sm:$0xf]
      %v797 = vld [vmem:[#allocation2 + $0x24] sm:$0xf]
      %v798 = vld [vmem:[#allocation2 + $0x28] sm:$0xf]
      %v799 = vld [vmem:[#allocation2 + $0x2c] sm:$0xf]
      %v800 = vld [vmem:[#allocation2 + $0x30] sm:$0xf]
      %v801 = vld [vmem:[#allocation2 + $0x34] sm:$0xf]
      %v802 = vld [vmem:[#allocation2 + $0x38] sm:$0xf]
      %v803 = vld [vmem:[#allocation2 + $0x3c] sm:$0xf]
      %v804 = vld [vmem:[#allocation2 + $0x40] sm:$0xf]
      %v805 = vld [vmem:[#allocation2 + $0x44] sm:$0xf]
      %v806 = vld [vmem:[#allocation2 + $0x48] sm:$0xf]
      %v807 = vld [vmem:[#allocation2 + $0x4c] sm:$0xf]
      %v808 = vld [vmem:[#allocation2 + $0x50] sm:$0xf]
      %v809 = vld [vmem:[#allocation2 + $0x54] sm:$0xf]
      %v810 = vld [vmem:[#allocation2 + $0x58] sm:$0xf]
      %v811 = vld [vmem:[#allocation2 + $0x5c] sm:$0xf]
      %v812 = vld [vmem:[#allocation2 + $0x60] sm:$0xf]
      %v813 = vld [vmem:[#allocation2 + $0x64] sm:$0xf]
      %v814 = vld [vmem:[#allocation2 + $0x68] sm:$0xf]
      %v815 = vld [vmem:[#allocation2 + $0x6c] sm:$0xf]
      %v816 = vld [vmem:[#allocation2 + $0x70] sm:$0xf]
      %v817 = vld [vmem:[#allocation2 + $0x74] sm:$0xf]
      %v818 = vld [vmem:[%s2] sm:$0xf]
      %v819 = vld [vmem:[%s2 + $0x4] sm:$0x3]
      %v850 = vunpack.c.l.b16 %v788
      %v851 = vunpack.c.l.b16 %v789
      %v852 = vunpack.c.l.b16 %v790
      %v853 = vunpack.c.l.b16 %v791
      %v854 = vunpack.c.l.b16 %v792
      %v855 = vunpack.c.l.b16 %v793
      %v856 = vunpack.c.l.b16 %v794
      %v857 = vunpack.c.l.b16 %v795
      %v858 = vunpack.c.l.b16 %v796
      %v859 = vunpack.c.l.b16 %v797
      %v860 = vunpack.c.l.b16 %v798
      %v861 = vunpack.c.l.b16 %v799
      %v862 = vunpack.c.l.b16 %v800
      %v863 = vunpack.c.l.b16 %v801
      %v864 = vunpack.c.l.b16 %v802
      %v865 = vunpack.c.l.b16 %v803
      %v866 = vunpack.c.l.b16 %v804
      %v867 = vunpack.c.l.b16 %v805
      %v868 = vunpack.c.l.b16 %v806
      %v869 = vunpack.c.l.b16 %v807
      %v870 = vunpack.c.l.b16 %v808
      %v871 = vunpack.c.l.b16 %v809
      %v872 = vunpack.c.l.b16 %v810
      %v873 = vunpack.c.l.b16 %v811
      %v874 = vunpack.c.l.b16 %v812
      %v875 = vunpack.c.l.b16 %v813
      %v876 = vunpack.c.l.b16 %v814
      %v877 = vunpack.c.l.b16 %v815
      %v878 = vunpack.c.l.b16 %v816
      %v879 = vunpack.c.l.b16 %v817
      %v880 = vpack.c.b16 %v851, %v850
      %v881 = vpack.c.b16 %v853, %v852
      %v882 = vpack.c.b16 %v855, %v854
      %v883 = vpack.c.b16 %v857, %v856
      %v884 = vpack.c.b16 %v859, %v858
      %v885 = vpack.c.b16 %v861, %v860
      %v886 = vpack.c.b16 %v863, %v862
      %v887 = vpack.c.b16 %v865, %v864
      %v888 = vpack.c.b16 %v867, %v866
      %v889 = vpack.c.b16 %v869, %v868
      %v890 = vpack.c.b16 %v871, %v870
      %v891 = vpack.c.b16 %v873, %v872
      %v892 = vpack.c.b16 %v875, %v874
      %v893 = vpack.c.b16 %v877, %v876
      %v894 = vpack.c.b16 %v879, %v878
      %v897 = vunpack.c.l.b16 %v818
      %v898 = vunpack.c.l.b16 %v819
      %v899 = vpack.c.b16 %v898, %v897
      %vm900 = vcmask 97280
      %v902 = vsel %vm900, %v880, 0
      %v905 = vsel %vm900, %v881, 0
      %v908 = vsel %vm900, %v882, 0
      %v911 = vsel %vm900, %v883, 0
      %v914 = vsel %vm900, %v884, 0
      %v917 = vsel %vm900, %v885, 0
      %v920 = vsel %vm900, %v886, 0
      %v923 = vsel %vm900, %v887, 0
      %v926 = vsel %vm900, %v888, 0
      %v929 = vsel %vm900, %v889, 0
      %v932 = vsel %vm900, %v890, 0
      %v935 = vsel %vm900, %v891, 0
      %v938 = vsel %vm900, %v892, 0
      %v941 = vsel %vm900, %v893, 0
      %v944 = vsel %vm900, %v894, 0
      %vm946 = vcmask 1045504
      %v948 = vsel %vm946, %v899, 0
      %950 = vmatpush.bf16.msra.mxu0 0
      %951 = vmatpush.bf16.msra.mxu0 0
      %952 = vmatpush.bf16.msra.mxu0 0
      %953 = vmatpush.bf16.msra.mxu0 0
      %954 = vmatpush.bf16.msra.mxu0 0
      %955 = vmatpush.bf16.msra.mxu0 0
      %956 = vmatpush.bf16.msra.mxu0 0
      %957 = vmatpush.bf16.msra.mxu0 %v948
      %958 = vmatmul.bf16.gmra.mxu0 %v902
      %v959 = vpop.f32.mrf.mxu0
      %v960 = vadd.f32 0.0, %v959
      %v961 = vpop.f32.mrf.mxu0
      %v962 = vadd.f32 0.0, %v961
      %963 = vmatmul.bf16.gmra.mxu0 %v905
      %v964 = vpop.f32.mrf.mxu0
      %v965 = vadd.f32 0.0, %v964
      %v966 = vpop.f32.mrf.mxu0
      %v967 = vadd.f32 0.0, %v966
      %968 = vmatmul.bf16.gmra.mxu0 %v908
      %v969 = vpop.f32.mrf.mxu0
      %v970 = vadd.f32 0.0, %v969
      %v971 = vpop.f32.mrf.mxu0
      %v972 = vadd.f32 0.0, %v971
      %973 = vmatmul.bf16.gmra.mxu0 %v911
      %v974 = vpop.f32.mrf.mxu0
      %v975 = vadd.f32 0.0, %v974
      %v976 = vpop.f32.mrf.mxu0
      %v977 = vadd.f32 0.0, %v976
      %978 = vmatmul.bf16.gmra.mxu0 %v914
      %v979 = vpop.f32.mrf.mxu0
      %v980 = vadd.f32 0.0, %v979
      %v981 = vpop.f32.mrf.mxu0
      %v982 = vadd.f32 0.0, %v981
      %983 = vmatmul.bf16.gmra.mxu0 %v917
      %v984 = vpop.f32.mrf.mxu0
      %v985 = vadd.f32 0.0, %v984
      %v986 = vpop.f32.mrf.mxu0
      %v987 = vadd.f32 0.0, %v986
      %988 = vmatmul.bf16.gmra.mxu0 %v920
      %v989 = vpop.f32.mrf.mxu0
      %v990 = vadd.f32 0.0, %v989
      %v991 = vpop.f32.mrf.mxu0
      %v992 = vadd.f32 0.0, %v991
      %993 = vmatmul.bf16.gmra.mxu0 %v923
      %v994 = vpop.f32.mrf.mxu0
      %v995 = vadd.f32 0.0, %v994
      %v996 = vpop.f32.mrf.mxu0
      %v997 = vadd.f32 0.0, %v996
      %998 = vmatmul.bf16.gmra.mxu0 %v926
      %v999 = vpop.f32.mrf.mxu0
      %v1000 = vadd.f32 0.0, %v999
      %v1001 = vpop.f32.mrf.mxu0
      %v1002 = vadd.f32 0.0, %v1001
      %1003 = vmatmul.bf16.gmra.mxu0 %v929
      %v1004 = vpop.f32.mrf.mxu0
      %v1005 = vadd.f32 0.0, %v1004
      %v1006 = vpop.f32.mrf.mxu0
      %v1007 = vadd.f32 0.0, %v1006
      %1008 = vmatmul.bf16.gmra.mxu0 %v932
      %v1009 = vpop.f32.mrf.mxu0
      %v1010 = vadd.f32 0.0, %v1009
      %v1011 = vpop.f32.mrf.mxu0
      %v1012 = vadd.f32 0.0, %v1011
      %1013 = vmatmul.bf16.gmra.mxu0 %v935
      %v1014 = vpop.f32.mrf.mxu0
      %v1015 = vadd.f32 0.0, %v1014
      %v1016 = vpop.f32.mrf.mxu0
      %v1017 = vadd.f32 0.0, %v1016
      %1018 = vmatmul.bf16.gmra.mxu0 %v938
      %v1019 = vpop.f32.mrf.mxu0
      %v1020 = vadd.f32 0.0, %v1019
      %v1021 = vpop.f32.mrf.mxu0
      %v1022 = vadd.f32 0.0, %v1021
      %1023 = vmatmul.bf16.gmra.mxu0 %v941
      %v1024 = vpop.f32.mrf.mxu0
      %v1025 = vadd.f32 0.0, %v1024
      %v1026 = vpop.f32.mrf.mxu0
      %v1027 = vadd.f32 0.0, %v1026
      %1028 = vmatmul.bf16.gmra.mxu0 %v944
      %v1029 = vpop.f32.mrf.mxu0
      %v1030 = vadd.f32 0.0, %v1029
      %v1031 = vpop.f32.mrf.mxu0
      %v1032 = vadd.f32 0.0, %v1031
      %1033 = vdwg.mxu0
      %v1034 = vrot.slane %v960, 7
      %v1035 = vrot.slane %v962, 7
      %v1036 = vrot.slane %v965, 7
      %v1037 = vrot.slane %v967, 7
      %v1038 = vrot.slane %v970, 7
      %v1039 = vrot.slane %v972, 7
      %v1040 = vrot.slane %v975, 7
      %v1041 = vrot.slane %v977, 7
      %v1042 = vrot.slane %v980, 7
      %v1043 = vrot.slane %v982, 7
      %v1044 = vrot.slane %v985, 7
      %v1045 = vrot.slane %v987, 7
      %v1046 = vrot.slane %v990, 7
      %v1047 = vrot.slane %v992, 7
      %v1048 = vrot.slane %v995, 7
      %v1049 = vrot.slane %v997, 7
      %v1050 = vrot.slane %v1000, 7
      %v1051 = vrot.slane %v1002, 7
      %v1052 = vrot.slane %v1005, 7
      %v1053 = vrot.slane %v1007, 7
      %v1054 = vrot.slane %v1010, 7
      %v1055 = vrot.slane %v1012, 7
      %v1056 = vrot.slane %v1015, 7
      %v1057 = vrot.slane %v1017, 7
      %v1058 = vrot.slane %v1020, 7
      %v1059 = vrot.slane %v1022, 7
      %v1060 = vrot.slane %v1025, 7
      %v1061 = vrot.slane %v1027, 7
      %v1062 = vrot.slane %v1030, 7
      %v1063 = vrot.slane %v1032, 7
      %v1064 = vlaneseq
      %v1065 = vshrl.u32 %v1064, 7
      %vm1066 = vcmp.lt.s32.totalorder %v1065, 1
      %v1067 = vsel %vm1066, %v1062, %v1063
      %v1068 = vsel %vm1066, %v1061, %v1062
      %v1069 = vsel %vm1066, %v1060, %v1061
      %v1070 = vsel %vm1066, %v1059, %v1060
      %v1071 = vsel %vm1066, %v1058, %v1059
      %v1072 = vsel %vm1066, %v1057, %v1058
      %v1073 = vsel %vm1066, %v1056, %v1057
      %v1074 = vsel %vm1066, %v1055, %v1056
      %v1075 = vsel %vm1066, %v1054, %v1055
      %v1076 = vsel %vm1066, %v1053, %v1054
      %v1077 = vsel %vm1066, %v1052, %v1053
      %v1078 = vsel %vm1066, %v1051, %v1052
      %v1079 = vsel %vm1066, %v1050, %v1051
      %v1080 = vsel %vm1066, %v1049, %v1050
      %v1081 = vsel %vm1066, %v1048, %v1049
      %v1082 = vsel %vm1066, %v1047, %v1048
      %v1083 = vsel %vm1066, %v1046, %v1047
      %v1084 = vsel %vm1066, %v1045, %v1046
      %v1085 = vsel %vm1066, %v1044, %v1045
      %v1086 = vsel %vm1066, %v1043, %v1044
      %v1087 = vsel %vm1066, %v1042, %v1043
      %v1088 = vsel %vm1066, %v1041, %v1042
      %v1089 = vsel %vm1066, %v1040, %v1041
      %v1090 = vsel %vm1066, %v1039, %v1040
      %v1091 = vsel %vm1066, %v1038, %v1039
      %v1092 = vsel %vm1066, %v1037, %v1038
      %v1093 = vsel %vm1066, %v1036, %v1037
      %v1094 = vsel %vm1066, %v1035, %v1036
      %v1095 = vsel %vm1066, %v1034, %v1035
      %v1096 = vsel %vm1066, %v1063, %v1034
      %1127 = vrot.lane.b32.xlu0 %v960, 124
      %v1128 = vpop.permute.xlu0 %1127
      %1129 = vrot.lane.b32.xlu0 %v962, 124
      %v1130 = vpop.permute.xlu0 %1129
      %1131 = vrot.lane.b32.xlu0 %v965, 124
      %v1132 = vpop.permute.xlu0 %1131
      %1133 = vrot.lane.b32.xlu0 %v967, 124
      %v1134 = vpop.permute.xlu0 %1133
      %1135 = vrot.lane.b32.xlu0 %v970, 124
      %v1136 = vpop.permute.xlu0 %1135
      %1137 = vrot.lane.b32.xlu0 %v972, 124
      %v1138 = vpop.permute.xlu0 %1137
      %1139 = vrot.lane.b32.xlu0 %v975, 124
      %v1140 = vpop.permute.xlu0 %1139
      %1141 = vrot.lane.b32.xlu0 %v977, 124
      %v1142 = vpop.permute.xlu0 %1141
      %1143 = vrot.lane.b32.xlu0 %v980, 124
      %v1144 = vpop.permute.xlu0 %1143
      %1145 = vrot.lane.b32.xlu0 %v982, 124
      %v1146 = vpop.permute.xlu0 %1145
      %1147 = vrot.lane.b32.xlu0 %v985, 124
      %v1148 = vpop.permute.xlu0 %1147
      %1149 = vrot.lane.b32.xlu0 %v987, 124
      %v1150 = vpop.permute.xlu0 %1149
      %1151 = vrot.lane.b32.xlu0 %v990, 124
      %v1152 = vpop.permute.xlu0 %1151
      %1153 = vrot.lane.b32.xlu0 %v992, 124
      %v1154 = vpop.permute.xlu0 %1153
      %1155 = vrot.lane.b32.xlu0 %v995, 124
      %v1156 = vpop.permute.xlu0 %1155
      %1157 = vrot.lane.b32.xlu0 %v997, 124
      %v1158 = vpop.permute.xlu0 %1157
      %1159 = vrot.lane.b32.xlu0 %v1000, 124
      %v1160 = vpop.permute.xlu0 %1159
      %1161 = vrot.lane.b32.xlu0 %v1002, 124
      %v1162 = vpop.permute.xlu0 %1161
      %1163 = vrot.lane.b32.xlu0 %v1005, 124
      %v1164 = vpop.permute.xlu0 %1163
      %1165 = vrot.lane.b32.xlu0 %v1007, 124
      %v1166 = vpop.permute.xlu0 %1165
      %1167 = vrot.lane.b32.xlu0 %v1010, 124
      %v1168 = vpop.permute.xlu0 %1167
      %1169 = vrot.lane.b32.xlu0 %v1012, 124
      %v1170 = vpop.permute.xlu0 %1169
      %1171 = vrot.lane.b32.xlu0 %v1015, 124
      %v1172 = vpop.permute.xlu0 %1171
      %1173 = vrot.lane.b32.xlu0 %v1017, 124
      %v1174 = vpop.permute.xlu0 %1173
      %1175 = vrot.lane.b32.xlu0 %v1020, 124
      %v1176 = vpop.permute.xlu0 %1175
      %1177 = vrot.lane.b32.xlu0 %v1022, 124
      %v1178 = vpop.permute.xlu0 %1177
      %1179 = vrot.lane.b32.xlu0 %v1025, 124
      %v1180 = vpop.permute.xlu0 %1179
      %1181 = vrot.lane.b32.xlu0 %v1027, 124
      %v1182 = vpop.permute.xlu0 %1181
      %1183 = vrot.lane.b32.xlu0 %v1030, 124
      %v1184 = vpop.permute.xlu0 %1183
      %1185 = vrot.lane.b32.xlu0 %v1032, 124
      %v1186 = vpop.permute.xlu0 %1185
      %v1217 = vadd.f32 %v1096, %v1128
      %v1218 = vadd.f32 %v1095, %v1130
      %v1219 = vadd.f32 %v1094, %v1132
      %v1220 = vadd.f32 %v1093, %v1134
      %v1221 = vadd.f32 %v1092, %v1136
      %v1222 = vadd.f32 %v1091, %v1138
      %v1223 = vadd.f32 %v1090, %v1140
      %v1224 = vadd.f32 %v1089, %v1142
      %v1225 = vadd.f32 %v1088, %v1144
      %v1226 = vadd.f32 %v1087, %v1146
      %v1227 = vadd.f32 %v1086, %v1148
      %v1228 = vadd.f32 %v1085, %v1150
      %v1229 = vadd.f32 %v1084, %v1152
      %v1230 = vadd.f32 %v1083, %v1154
      %v1231 = vadd.f32 %v1082, %v1156
      %v1232 = vadd.f32 %v1081, %v1158
      %v1233 = vadd.f32 %v1080, %v1160
      %v1234 = vadd.f32 %v1079, %v1162
      %v1235 = vadd.f32 %v1078, %v1164
      %v1236 = vadd.f32 %v1077, %v1166
      %v1237 = vadd.f32 %v1076, %v1168
      %v1238 = vadd.f32 %v1075, %v1170
      %v1239 = vadd.f32 %v1074, %v1172
      %v1240 = vadd.f32 %v1073, %v1174
      %v1241 = vadd.f32 %v1072, %v1176
      %v1242 = vadd.f32 %v1071, %v1178
      %v1243 = vadd.f32 %v1070, %v1180
      %v1244 = vadd.f32 %v1069, %v1182
      %v1245 = vadd.f32 %v1068, %v1184
      %v1246 = vadd.f32 %v1067, %v1186
      %1247 = vrot.lane.b32.xlu0 %v960, 120
      %v1248 = vpop.permute.xlu0 %1247
      %1249 = vrot.lane.b32.xlu0 %v962, 120
      %v1250 = vpop.permute.xlu0 %1249
      %1251 = vrot.lane.b32.xlu0 %v965, 120
      %v1252 = vpop.permute.xlu0 %1251
      %1253 = vrot.lane.b32.xlu0 %v967, 120
      %v1254 = vpop.permute.xlu0 %1253
      %1255 = vrot.lane.b32.xlu0 %v970, 120
      %v1256 = vpop.permute.xlu0 %1255
      %1257 = vrot.lane.b32.xlu0 %v972, 120
      %v1258 = vpop.permute.xlu0 %1257
      %1259 = vrot.lane.b32.xlu0 %v975, 120
      %v1260 = vpop.permute.xlu0 %1259
      %1261 = vrot.lane.b32.xlu0 %v977, 120
      %v1262 = vpop.permute.xlu0 %1261
      %1263 = vrot.lane.b32.xlu0 %v980, 120
      %v1264 = vpop.permute.xlu0 %1263
      %1265 = vrot.lane.b32.xlu0 %v982, 120
      %v1266 = vpop.permute.xlu0 %1265
      %1267 = vrot.lane.b32.xlu0 %v985, 120
      %v1268 = vpop.permute.xlu0 %1267
      %1269 = vrot.lane.b32.xlu0 %v987, 120
      %v1270 = vpop.permute.xlu0 %1269
      %1271 = vrot.lane.b32.xlu0 %v990, 120
      %v1272 = vpop.permute.xlu0 %1271
      %1273 = vrot.lane.b32.xlu0 %v992, 120
      %v1274 = vpop.permute.xlu0 %1273
      %1275 = vrot.lane.b32.xlu0 %v995, 120
      %v1276 = vpop.permute.xlu0 %1275
      %1277 = vrot.lane.b32.xlu0 %v997, 120
      %v1278 = vpop.permute.xlu0 %1277
      %1279 = vrot.lane.b32.xlu0 %v1000, 120
      %v1280 = vpop.permute.xlu0 %1279
      %1281 = vrot.lane.b32.xlu0 %v1002, 120
      %v1282 = vpop.permute.xlu0 %1281
      %1283 = vrot.lane.b32.xlu0 %v1005, 120
      %v1284 = vpop.permute.xlu0 %1283
      %1285 = vrot.lane.b32.xlu0 %v1007, 120
      %v1286 = vpop.permute.xlu0 %1285
      %1287 = vrot.lane.b32.xlu0 %v1010, 120
      %v1288 = vpop.permute.xlu0 %1287
      %1289 = vrot.lane.b32.xlu0 %v1012, 120
      %v1290 = vpop.permute.xlu0 %1289
      %1291 = vrot.lane.b32.xlu0 %v1015, 120
      %v1292 = vpop.permute.xlu0 %1291
      %1293 = vrot.lane.b32.xlu0 %v1017, 120
      %v1294 = vpop.permute.xlu0 %1293
      %1295 = vrot.lane.b32.xlu0 %v1020, 120
      %v1296 = vpop.permute.xlu0 %1295
      %1297 = vrot.lane.b32.xlu0 %v1022, 120
      %v1298 = vpop.permute.xlu0 %1297
      %1299 = vrot.lane.b32.xlu0 %v1025, 120
      %v1300 = vpop.permute.xlu0 %1299
      %1301 = vrot.lane.b32.xlu0 %v1027, 120
      %v1302 = vpop.permute.xlu0 %1301
      %1303 = vrot.lane.b32.xlu0 %v1030, 120
      %v1304 = vpop.permute.xlu0 %1303
      %1305 = vrot.lane.b32.xlu0 %v1032, 120
      %v1306 = vpop.permute.xlu0 %1305
      %v1337 = vrot.slane %v1248, 1
      %v1338 = vrot.slane %v1250, 1
      %v1339 = vrot.slane %v1252, 1
      %v1340 = vrot.slane %v1254, 1
      %v1341 = vrot.slane %v1256, 1
      %v1342 = vrot.slane %v1258, 1
      %v1343 = vrot.slane %v1260, 1
      %v1344 = vrot.slane %v1262, 1
      %v1345 = vrot.slane %v1264, 1
      %v1346 = vrot.slane %v1266, 1
      %v1347 = vrot.slane %v1268, 1
      %v1348 = vrot.slane %v1270, 1
      %v1349 = vrot.slane %v1272, 1
      %v1350 = vrot.slane %v1274, 1
      %v1351 = vrot.slane %v1276, 1
      %v1352 = vrot.slane %v1278, 1
      %v1353 = vrot.slane %v1280, 1
      %v1354 = vrot.slane %v1282, 1
      %v1355 = vrot.slane %v1284, 1
      %v1356 = vrot.slane %v1286, 1
      %v1357 = vrot.slane %v1288, 1
      %v1358 = vrot.slane %v1290, 1
      %v1359 = vrot.slane %v1292, 1
      %v1360 = vrot.slane %v1294, 1
      %v1361 = vrot.slane %v1296, 1
      %v1362 = vrot.slane %v1298, 1
      %v1363 = vrot.slane %v1300, 1
      %v1364 = vrot.slane %v1302, 1
      %v1365 = vrot.slane %v1304, 1
      %v1366 = vrot.slane %v1306, 1
      %vm1367 = vcmp.lt.s32.totalorder %v1065, 7
      %v1368 = vsel %vm1367, %v1365, %v1366
      %v1369 = vsel %vm1367, %v1364, %v1365
      %v1370 = vsel %vm1367, %v1363, %v1364
      %v1371 = vsel %vm1367, %v1362, %v1363
      %v1372 = vsel %vm1367, %v1361, %v1362
      %v1373 = vsel %vm1367, %v1360, %v1361
      %v1374 = vsel %vm1367, %v1359, %v1360
      %v1375 = vsel %vm1367, %v1358, %v1359
      %v1376 = vsel %vm1367, %v1357, %v1358
      %v1377 = vsel %vm1367, %v1356, %v1357
      %v1378 = vsel %vm1367, %v1355, %v1356
      %v1379 = vsel %vm1367, %v1354, %v1355
      %v1380 = vsel %vm1367, %v1353, %v1354
      %v1381 = vsel %vm1367, %v1352, %v1353
      %v1382 = vsel %vm1367, %v1351, %v1352
      %v1383 = vsel %vm1367, %v1350, %v1351
      %v1384 = vsel %vm1367, %v1349, %v1350
      %v1385 = vsel %vm1367, %v1348, %v1349
      %v1386 = vsel %vm1367, %v1347, %v1348
      %v1387 = vsel %vm1367, %v1346, %v1347
      %v1388 = vsel %vm1367, %v1345, %v1346
      %v1389 = vsel %vm1367, %v1344, %v1345
      %v1390 = vsel %vm1367, %v1343, %v1344
      %v1391 = vsel %vm1367, %v1342, %v1343
      %v1392 = vsel %vm1367, %v1341, %v1342
      %v1393 = vsel %vm1367, %v1340, %v1341
      %v1394 = vsel %vm1367, %v1339, %v1340
      %v1395 = vsel %vm1367, %v1338, %v1339
      %v1396 = vsel %vm1367, %v1337, %v1338
      %v1397 = vsel %vm1367, %v1366, %v1337
      %v1398 = vadd.f32 %v1217, %v1396
      %v1399 = vadd.f32 %v1218, %v1395
      %v1400 = vadd.f32 %v1219, %v1394
      %v1401 = vadd.f32 %v1220, %v1393
      %v1402 = vadd.f32 %v1221, %v1392
      %v1403 = vadd.f32 %v1222, %v1391
      %v1404 = vadd.f32 %v1223, %v1390
      %v1405 = vadd.f32 %v1224, %v1389
      %v1406 = vadd.f32 %v1225, %v1388
      %v1407 = vadd.f32 %v1226, %v1387
      %v1408 = vadd.f32 %v1227, %v1386
      %v1409 = vadd.f32 %v1228, %v1385
      %v1410 = vadd.f32 %v1229, %v1384
      %v1411 = vadd.f32 %v1230, %v1383
      %v1412 = vadd.f32 %v1231, %v1382
      %v1413 = vadd.f32 %v1232, %v1381
      %v1414 = vadd.f32 %v1233, %v1380
      %v1415 = vadd.f32 %v1234, %v1379
      %v1416 = vadd.f32 %v1235, %v1378
      %v1417 = vadd.f32 %v1236, %v1377
      %v1418 = vadd.f32 %v1237, %v1376
      %v1419 = vadd.f32 %v1238, %v1375
      %v1420 = vadd.f32 %v1239, %v1374
      %v1421 = vadd.f32 %v1240, %v1373
      %v1422 = vadd.f32 %v1241, %v1372
      %v1423 = vadd.f32 %v1242, %v1371
      %v1424 = vadd.f32 %v1243, %v1370
      %v1425 = vadd.f32 %v1244, %v1369
      %v1426 = vadd.f32 %v1245, %v1368
      %v1427 = vadd.f32 %v1246, %v1397
      %v1428 = vld [vmem:[%s3] sm:$0x1]
      %v1430 = vperm.slane %v1428, 0
      %v1432 = vmul.f32 %v1398, %v1430
      %v1433 = vmul.f32 %v1399, %v1430
      %v1434 = vmul.f32 %v1400, %v1430
      %v1435 = vmul.f32 %v1401, %v1430
      %v1436 = vmul.f32 %v1402, %v1430
      %v1437 = vmul.f32 %v1403, %v1430
      %v1438 = vmul.f32 %v1404, %v1430
      %v1439 = vmul.f32 %v1405, %v1430
      %v1440 = vmul.f32 %v1406, %v1430
      %v1441 = vmul.f32 %v1407, %v1430
      %v1442 = vmul.f32 %v1408, %v1430
      %v1443 = vmul.f32 %v1409, %v1430
      %v1444 = vmul.f32 %v1410, %v1430
      %v1445 = vmul.f32 %v1411, %v1430
      %v1446 = vmul.f32 %v1412, %v1430
      %v1447 = vmul.f32 %v1413, %v1430
      %v1448 = vmul.f32 %v1414, %v1430
      %v1449 = vmul.f32 %v1415, %v1430
      %v1450 = vmul.f32 %v1416, %v1430
      %v1451 = vmul.f32 %v1417, %v1430
      %v1452 = vmul.f32 %v1418, %v1430
      %v1453 = vmul.f32 %v1419, %v1430
      %v1454 = vmul.f32 %v1420, %v1430
      %v1455 = vmul.f32 %v1421, %v1430
      %v1456 = vmul.f32 %v1422, %v1430
      %v1457 = vmul.f32 %v1423, %v1430
      %v1458 = vmul.f32 %v1424, %v1430
      %v1459 = vmul.f32 %v1425, %v1430
      %v1460 = vmul.f32 %v1426, %v1430
      %v1461 = vmul.f32 %v1427, %v1430
      %v1462 = vld [vmem:[%s4] sm:$0x1]
      %v1464 = vperm.slane %v1462, 0
      %v1466 = vadd.f32 %v1432, %v1464
      %v1467 = vadd.f32 %v1433, %v1464
      %v1468 = vadd.f32 %v1434, %v1464
      %v1469 = vadd.f32 %v1435, %v1464
      %v1470 = vadd.f32 %v1436, %v1464
      %v1471 = vadd.f32 %v1437, %v1464
      %v1472 = vadd.f32 %v1438, %v1464
      %v1473 = vadd.f32 %v1439, %v1464
      %v1474 = vadd.f32 %v1440, %v1464
      %v1475 = vadd.f32 %v1441, %v1464
      %v1476 = vadd.f32 %v1442, %v1464
      %v1477 = vadd.f32 %v1443, %v1464
      %v1478 = vadd.f32 %v1444, %v1464
      %v1479 = vadd.f32 %v1445, %v1464
      %v1480 = vadd.f32 %v1446, %v1464
      %v1481 = vadd.f32 %v1447, %v1464
      %v1482 = vadd.f32 %v1448, %v1464
      %v1483 = vadd.f32 %v1449, %v1464
      %v1484 = vadd.f32 %v1450, %v1464
      %v1485 = vadd.f32 %v1451, %v1464
      %v1486 = vadd.f32 %v1452, %v1464
      %v1487 = vadd.f32 %v1453, %v1464
      %v1488 = vadd.f32 %v1454, %v1464
      %v1489 = vadd.f32 %v1455, %v1464
      %v1490 = vadd.f32 %v1456, %v1464
      %v1491 = vadd.f32 %v1457, %v1464
      %v1492 = vadd.f32 %v1458, %v1464
      %v1493 = vadd.f32 %v1459, %v1464
      %v1494 = vadd.f32 %v1460, %v1464
      %v1495 = vadd.f32 %v1461, %v1464
      %v1496 = vmax.f32 %v1466, 0.0
      %v1497 = vmax.f32 %v1467, 0.0
      %v1498 = vmax.f32 %v1468, 0.0
      %v1499 = vmax.f32 %v1469, 0.0
      %v1500 = vmax.f32 %v1470, 0.0
      %v1501 = vmax.f32 %v1471, 0.0
      %v1502 = vmax.f32 %v1472, 0.0
      %v1503 = vmax.f32 %v1473, 0.0
      %v1504 = vmax.f32 %v1474, 0.0
      %v1505 = vmax.f32 %v1475, 0.0
      %v1506 = vmax.f32 %v1476, 0.0
      %v1507 = vmax.f32 %v1477, 0.0
      %v1508 = vmax.f32 %v1478, 0.0
      %v1509 = vmax.f32 %v1479, 0.0
      %v1510 = vmax.f32 %v1480, 0.0
      %v1511 = vmax.f32 %v1481, 0.0
      %v1512 = vmax.f32 %v1482, 0.0
      %v1513 = vmax.f32 %v1483, 0.0
      %v1514 = vmax.f32 %v1484, 0.0
      %v1515 = vmax.f32 %v1485, 0.0
      %v1516 = vmax.f32 %v1486, 0.0
      %v1517 = vmax.f32 %v1487, 0.0
      %v1518 = vmax.f32 %v1488, 0.0
      %v1519 = vmax.f32 %v1489, 0.0
      %v1520 = vmax.f32 %v1490, 0.0
      %v1521 = vmax.f32 %v1491, 0.0
      %v1522 = vmax.f32 %v1492, 0.0
      %v1523 = vmax.f32 %v1493, 0.0
      %v1524 = vmax.f32 %v1494, 0.0
      %v1525 = vmax.f32 %v1495, 0.0
      %v1526 = vld [vmem:[%s338] sm:$0xff]
      %v1527 = vld [vmem:[%s338 + $0x8] sm:$0xff]
      %v1528 = vld [vmem:[%s338 + $0x10] sm:$0xff]
      %v1529 = vld [vmem:[%s338 + $0x18] sm:$0xff]
      %v1530 = vld [vmem:[%s338 + $0x20] sm:$0xff]
      %v1531 = vld [vmem:[%s338 + $0x28] sm:$0xff]
      %v1532 = vld [vmem:[%s338 + $0x30] sm:$0xff]
      %v1533 = vld [vmem:[%s338 + $0x38] sm:$0xff]
      %v1534 = vld [vmem:[%s338 + $0x40] sm:$0xff]
      %v1535 = vld [vmem:[%s338 + $0x48] sm:$0xff]
      %v1536 = vld [vmem:[%s338 + $0x50] sm:$0xff]
      %v1537 = vld [vmem:[%s338 + $0x58] sm:$0xff]
      %v1538 = vld [vmem:[%s338 + $0x60] sm:$0xff]
      %v1539 = vld [vmem:[%s338 + $0x68] sm:$0xff]
      %v1540 = vld [vmem:[%s338 + $0x70] sm:$0xff]
      %v1541 = vld [vmem:[%s338 + $0x78] sm:$0xff]
      %v1542 = vld [vmem:[%s338 + $0x80] sm:$0xff]
      %v1543 = vld [vmem:[%s338 + $0x88] sm:$0xff]
      %v1544 = vld [vmem:[%s338 + $0x90] sm:$0xff]
      %v1545 = vld [vmem:[%s338 + $0x98] sm:$0xff]
      %v1546 = vld [vmem:[%s338 + $0xa0] sm:$0xff]
      %v1547 = vld [vmem:[%s338 + $0xa8] sm:$0xff]
      %v1548 = vld [vmem:[%s338 + $0xb0] sm:$0xff]
      %v1549 = vld [vmem:[%s338 + $0xb8] sm:$0xff]
      %v1550 = vld [vmem:[%s338 + $0xc0] sm:$0xff]
      %v1551 = vld [vmem:[%s338 + $0xc8] sm:$0xff]
      %v1552 = vld [vmem:[%s338 + $0xd0] sm:$0xff]
      %v1553 = vld [vmem:[%s338 + $0xd8] sm:$0xff]
      %v1554 = vld [vmem:[%s338 + $0xe0] sm:$0xff]
      %v1555 = vld [vmem:[%s338 + $0xe8] sm:$0xff]
      %1557 = vset.pattern.permute.xlu0 0
      %1558 = vperm.xlu0 %1557, %v1526
      %v1559 = vpop.permute.xlu0 %1558
      %1562 = vset.pattern.permute.xlu0 0
      %1563 = vperm.xlu0 %1562, %v1527
      %v1564 = vpop.permute.xlu0 %1563
      %1567 = vset.pattern.permute.xlu0 0
      %1568 = vperm.xlu0 %1567, %v1528
      %v1569 = vpop.permute.xlu0 %1568
      %1572 = vset.pattern.permute.xlu0 0
      %1573 = vperm.xlu0 %1572, %v1529
      %v1574 = vpop.permute.xlu0 %1573
      %1577 = vset.pattern.permute.xlu0 0
      %1578 = vperm.xlu0 %1577, %v1530
      %v1579 = vpop.permute.xlu0 %1578
      %1582 = vset.pattern.permute.xlu0 0
      %1583 = vperm.xlu0 %1582, %v1531
      %v1584 = vpop.permute.xlu0 %1583
      %1587 = vset.pattern.permute.xlu0 0
      %1588 = vperm.xlu0 %1587, %v1532
      %v1589 = vpop.permute.xlu0 %1588
      %1592 = vset.pattern.permute.xlu0 0
      %1593 = vperm.xlu0 %1592, %v1533
      %v1594 = vpop.permute.xlu0 %1593
      %1597 = vset.pattern.permute.xlu0 0
      %1598 = vperm.xlu0 %1597, %v1534
      %v1599 = vpop.permute.xlu0 %1598
      %1602 = vset.pattern.permute.xlu0 0
      %1603 = vperm.xlu0 %1602, %v1535
      %v1604 = vpop.permute.xlu0 %1603
      %1607 = vset.pattern.permute.xlu0 0
      %1608 = vperm.xlu0 %1607, %v1536
      %v1609 = vpop.permute.xlu0 %1608
      %1612 = vset.pattern.permute.xlu0 0
      %1613 = vperm.xlu0 %1612, %v1537
      %v1614 = vpop.permute.xlu0 %1613
      %1617 = vset.pattern.permute.xlu0 0
      %1618 = vperm.xlu0 %1617, %v1538
      %v1619 = vpop.permute.xlu0 %1618
      %1622 = vset.pattern.permute.xlu0 0
      %1623 = vperm.xlu0 %1622, %v1539
      %v1624 = vpop.permute.xlu0 %1623
      %1627 = vset.pattern.permute.xlu0 0
      %1628 = vperm.xlu0 %1627, %v1540
      %v1629 = vpop.permute.xlu0 %1628
      %1632 = vset.pattern.permute.xlu0 0
      %1633 = vperm.xlu0 %1632, %v1541
      %v1634 = vpop.permute.xlu0 %1633
      %1637 = vset.pattern.permute.xlu0 0
      %1638 = vperm.xlu0 %1637, %v1542
      %v1639 = vpop.permute.xlu0 %1638
      %1642 = vset.pattern.permute.xlu0 0
      %1643 = vperm.xlu0 %1642, %v1543
      %v1644 = vpop.permute.xlu0 %1643
      %1647 = vset.pattern.permute.xlu0 0
      %1648 = vperm.xlu0 %1647, %v1544
      %v1649 = vpop.permute.xlu0 %1648
      %1652 = vset.pattern.permute.xlu0 0
      %1653 = vperm.xlu0 %1652, %v1545
      %v1654 = vpop.permute.xlu0 %1653
      %1657 = vset.pattern.permute.xlu0 0
      %1658 = vperm.xlu0 %1657, %v1546
      %v1659 = vpop.permute.xlu0 %1658
      %1662 = vset.pattern.permute.xlu0 0
      %1663 = vperm.xlu0 %1662, %v1547
      %v1664 = vpop.permute.xlu0 %1663
      %1667 = vset.pattern.permute.xlu0 0
      %1668 = vperm.xlu0 %1667, %v1548
      %v1669 = vpop.permute.xlu0 %1668
      %1672 = vset.pattern.permute.xlu0 0
      %1673 = vperm.xlu0 %1672, %v1549
      %v1674 = vpop.permute.xlu0 %1673
      %1677 = vset.pattern.permute.xlu0 0
      %1678 = vperm.xlu0 %1677, %v1550
      %v1679 = vpop.permute.xlu0 %1678
      %1682 = vset.pattern.permute.xlu0 0
      %1683 = vperm.xlu0 %1682, %v1551
      %v1684 = vpop.permute.xlu0 %1683
      %1687 = vset.pattern.permute.xlu0 0
      %1688 = vperm.xlu0 %1687, %v1552
      %v1689 = vpop.permute.xlu0 %1688
      %1692 = vset.pattern.permute.xlu0 0
      %1693 = vperm.xlu0 %1692, %v1553
      %v1694 = vpop.permute.xlu0 %1693
      %1697 = vset.pattern.permute.xlu0 0
      %1698 = vperm.xlu0 %1697, %v1554
      %v1699 = vpop.permute.xlu0 %1698
      %1702 = vset.pattern.permute.xlu0 0
      %1703 = vperm.xlu0 %1702, %v1555
      %v1704 = vpop.permute.xlu0 %1703
      %v1706 = vmul.f32 %v1496, %v1559
      %v1707 = vmul.f32 %v1497, %v1564
      %v1708 = vmul.f32 %v1498, %v1569
      %v1709 = vmul.f32 %v1499, %v1574
      %v1710 = vmul.f32 %v1500, %v1579
      %v1711 = vmul.f32 %v1501, %v1584
      %v1712 = vmul.f32 %v1502, %v1589
      %v1713 = vmul.f32 %v1503, %v1594
      %v1714 = vmul.f32 %v1504, %v1599
      %v1715 = vmul.f32 %v1505, %v1604
      %v1716 = vmul.f32 %v1506, %v1609
      %v1717 = vmul.f32 %v1507, %v1614
      %v1718 = vmul.f32 %v1508, %v1619
      %v1719 = vmul.f32 %v1509, %v1624
      %v1720 = vmul.f32 %v1510, %v1629
      %v1721 = vmul.f32 %v1511, %v1634
      %v1722 = vmul.f32 %v1512, %v1639
      %v1723 = vmul.f32 %v1513, %v1644
      %v1724 = vmul.f32 %v1514, %v1649
      %v1725 = vmul.f32 %v1515, %v1654
      %v1726 = vmul.f32 %v1516, %v1659
      %v1727 = vmul.f32 %v1517, %v1664
      %v1728 = vmul.f32 %v1518, %v1669
      %v1729 = vmul.f32 %v1519, %v1674
      %v1730 = vmul.f32 %v1520, %v1679
      %v1731 = vmul.f32 %v1521, %v1684
      %v1732 = vmul.f32 %v1522, %v1689
      %v1733 = vmul.f32 %v1523, %v1694
      %v1734 = vmul.f32 %v1524, %v1699
      %v1735 = vmul.f32 %v1525, %v1704
      %v1736 = vpack.c.bf16 %v1706, %v1706
      %v1737 = vpack.c.bf16 %v1707, %v1707
      %v1738 = vpack.c.bf16 %v1708, %v1708
      %v1739 = vpack.c.bf16 %v1709, %v1709
      %v1740 = vpack.c.bf16 %v1710, %v1710
      %v1741 = vpack.c.bf16 %v1711, %v1711
      %v1742 = vpack.c.bf16 %v1712, %v1712
      %v1743 = vpack.c.bf16 %v1713, %v1713
      %v1744 = vpack.c.bf16 %v1714, %v1714
      %v1745 = vpack.c.bf16 %v1715, %v1715
      %v1746 = vpack.c.bf16 %v1716, %v1716
      %v1747 = vpack.c.bf16 %v1717, %v1717
      %v1748 = vpack.c.bf16 %v1718, %v1718
      %v1749 = vpack.c.bf16 %v1719, %v1719
      %v1750 = vpack.c.bf16 %v1720, %v1720
      %v1751 = vpack.c.bf16 %v1721, %v1721
      %v1752 = vpack.c.bf16 %v1722, %v1722
      %v1753 = vpack.c.bf16 %v1723, %v1723
      %v1754 = vpack.c.bf16 %v1724, %v1724
      %v1755 = vpack.c.bf16 %v1725, %v1725
      %v1756 = vpack.c.bf16 %v1726, %v1726
      %v1757 = vpack.c.bf16 %v1727, %v1727
      %v1758 = vpack.c.bf16 %v1728, %v1728
      %v1759 = vpack.c.bf16 %v1729, %v1729
      %1760 = vst.msk [vmem:[#allocation3] sm:$0xf] %vm385, %v1736
      %1761 = vst.msk [vmem:[#allocation3 + $0x4] sm:$0xf] %vm385, %v1737
      %1762 = vst.msk [vmem:[#allocation3 + $0x8] sm:$0xf] %vm385, %v1738
      %1763 = vst.msk [vmem:[#allocation3 + $0xc] sm:$0xf] %vm385, %v1739
      %1764 = vst.msk [vmem:[#allocation3 + $0x10] sm:$0xf] %vm385, %v1740
      %1765 = vst.msk [vmem:[#allocation3 + $0x14] sm:$0xf] %vm385, %v1741
      %1766 = vst.msk [vmem:[#allocation3 + $0x18] sm:$0xf] %vm385, %v1742
      %1767 = vst.msk [vmem:[#allocation3 + $0x1c] sm:$0xf] %vm385, %v1743
      %1768 = vst.msk [vmem:[#allocation3 + $0x20] sm:$0xf] %vm385, %v1744
      %1769 = vst.msk [vmem:[#allocation3 + $0x24] sm:$0xf] %vm385, %v1745
      %1770 = vst.msk [vmem:[#allocation3 + $0x28] sm:$0xf] %vm385, %v1746
      %1771 = vst.msk [vmem:[#allocation3 + $0x2c] sm:$0xf] %vm385, %v1747
      %1772 = vst.msk [vmem:[#allocation3 + $0x30] sm:$0xf] %vm385, %v1748
      %1773 = vst.msk [vmem:[#allocation3 + $0x34] sm:$0xf] %vm385, %v1749
      %1774 = vst.msk [vmem:[#allocation3 + $0x38] sm:$0xf] %vm385, %v1750
      %1775 = vst.msk [vmem:[#allocation3 + $0x3c] sm:$0xf] %vm385, %v1751
      %1776 = vst.msk [vmem:[#allocation3 + $0x40] sm:$0xf] %vm385, %v1752
      %1777 = vst.msk [vmem:[#allocation3 + $0x44] sm:$0xf] %vm385, %v1753
      %1778 = vst.msk [vmem:[#allocation3 + $0x48] sm:$0xf] %vm385, %v1754
      %1779 = vst.msk [vmem:[#allocation3 + $0x4c] sm:$0xf] %vm385, %v1755
      %1780 = vst.msk [vmem:[#allocation3 + $0x50] sm:$0xf] %vm385, %v1756
      %1781 = vst.msk [vmem:[#allocation3 + $0x54] sm:$0xf] %vm385, %v1757
      %1782 = vst.msk [vmem:[#allocation3 + $0x58] sm:$0xf] %vm385, %v1758
      %1783 = vst.msk [vmem:[#allocation3 + $0x5c] sm:$0xf] %vm385, %v1759
      %v1784 = vpack.c.bf16 %v1730, %v1730
      %v1785 = vpack.c.bf16 %v1731, %v1731
      %v1786 = vpack.c.bf16 %v1732, %v1732
      %1811 = vrot.lane.b32.xlu0 %v1739, 4
      %v1812 = vpop.permute.xlu0 %1811
      %1813 = vrot.lane.b32.xlu0 %v1740, 4
      %v1814 = vpop.permute.xlu0 %1813
      %1815 = vrot.lane.b32.xlu0 %v1741, 4
      %v1816 = vpop.permute.xlu0 %1815
      %1817 = vrot.lane.b32.xlu0 %v1742, 4
      %v1818 = vpop.permute.xlu0 %1817
      %1819 = vrot.lane.b32.xlu0 %v1743, 4
      %v1820 = vpop.permute.xlu0 %1819
      %1821 = vrot.lane.b32.xlu0 %v1744, 4
      %v1822 = vpop.permute.xlu0 %1821
      %1823 = vrot.lane.b32.xlu0 %v1745, 4
      %v1824 = vpop.permute.xlu0 %1823
      %1825 = vrot.lane.b32.xlu0 %v1746, 4
      %v1826 = vpop.permute.xlu0 %1825
      %1827 = vrot.lane.b32.xlu0 %v1747, 4
      %v1828 = vpop.permute.xlu0 %1827
      %1829 = vrot.lane.b32.xlu0 %v1748, 4
      %v1830 = vpop.permute.xlu0 %1829
      %1831 = vrot.lane.b32.xlu0 %v1749, 4
      %v1832 = vpop.permute.xlu0 %1831
      %1833 = vrot.lane.b32.xlu0 %v1750, 4
      %v1834 = vpop.permute.xlu0 %1833
      %1835 = vrot.lane.b32.xlu0 %v1751, 4
      %v1836 = vpop.permute.xlu0 %1835
      %1837 = vrot.lane.b32.xlu0 %v1752, 4
      %v1838 = vpop.permute.xlu0 %1837
      %1839 = vrot.lane.b32.xlu0 %v1753, 4
      %v1840 = vpop.permute.xlu0 %1839
      %1841 = vrot.lane.b32.xlu0 %v1754, 4
      %v1842 = vpop.permute.xlu0 %1841
      %1843 = vrot.lane.b32.xlu0 %v1755, 4
      %v1844 = vpop.permute.xlu0 %1843
      %1845 = vrot.lane.b32.xlu0 %v1756, 4
      %v1846 = vpop.permute.xlu0 %1845
      %1847 = vrot.lane.b32.xlu0 %v1757, 4
      %v1848 = vpop.permute.xlu0 %1847
      %1849 = vrot.lane.b32.xlu0 %v1758, 4
      %v1850 = vpop.permute.xlu0 %1849
      %1851 = vrot.lane.b32.xlu0 %v1759, 4
      %v1852 = vpop.permute.xlu0 %1851
      %1853 = vrot.lane.b32.xlu0 %v1784, 4
      %v1854 = vpop.permute.xlu0 %1853
      %1855 = vrot.lane.b32.xlu0 %v1785, 4
      %v1856 = vpop.permute.xlu0 %1855
      %1857 = vrot.lane.b32.xlu0 %v1786, 4
      %v1858 = vpop.permute.xlu0 %1857
      %1883 = vst.msk [vmem:[#allocation3] sm:$0xf] %vm571, %v1812
      %1884 = vst.msk [vmem:[#allocation3 + $0x4] sm:$0xf] %vm571, %v1814
      %1885 = vst.msk [vmem:[#allocation3 + $0x8] sm:$0xf] %vm571, %v1816
      %1886 = vst.msk [vmem:[#allocation3 + $0xc] sm:$0xf] %vm571, %v1818
      %1887 = vst.msk [vmem:[#allocation3 + $0x10] sm:$0xf] %vm571, %v1820
      %1888 = vst.msk [vmem:[#allocation3 + $0x14] sm:$0xf] %vm571, %v1822
      %1889 = vst.msk [vmem:[#allocation3 + $0x18] sm:$0xf] %vm571, %v1824
      %1890 = vst.msk [vmem:[#allocation3 + $0x1c] sm:$0xf] %vm571, %v1826
      %1891 = vst.msk [vmem:[#allocation3 + $0x20] sm:$0xf] %vm571, %v1828
      %1892 = vst.msk [vmem:[#allocation3 + $0x24] sm:$0xf] %vm571, %v1830
      %1893 = vst.msk [vmem:[#allocation3 + $0x28] sm:$0xf] %vm571, %v1832
      %1894 = vst.msk [vmem:[#allocation3 + $0x2c] sm:$0xf] %vm571, %v1834
      %1895 = vst.msk [vmem:[#allocation3 + $0x30] sm:$0xf] %vm571, %v1836
      %1896 = vst.msk [vmem:[#allocation3 + $0x34] sm:$0xf] %vm571, %v1838
      %1897 = vst.msk [vmem:[#allocation3 + $0x38] sm:$0xf] %vm571, %v1840
      %1898 = vst.msk [vmem:[#allocation3 + $0x3c] sm:$0xf] %vm571, %v1842
      %1899 = vst.msk [vmem:[#allocation3 + $0x40] sm:$0xf] %vm571, %v1844
      %1900 = vst.msk [vmem:[#allocation3 + $0x44] sm:$0xf] %vm571, %v1846
      %1901 = vst.msk [vmem:[#allocation3 + $0x48] sm:$0xf] %vm571, %v1848
      %1902 = vst.msk [vmem:[#allocation3 + $0x4c] sm:$0xf] %vm571, %v1850
      %1903 = vst.msk [vmem:[#allocation3 + $0x50] sm:$0xf] %vm571, %v1852
      %1904 = vst.msk [vmem:[#allocation3 + $0x54] sm:$0xf] %vm571, %v1854
      %1905 = vst.msk [vmem:[#allocation3 + $0x58] sm:$0xf] %vm571, %v1856
      %1906 = vst.msk [vmem:[#allocation3 + $0x5c] sm:$0xf] %vm571, %v1858
      %v1907 = vpack.c.bf16 %v1733, %v1733
      %v1908 = vpack.c.bf16 %v1734, %v1734
      %v1909 = vpack.c.bf16 %v1735, %v1735
      %1913 = vrot.lane.b32.xlu0 %v1742, 8
      %v1914 = vpop.permute.xlu0 %1913
      %1915 = vrot.lane.b32.xlu0 %v1743, 8
      %v1916 = vpop.permute.xlu0 %1915
      %1917 = vrot.lane.b32.xlu0 %v1744, 8
      %v1918 = vpop.permute.xlu0 %1917
      %1919 = vrot.lane.b32.xlu0 %v1745, 8
      %v1920 = vpop.permute.xlu0 %1919
      %1921 = vrot.lane.b32.xlu0 %v1746, 8
      %v1922 = vpop.permute.xlu0 %1921
      %1923 = vrot.lane.b32.xlu0 %v1747, 8
      %v1924 = vpop.permute.xlu0 %1923
      %1925 = vrot.lane.b32.xlu0 %v1748, 8
      %v1926 = vpop.permute.xlu0 %1925
      %1927 = vrot.lane.b32.xlu0 %v1749, 8
      %v1928 = vpop.permute.xlu0 %1927
      %1929 = vrot.lane.b32.xlu0 %v1750, 8
      %v1930 = vpop.permute.xlu0 %1929
      %1931 = vrot.lane.b32.xlu0 %v1751, 8
      %v1932 = vpop.permute.xlu0 %1931
      %1933 = vrot.lane.b32.xlu0 %v1752, 8
      %v1934 = vpop.permute.xlu0 %1933
      %1935 = vrot.lane.b32.xlu0 %v1753, 8
      %v1936 = vpop.permute.xlu0 %1935
      %1937 = vrot.lane.b32.xlu0 %v1754, 8
      %v1938 = vpop.permute.xlu0 %1937
      %1939 = vrot.lane.b32.xlu0 %v1755, 8
      %v1940 = vpop.permute.xlu0 %1939
      %1941 = vrot.lane.b32.xlu0 %v1756, 8
      %v1942 = vpop.permute.xlu0 %1941
      %1943 = vrot.lane.b32.xlu0 %v1757, 8
      %v1944 = vpop.permute.xlu0 %1943
      %1945 = vrot.lane.b32.xlu0 %v1758, 8
      %v1946 = vpop.permute.xlu0 %1945
      %1947 = vrot.lane.b32.xlu0 %v1759, 8
      %v1948 = vpop.permute.xlu0 %1947
      %1949 = vrot.lane.b32.xlu0 %v1784, 8
      %v1950 = vpop.permute.xlu0 %1949
      %1951 = vrot.lane.b32.xlu0 %v1785, 8
      %v1952 = vpop.permute.xlu0 %1951
      %1953 = vrot.lane.b32.xlu0 %v1786, 8
      %v1954 = vpop.permute.xlu0 %1953
      %1955 = vrot.lane.b32.xlu0 %v1907, 8
      %v1956 = vpop.permute.xlu0 %1955
      %1957 = vrot.lane.b32.xlu0 %v1908, 8
      %v1958 = vpop.permute.xlu0 %1957
      %1959 = vrot.lane.b32.xlu0 %v1909, 8
      %v1960 = vpop.permute.xlu0 %1959
      %1985 = vst.msk [vmem:[#allocation3] sm:$0xf] %vm757, %v1914
      %1986 = vst.msk [vmem:[#allocation3 + $0x4] sm:$0xf] %vm757, %v1916
      %1987 = vst.msk [vmem:[#allocation3 + $0x8] sm:$0xf] %vm757, %v1918
      %1988 = vst.msk [vmem:[#allocation3 + $0xc] sm:$0xf] %vm757, %v1920
      %1989 = vst.msk [vmem:[#allocation3 + $0x10] sm:$0xf] %vm757, %v1922
      %1990 = vst.msk [vmem:[#allocation3 + $0x14] sm:$0xf] %vm757, %v1924
      %1991 = vst.msk [vmem:[#allocation3 + $0x18] sm:$0xf] %vm757, %v1926
      %1992 = vst.msk [vmem:[#allocation3 + $0x1c] sm:$0xf] %vm757, %v1928
      %1993 = vst.msk [vmem:[#allocation3 + $0x20] sm:$0xf] %vm757, %v1930
      %1994 = vst.msk [vmem:[#allocation3 + $0x24] sm:$0xf] %vm757, %v1932
      %1995 = vst.msk [vmem:[#allocation3 + $0x28] sm:$0xf] %vm757, %v1934
      %1996 = vst.msk [vmem:[#allocation3 + $0x2c] sm:$0xf] %vm757, %v1936
      %1997 = vst.msk [vmem:[#allocation3 + $0x30] sm:$0xf] %vm757, %v1938
      %1998 = vst.msk [vmem:[#allocation3 + $0x34] sm:$0xf] %vm757, %v1940
      %1999 = vst.msk [vmem:[#allocation3 + $0x38] sm:$0xf] %vm757, %v1942
      %2000 = vst.msk [vmem:[#allocation3 + $0x3c] sm:$0xf] %vm757, %v1944
      %2001 = vst.msk [vmem:[#allocation3 + $0x40] sm:$0xf] %vm757, %v1946
      %2002 = vst.msk [vmem:[#allocation3 + $0x44] sm:$0xf] %vm757, %v1948
      %2003 = vst.msk [vmem:[#allocation3 + $0x48] sm:$0xf] %vm757, %v1950
      %2004 = vst.msk [vmem:[#allocation3 + $0x4c] sm:$0xf] %vm757, %v1952
      %2005 = vst.msk [vmem:[#allocation3 + $0x50] sm:$0xf] %vm757, %v1954
      %2006 = vst.msk [vmem:[#allocation3 + $0x54] sm:$0xf] %vm757, %v1956
      %2007 = vst.msk [vmem:[#allocation3 + $0x58] sm:$0xf] %vm757, %v1958
      %2008 = vst.msk [vmem:[#allocation3 + $0x5c] sm:$0xf] %vm757, %v1960
      %v2009 = vld [vmem:[#allocation3] sm:$0xf]
      %v2010 = vld [vmem:[#allocation3 + $0x4] sm:$0xf]
      %v2011 = vld [vmem:[#allocation3 + $0x8] sm:$0xf]
      %v2012 = vld [vmem:[#allocation3 + $0xc] sm:$0xf]
      %v2013 = vld [vmem:[#allocation3 + $0x10] sm:$0xf]
      %v2014 = vld [vmem:[#allocation3 + $0x14] sm:$0xf]
      %v2015 = vld [vmem:[#allocation3 + $0x18] sm:$0xf]
      %v2016 = vld [vmem:[#allocation3 + $0x1c] sm:$0xf]
      %v2017 = vld [vmem:[#allocation3 + $0x20] sm:$0xf]
      %v2018 = vld [vmem:[#allocation3 + $0x24] sm:$0xf]
      %v2019 = vld [vmem:[#allocation3 + $0x28] sm:$0xf]
      %v2020 = vld [vmem:[#allocation3 + $0x2c] sm:$0xf]
      %v2021 = vld [vmem:[#allocation3 + $0x30] sm:$0xf]
      %v2022 = vld [vmem:[#allocation3 + $0x34] sm:$0xf]
      %v2023 = vld [vmem:[#allocation3 + $0x38] sm:$0xf]
      %v2024 = vld [vmem:[#allocation3 + $0x3c] sm:$0xf]
      %v2025 = vld [vmem:[#allocation3 + $0x40] sm:$0xf]
      %v2026 = vld [vmem:[#allocation3 + $0x44] sm:$0xf]
      %v2027 = vld [vmem:[#allocation3 + $0x48] sm:$0xf]
      %v2028 = vld [vmem:[#allocation3 + $0x4c] sm:$0xf]
      %v2029 = vld [vmem:[#allocation3 + $0x50] sm:$0xf]
      %v2030 = vld [vmem:[#allocation3 + $0x54] sm:$0xf]
      %v2031 = vld [vmem:[#allocation3 + $0x58] sm:$0xf]
      %v2032 = vld [vmem:[#allocation3 + $0x5c] sm:$0xf]
      %v2033 = vld [vmem:[%s5] sm:$0xf]
      %v2034 = vld [vmem:[%s5 + $0x4] sm:$0x3]
      %v2059 = vunpack.c.l.b16 %v2009
      %v2060 = vunpack.c.l.b16 %v2010
      %v2061 = vunpack.c.l.b16 %v2011
      %v2062 = vunpack.c.l.b16 %v2012
      %v2063 = vunpack.c.l.b16 %v2013
      %v2064 = vunpack.c.l.b16 %v2014
      %v2065 = vunpack.c.l.b16 %v2015
      %v2066 = vunpack.c.l.b16 %v2016
      %v2067 = vunpack.c.l.b16 %v2017
      %v2068 = vunpack.c.l.b16 %v2018
      %v2069 = vunpack.c.l.b16 %v2019
      %v2070 = vunpack.c.l.b16 %v2020
      %v2071 = vunpack.c.l.b16 %v2021
      %v2072 = vunpack.c.l.b16 %v2022
      %v2073 = vunpack.c.l.b16 %v2023
      %v2074 = vunpack.c.l.b16 %v2024
      %v2075 = vunpack.c.l.b16 %v2025
      %v2076 = vunpack.c.l.b16 %v2026
      %v2077 = vunpack.c.l.b16 %v2027
      %v2078 = vunpack.c.l.b16 %v2028
      %v2079 = vunpack.c.l.b16 %v2029
      %v2080 = vunpack.c.l.b16 %v2030
      %v2081 = vunpack.c.l.b16 %v2031
      %v2082 = vunpack.c.l.b16 %v2032
      %v2083 = vpack.c.b16 %v2060, %v2059
      %v2084 = vpack.c.b16 %v2062, %v2061
      %v2085 = vpack.c.b16 %v2064, %v2063
      %v2086 = vpack.c.b16 %v2066, %v2065
      %v2087 = vpack.c.b16 %v2068, %v2067
      %v2088 = vpack.c.b16 %v2070, %v2069
      %v2089 = vpack.c.b16 %v2072, %v2071
      %v2090 = vpack.c.b16 %v2074, %v2073
      %v2091 = vpack.c.b16 %v2076, %v2075
      %v2092 = vpack.c.b16 %v2078, %v2077
      %v2093 = vpack.c.b16 %v2080, %v2079
      %v2094 = vpack.c.b16 %v2082, %v2081
      %v2097 = vunpack.c.l.b16 %v2033
      %v2098 = vunpack.c.l.b16 %v2034
      %v2099 = vpack.c.b16 %v2098, %v2097
      %v2101 = vsel %vm900, %v2083, 0
      %v2104 = vsel %vm900, %v2084, 0
      %v2107 = vsel %vm900, %v2085, 0
      %v2110 = vsel %vm900, %v2086, 0
      %v2113 = vsel %vm900, %v2087, 0
      %v2116 = vsel %vm900, %v2088, 0
      %v2119 = vsel %vm900, %v2089, 0
      %v2122 = vsel %vm900, %v2090, 0
      %v2125 = vsel %vm900, %v2091, 0
      %v2128 = vsel %vm900, %v2092, 0
      %v2131 = vsel %vm900, %v2093, 0
      %v2134 = vsel %vm900, %v2094, 0
      %v2137 = vsel %vm946, %v2099, 0
      %2139 = vmatpush.bf16.msra.mxu0 0
      %2140 = vmatpush.bf16.msra.mxu0 0
      %2141 = vmatpush.bf16.msra.mxu0 0
      %2142 = vmatpush.bf16.msra.mxu0 0
      %2143 = vmatpush.bf16.msra.mxu0 0
      %2144 = vmatpush.bf16.msra.mxu0 0
      %2145 = vmatpush.bf16.msra.mxu0 0
      %2146 = vmatpush.bf16.msra.mxu0 %v2137
      %2147 = vmatmul.bf16.gmra.mxu0 %v2101
      %v2148 = vpop.f32.mrf.mxu0
      %v2149 = vadd.f32 0.0, %v2148
      %v2150 = vpop.f32.mrf.mxu0
      %v2151 = vadd.f32 0.0, %v2150
      %2152 = vmatmul.bf16.gmra.mxu0 %v2104
      %v2153 = vpop.f32.mrf.mxu0
      %v2154 = vadd.f32 0.0, %v2153
      %v2155 = vpop.f32.mrf.mxu0
      %v2156 = vadd.f32 0.0, %v2155
      %2157 = vmatmul.bf16.gmra.mxu0 %v2107
      %v2158 = vpop.f32.mrf.mxu0
      %v2159 = vadd.f32 0.0, %v2158
      %v2160 = vpop.f32.mrf.mxu0
      %v2161 = vadd.f32 0.0, %v2160
      %2162 = vmatmul.bf16.gmra.mxu0 %v2110
      %v2163 = vpop.f32.mrf.mxu0
      %v2164 = vadd.f32 0.0, %v2163
      %v2165 = vpop.f32.mrf.mxu0
      %v2166 = vadd.f32 0.0, %v2165
      %2167 = vmatmul.bf16.gmra.mxu0 %v2113
      %v2168 = vpop.f32.mrf.mxu0
      %v2169 = vadd.f32 0.0, %v2168
      %v2170 = vpop.f32.mrf.mxu0
      %v2171 = vadd.f32 0.0, %v2170
      %2172 = vmatmul.bf16.gmra.mxu0 %v2116
      %v2173 = vpop.f32.mrf.mxu0
      %v2174 = vadd.f32 0.0, %v2173
      %v2175 = vpop.f32.mrf.mxu0
      %v2176 = vadd.f32 0.0, %v2175
      %2177 = vmatmul.bf16.gmra.mxu0 %v2119
      %v2178 = vpop.f32.mrf.mxu0
      %v2179 = vadd.f32 0.0, %v2178
      %v2180 = vpop.f32.mrf.mxu0
      %v2181 = vadd.f32 0.0, %v2180
      %2182 = vmatmul.bf16.gmra.mxu0 %v2122
      %v2183 = vpop.f32.mrf.mxu0
      %v2184 = vadd.f32 0.0, %v2183
      %v2185 = vpop.f32.mrf.mxu0
      %v2186 = vadd.f32 0.0, %v2185
      %2187 = vmatmul.bf16.gmra.mxu0 %v2125
      %v2188 = vpop.f32.mrf.mxu0
      %v2189 = vadd.f32 0.0, %v2188
      %v2190 = vpop.f32.mrf.mxu0
      %v2191 = vadd.f32 0.0, %v2190
      %2192 = vmatmul.bf16.gmra.mxu0 %v2128
      %v2193 = vpop.f32.mrf.mxu0
      %v2194 = vadd.f32 0.0, %v2193
      %v2195 = vpop.f32.mrf.mxu0
      %v2196 = vadd.f32 0.0, %v2195
      %2197 = vmatmul.bf16.gmra.mxu0 %v2131
      %v2198 = vpop.f32.mrf.mxu0
      %v2199 = vadd.f32 0.0, %v2198
      %v2200 = vpop.f32.mrf.mxu0
      %v2201 = vadd.f32 0.0, %v2200
      %2202 = vmatmul.bf16.gmra.mxu0 %v2134
      %v2203 = vpop.f32.mrf.mxu0
      %v2204 = vadd.f32 0.0, %v2203
      %v2205 = vpop.f32.mrf.mxu0
      %v2206 = vadd.f32 0.0, %v2205
      %2207 = vdwg.mxu0
      %v2208 = vrot.slane %v2149, 7
      %v2209 = vrot.slane %v2151, 7
      %v2210 = vrot.slane %v2154, 7
      %v2211 = vrot.slane %v2156, 7
      %v2212 = vrot.slane %v2159, 7
      %v2213 = vrot.slane %v2161, 7
      %v2214 = vrot.slane %v2164, 7
      %v2215 = vrot.slane %v2166, 7
      %v2216 = vrot.slane %v2169, 7
      %v2217 = vrot.slane %v2171, 7
      %v2218 = vrot.slane %v2174, 7
      %v2219 = vrot.slane %v2176, 7
      %v2220 = vrot.slane %v2179, 7
      %v2221 = vrot.slane %v2181, 7
      %v2222 = vrot.slane %v2184, 7
      %v2223 = vrot.slane %v2186, 7
      %v2224 = vrot.slane %v2189, 7
      %v2225 = vrot.slane %v2191, 7
      %v2226 = vrot.slane %v2194, 7
      %v2227 = vrot.slane %v2196, 7
      %v2228 = vrot.slane %v2199, 7
      %v2229 = vrot.slane %v2201, 7
      %v2230 = vrot.slane %v2204, 7
      %v2231 = vrot.slane %v2206, 7
      %v2232 = vsel %vm1066, %v2230, %v2231
      %v2233 = vsel %vm1066, %v2229, %v2230
      %v2234 = vsel %vm1066, %v2228, %v2229
      %v2235 = vsel %vm1066, %v2227, %v2228
      %v2236 = vsel %vm1066, %v2226, %v2227
      %v2237 = vsel %vm1066, %v2225, %v2226
      %v2238 = vsel %vm1066, %v2224, %v2225
      %v2239 = vsel %vm1066, %v2223, %v2224
      %v2240 = vsel %vm1066, %v2222, %v2223
      %v2241 = vsel %vm1066, %v2221, %v2222
      %v2242 = vsel %vm1066, %v2220, %v2221
      %v2243 = vsel %vm1066, %v2219, %v2220
      %v2244 = vsel %vm1066, %v2218, %v2219
      %v2245 = vsel %vm1066, %v2217, %v2218
      %v2246 = vsel %vm1066, %v2216, %v2217
      %v2247 = vsel %vm1066, %v2215, %v2216
      %v2248 = vsel %vm1066, %v2214, %v2215
      %v2249 = vsel %vm1066, %v2213, %v2214
      %v2250 = vsel %vm1066, %v2212, %v2213
      %v2251 = vsel %vm1066, %v2211, %v2212
      %v2252 = vsel %vm1066, %v2210, %v2211
      %v2253 = vsel %vm1066, %v2209, %v2210
      %v2254 = vsel %vm1066, %v2208, %v2209
      %v2255 = vsel %vm1066, %v2231, %v2208
      %2280 = vrot.lane.b32.xlu0 %v2149, 124
      %v2281 = vpop.permute.xlu0 %2280
      %2282 = vrot.lane.b32.xlu0 %v2151, 124
      %v2283 = vpop.permute.xlu0 %2282
      %2284 = vrot.lane.b32.xlu0 %v2154, 124
      %v2285 = vpop.permute.xlu0 %2284
      %2286 = vrot.lane.b32.xlu0 %v2156, 124
      %v2287 = vpop.permute.xlu0 %2286
      %2288 = vrot.lane.b32.xlu0 %v2159, 124
      %v2289 = vpop.permute.xlu0 %2288
      %2290 = vrot.lane.b32.xlu0 %v2161, 124
      %v2291 = vpop.permute.xlu0 %2290
      %2292 = vrot.lane.b32.xlu0 %v2164, 124
      %v2293 = vpop.permute.xlu0 %2292
      %2294 = vrot.lane.b32.xlu0 %v2166, 124
      %v2295 = vpop.permute.xlu0 %2294
      %2296 = vrot.lane.b32.xlu0 %v2169, 124
      %v2297 = vpop.permute.xlu0 %2296
      %2298 = vrot.lane.b32.xlu0 %v2171, 124
      %v2299 = vpop.permute.xlu0 %2298
      %2300 = vrot.lane.b32.xlu0 %v2174, 124
      %v2301 = vpop.permute.xlu0 %2300
      %2302 = vrot.lane.b32.xlu0 %v2176, 124
      %v2303 = vpop.permute.xlu0 %2302
      %2304 = vrot.lane.b32.xlu0 %v2179, 124
      %v2305 = vpop.permute.xlu0 %2304
      %2306 = vrot.lane.b32.xlu0 %v2181, 124
      %v2307 = vpop.permute.xlu0 %2306
      %2308 = vrot.lane.b32.xlu0 %v2184, 124
      %v2309 = vpop.permute.xlu0 %2308
      %2310 = vrot.lane.b32.xlu0 %v2186, 124
      %v2311 = vpop.permute.xlu0 %2310
      %2312 = vrot.lane.b32.xlu0 %v2189, 124
      %v2313 = vpop.permute.xlu0 %2312
      %2314 = vrot.lane.b32.xlu0 %v2191, 124
      %v2315 = vpop.permute.xlu0 %2314
      %2316 = vrot.lane.b32.xlu0 %v2194, 124
      %v2317 = vpop.permute.xlu0 %2316
      %2318 = vrot.lane.b32.xlu0 %v2196, 124
      %v2319 = vpop.permute.xlu0 %2318
      %2320 = vrot.lane.b32.xlu0 %v2199, 124
      %v2321 = vpop.permute.xlu0 %2320
      %2322 = vrot.lane.b32.xlu0 %v2201, 124
      %v2323 = vpop.permute.xlu0 %2322
      %2324 = vrot.lane.b32.xlu0 %v2204, 124
      %v2325 = vpop.permute.xlu0 %2324
      %2326 = vrot.lane.b32.xlu0 %v2206, 124
      %v2327 = vpop.permute.xlu0 %2326
      %v2352 = vadd.f32 %v2255, %v2281
      %v2353 = vadd.f32 %v2254, %v2283
      %v2354 = vadd.f32 %v2253, %v2285
      %v2355 = vadd.f32 %v2252, %v2287
      %v2356 = vadd.f32 %v2251, %v2289
      %v2357 = vadd.f32 %v2250, %v2291
      %v2358 = vadd.f32 %v2249, %v2293
      %v2359 = vadd.f32 %v2248, %v2295
      %v2360 = vadd.f32 %v2247, %v2297
      %v2361 = vadd.f32 %v2246, %v2299
      %v2362 = vadd.f32 %v2245, %v2301
      %v2363 = vadd.f32 %v2244, %v2303
      %v2364 = vadd.f32 %v2243, %v2305
      %v2365 = vadd.f32 %v2242, %v2307
      %v2366 = vadd.f32 %v2241, %v2309
      %v2367 = vadd.f32 %v2240, %v2311
      %v2368 = vadd.f32 %v2239, %v2313
      %v2369 = vadd.f32 %v2238, %v2315
      %v2370 = vadd.f32 %v2237, %v2317
      %v2371 = vadd.f32 %v2236, %v2319
      %v2372 = vadd.f32 %v2235, %v2321
      %v2373 = vadd.f32 %v2234, %v2323
      %v2374 = vadd.f32 %v2233, %v2325
      %v2375 = vadd.f32 %v2232, %v2327
      %2376 = vrot.lane.b32.xlu0 %v2149, 120
      %v2377 = vpop.permute.xlu0 %2376
      %2378 = vrot.lane.b32.xlu0 %v2151, 120
      %v2379 = vpop.permute.xlu0 %2378
      %2380 = vrot.lane.b32.xlu0 %v2154, 120
      %v2381 = vpop.permute.xlu0 %2380
      %2382 = vrot.lane.b32.xlu0 %v2156, 120
      %v2383 = vpop.permute.xlu0 %2382
      %2384 = vrot.lane.b32.xlu0 %v2159, 120
      %v2385 = vpop.permute.xlu0 %2384
      %2386 = vrot.lane.b32.xlu0 %v2161, 120
      %v2387 = vpop.permute.xlu0 %2386
      %2388 = vrot.lane.b32.xlu0 %v2164, 120
      %v2389 = vpop.permute.xlu0 %2388
      %2390 = vrot.lane.b32.xlu0 %v2166, 120
      %v2391 = vpop.permute.xlu0 %2390
      %2392 = vrot.lane.b32.xlu0 %v2169, 120
      %v2393 = vpop.permute.xlu0 %2392
      %2394 = vrot.lane.b32.xlu0 %v2171, 120
      %v2395 = vpop.permute.xlu0 %2394
      %2396 = vrot.lane.b32.xlu0 %v2174, 120
      %v2397 = vpop.permute.xlu0 %2396
      %2398 = vrot.lane.b32.xlu0 %v2176, 120
      %v2399 = vpop.permute.xlu0 %2398
      %2400 = vrot.lane.b32.xlu0 %v2179, 120
      %v2401 = vpop.permute.xlu0 %2400
      %2402 = vrot.lane.b32.xlu0 %v2181, 120
      %v2403 = vpop.permute.xlu0 %2402
      %2404 = vrot.lane.b32.xlu0 %v2184, 120
      %v2405 = vpop.permute.xlu0 %2404
      %2406 = vrot.lane.b32.xlu0 %v2186, 120
      %v2407 = vpop.permute.xlu0 %2406
      %2408 = vrot.lane.b32.xlu0 %v2189, 120
      %v2409 = vpop.permute.xlu0 %2408
      %2410 = vrot.lane.b32.xlu0 %v2191, 120
      %v2411 = vpop.permute.xlu0 %2410
      %2412 = vrot.lane.b32.xlu0 %v2194, 120
      %v2413 = vpop.permute.xlu0 %2412
      %2414 = vrot.lane.b32.xlu0 %v2196, 120
      %v2415 = vpop.permute.xlu0 %2414
      %2416 = vrot.lane.b32.xlu0 %v2199, 120
      %v2417 = vpop.permute.xlu0 %2416
      %2418 = vrot.lane.b32.xlu0 %v2201, 120
      %v2419 = vpop.permute.xlu0 %2418
      %2420 = vrot.lane.b32.xlu0 %v2204, 120
      %v2421 = vpop.permute.xlu0 %2420
      %2422 = vrot.lane.b32.xlu0 %v2206, 120
      %v2423 = vpop.permute.xlu0 %2422
      %v2448 = vrot.slane %v2377, 1
      %v2449 = vrot.slane %v2379, 1
      %v2450 = vrot.slane %v2381, 1
      %v2451 = vrot.slane %v2383, 1
      %v2452 = vrot.slane %v2385, 1
      %v2453 = vrot.slane %v2387, 1
      %v2454 = vrot.slane %v2389, 1
      %v2455 = vrot.slane %v2391, 1
      %v2456 = vrot.slane %v2393, 1
      %v2457 = vrot.slane %v2395, 1
      %v2458 = vrot.slane %v2397, 1
      %v2459 = vrot.slane %v2399, 1
      %v2460 = vrot.slane %v2401, 1
      %v2461 = vrot.slane %v2403, 1
      %v2462 = vrot.slane %v2405, 1
      %v2463 = vrot.slane %v2407, 1
      %v2464 = vrot.slane %v2409, 1
      %v2465 = vrot.slane %v2411, 1
      %v2466 = vrot.slane %v2413, 1
      %v2467 = vrot.slane %v2415, 1
      %v2468 = vrot.slane %v2417, 1
      %v2469 = vrot.slane %v2419, 1
      %v2470 = vrot.slane %v2421, 1
      %v2471 = vrot.slane %v2423, 1
      %v2472 = vsel %vm1367, %v2470, %v2471
      %v2473 = vsel %vm1367, %v2469, %v2470
      %v2474 = vsel %vm1367, %v2468, %v2469
      %v2475 = vsel %vm1367, %v2467, %v2468
      %v2476 = vsel %vm1367, %v2466, %v2467
      %v2477 = vsel %vm1367, %v2465, %v2466
      %v2478 = vsel %vm1367, %v2464, %v2465
      %v2479 = vsel %vm1367, %v2463, %v2464
      %v2480 = vsel %vm1367, %v2462, %v2463
      %v2481 = vsel %vm1367, %v2461, %v2462
      %v2482 = vsel %vm1367, %v2460, %v2461
      %v2483 = vsel %vm1367, %v2459, %v2460
      %v2484 = vsel %vm1367, %v2458, %v2459
      %v2485 = vsel %vm1367, %v2457, %v2458
      %v2486 = vsel %vm1367, %v2456, %v2457
      %v2487 = vsel %vm1367, %v2455, %v2456
      %v2488 = vsel %vm1367, %v2454, %v2455
      %v2489 = vsel %vm1367, %v2453, %v2454
      %v2490 = vsel %vm1367, %v2452, %v2453
      %v2491 = vsel %vm1367, %v2451, %v2452
      %v2492 = vsel %vm1367, %v2450, %v2451
      %v2493 = vsel %vm1367, %v2449, %v2450
      %v2494 = vsel %vm1367, %v2448, %v2449
      %v2495 = vsel %vm1367, %v2471, %v2448
      %v2496 = vadd.f32 %v2352, %v2494
      %v2497 = vadd.f32 %v2353, %v2493
      %v2498 = vadd.f32 %v2354, %v2492
      %v2499 = vadd.f32 %v2355, %v2491
      %v2500 = vadd.f32 %v2356, %v2490
      %v2501 = vadd.f32 %v2357, %v2489
      %v2502 = vadd.f32 %v2358, %v2488
      %v2503 = vadd.f32 %v2359, %v2487
      %v2504 = vadd.f32 %v2360, %v2486
      %v2505 = vadd.f32 %v2361, %v2485
      %v2506 = vadd.f32 %v2362, %v2484
      %v2507 = vadd.f32 %v2363, %v2483
      %v2508 = vadd.f32 %v2364, %v2482
      %v2509 = vadd.f32 %v2365, %v2481
      %v2510 = vadd.f32 %v2366, %v2480
      %v2511 = vadd.f32 %v2367, %v2479
      %v2512 = vadd.f32 %v2368, %v2478
      %v2513 = vadd.f32 %v2369, %v2477
      %v2514 = vadd.f32 %v2370, %v2476
      %v2515 = vadd.f32 %v2371, %v2475
      %v2516 = vadd.f32 %v2372, %v2474
      %v2517 = vadd.f32 %v2373, %v2473
      %v2518 = vadd.f32 %v2374, %v2472
      %v2519 = vadd.f32 %v2375, %v2495
      %v2520 = vld [vmem:[%s606] sm:$0xf]
      %v2521 = vld [vmem:[%s606 + $0x4] sm:$0xf]
      %v2522 = vld [vmem:[%s606 + $0x8] sm:$0xf]
      %v2523 = vld [vmem:[%s606 + $0xc] sm:$0xf]
      %v2524 = vld [vmem:[%s606 + $0x10] sm:$0xf]
      %v2525 = vld [vmem:[%s606 + $0x14] sm:$0xf]
      %v2526 = vld [vmem:[%s606 + $0x18] sm:$0xf]
      %v2527 = vld [vmem:[%s606 + $0x1c] sm:$0xf]
      %v2528 = vld [vmem:[%s606 + $0x20] sm:$0xf]
      %v2529 = vld [vmem:[%s606 + $0x24] sm:$0xf]
      %v2530 = vld [vmem:[%s606 + $0x28] sm:$0xf]
      %v2531 = vld [vmem:[%s606 + $0x2c] sm:$0xf]
      %v2532 = vld [vmem:[%s606 + $0x30] sm:$0xf]
      %v2533 = vld [vmem:[%s606 + $0x34] sm:$0xf]
      %v2534 = vld [vmem:[%s606 + $0x38] sm:$0xf]
      %v2535 = vld [vmem:[%s606 + $0x3c] sm:$0xf]
      %v2536 = vld [vmem:[%s606 + $0x40] sm:$0xf]
      %v2537 = vld [vmem:[%s606 + $0x44] sm:$0xf]
      %v2538 = vld [vmem:[%s606 + $0x48] sm:$0xf]
      %v2539 = vld [vmem:[%s606 + $0x4c] sm:$0xf]
      %v2540 = vld [vmem:[%s606 + $0x50] sm:$0xf]
      %v2541 = vld [vmem:[%s606 + $0x54] sm:$0xf]
      %v2542 = vld [vmem:[%s606 + $0x58] sm:$0xf]
      %v2543 = vld [vmem:[%s606 + $0x5c] sm:$0xf]
      %v2544 = vunpack.c.l.bf16 %v2520
      %v2545 = vunpack.c.l.bf16 %v2521
      %v2546 = vunpack.c.l.bf16 %v2522
      %v2547 = vunpack.c.l.bf16 %v2523
      %v2548 = vunpack.c.l.bf16 %v2524
      %v2549 = vunpack.c.l.bf16 %v2525
      %v2550 = vunpack.c.l.bf16 %v2526
      %v2551 = vunpack.c.l.bf16 %v2527
      %v2552 = vunpack.c.l.bf16 %v2528
      %v2553 = vunpack.c.l.bf16 %v2529
      %v2554 = vunpack.c.l.bf16 %v2530
      %v2555 = vunpack.c.l.bf16 %v2531
      %v2556 = vunpack.c.l.bf16 %v2532
      %v2557 = vunpack.c.l.bf16 %v2533
      %v2558 = vunpack.c.l.bf16 %v2534
      %v2559 = vunpack.c.l.bf16 %v2535
      %v2560 = vunpack.c.l.bf16 %v2536
      %v2561 = vunpack.c.l.bf16 %v2537
      %v2562 = vunpack.c.l.bf16 %v2538
      %v2563 = vunpack.c.l.bf16 %v2539
      %v2564 = vunpack.c.l.bf16 %v2540
      %v2565 = vunpack.c.l.bf16 %v2541
      %v2566 = vunpack.c.l.bf16 %v2542
      %v2567 = vunpack.c.l.bf16 %v2543
      %v2568 = vld [vmem:[%s6] sm:$0x1]
      %v2570 = vperm.slane %v2568, 0
      %v2572 = vmul.f32 %v2496, %v2570
      %v2573 = vmul.f32 %v2497, %v2570
      %v2574 = vmul.f32 %v2498, %v2570
      %v2575 = vmul.f32 %v2499, %v2570
      %v2576 = vmul.f32 %v2500, %v2570
      %v2577 = vmul.f32 %v2501, %v2570
      %v2578 = vmul.f32 %v2502, %v2570
      %v2579 = vmul.f32 %v2503, %v2570
      %v2580 = vmul.f32 %v2504, %v2570
      %v2581 = vmul.f32 %v2505, %v2570
      %v2582 = vmul.f32 %v2506, %v2570
      %v2583 = vmul.f32 %v2507, %v2570
      %v2584 = vmul.f32 %v2508, %v2570
      %v2585 = vmul.f32 %v2509, %v2570
      %v2586 = vmul.f32 %v2510, %v2570
      %v2587 = vmul.f32 %v2511, %v2570
      %v2588 = vmul.f32 %v2512, %v2570
      %v2589 = vmul.f32 %v2513, %v2570
      %v2590 = vmul.f32 %v2514, %v2570
      %v2591 = vmul.f32 %v2515, %v2570
      %v2592 = vmul.f32 %v2516, %v2570
      %v2593 = vmul.f32 %v2517, %v2570
      %v2594 = vmul.f32 %v2518, %v2570
      %v2595 = vmul.f32 %v2519, %v2570
      %v2596 = vld [vmem:[%s7] sm:$0x1]
      %v2598 = vperm.slane %v2596, 0
      %v2600 = vadd.f32 %v2572, %v2598
      %v2601 = vadd.f32 %v2573, %v2598
      %v2602 = vadd.f32 %v2574, %v2598
      %v2603 = vadd.f32 %v2575, %v2598
      %v2604 = vadd.f32 %v2576, %v2598
      %v2605 = vadd.f32 %v2577, %v2598
      %v2606 = vadd.f32 %v2578, %v2598
      %v2607 = vadd.f32 %v2579, %v2598
      %v2608 = vadd.f32 %v2580, %v2598
      %v2609 = vadd.f32 %v2581, %v2598
      %v2610 = vadd.f32 %v2582, %v2598
      %v2611 = vadd.f32 %v2583, %v2598
      %v2612 = vadd.f32 %v2584, %v2598
      %v2613 = vadd.f32 %v2585, %v2598
      %v2614 = vadd.f32 %v2586, %v2598
      %v2615 = vadd.f32 %v2587, %v2598
      %v2616 = vadd.f32 %v2588, %v2598
      %v2617 = vadd.f32 %v2589, %v2598
      %v2618 = vadd.f32 %v2590, %v2598
      %v2619 = vadd.f32 %v2591, %v2598
      %v2620 = vadd.f32 %v2592, %v2598
      %v2621 = vadd.f32 %v2593, %v2598
      %v2622 = vadd.f32 %v2594, %v2598
      %v2623 = vadd.f32 %v2595, %v2598
      %v2624 = vadd.f32 %v2600, %v2544
      %v2625 = vadd.f32 %v2601, %v2545
      %v2626 = vadd.f32 %v2602, %v2546
      %v2627 = vadd.f32 %v2603, %v2547
      %v2628 = vadd.f32 %v2604, %v2548
      %v2629 = vadd.f32 %v2605, %v2549
      %v2630 = vadd.f32 %v2606, %v2550
      %v2631 = vadd.f32 %v2607, %v2551
      %v2632 = vadd.f32 %v2608, %v2552
      %v2633 = vadd.f32 %v2609, %v2553
      %v2634 = vadd.f32 %v2610, %v2554
      %v2635 = vadd.f32 %v2611, %v2555
      %v2636 = vadd.f32 %v2612, %v2556
      %v2637 = vadd.f32 %v2613, %v2557
      %v2638 = vadd.f32 %v2614, %v2558
      %v2639 = vadd.f32 %v2615, %v2559
      %v2640 = vadd.f32 %v2616, %v2560
      %v2641 = vadd.f32 %v2617, %v2561
      %v2642 = vadd.f32 %v2618, %v2562
      %v2643 = vadd.f32 %v2619, %v2563
      %v2644 = vadd.f32 %v2620, %v2564
      %v2645 = vadd.f32 %v2621, %v2565
      %v2646 = vadd.f32 %v2622, %v2566
      %v2647 = vadd.f32 %v2623, %v2567
      %v2648 = vmax.f32 %v2624, 0.0
      %v2649 = vmax.f32 %v2625, 0.0
      %v2650 = vmax.f32 %v2626, 0.0
      %v2651 = vmax.f32 %v2627, 0.0
      %v2652 = vmax.f32 %v2628, 0.0
      %v2653 = vmax.f32 %v2629, 0.0
      %v2654 = vmax.f32 %v2630, 0.0
      %v2655 = vmax.f32 %v2631, 0.0
      %v2656 = vmax.f32 %v2632, 0.0
      %v2657 = vmax.f32 %v2633, 0.0
      %v2658 = vmax.f32 %v2634, 0.0
      %v2659 = vmax.f32 %v2635, 0.0
      %v2660 = vmax.f32 %v2636, 0.0
      %v2661 = vmax.f32 %v2637, 0.0
      %v2662 = vmax.f32 %v2638, 0.0
      %v2663 = vmax.f32 %v2639, 0.0
      %v2664 = vmax.f32 %v2640, 0.0
      %v2665 = vmax.f32 %v2641, 0.0
      %v2666 = vmax.f32 %v2642, 0.0
      %v2667 = vmax.f32 %v2643, 0.0
      %v2668 = vmax.f32 %v2644, 0.0
      %v2669 = vmax.f32 %v2645, 0.0
      %v2670 = vmax.f32 %v2646, 0.0
      %v2671 = vmax.f32 %v2647, 0.0
      %v2672 = vpack.c.bf16 %v2648, %v2648
      %v2673 = vpack.c.bf16 %v2649, %v2649
      %v2674 = vpack.c.bf16 %v2650, %v2650
      %v2675 = vpack.c.bf16 %v2651, %v2651
      %v2676 = vpack.c.bf16 %v2652, %v2652
      %v2677 = vpack.c.bf16 %v2653, %v2653
      %v2678 = vpack.c.bf16 %v2654, %v2654
      %v2679 = vpack.c.bf16 %v2655, %v2655
      %v2680 = vpack.c.bf16 %v2656, %v2656
      %v2681 = vpack.c.bf16 %v2657, %v2657
      %v2682 = vpack.c.bf16 %v2658, %v2658
      %v2683 = vpack.c.bf16 %v2659, %v2659
      %v2684 = vpack.c.bf16 %v2660, %v2660
      %v2685 = vpack.c.bf16 %v2661, %v2661
      %v2686 = vpack.c.bf16 %v2662, %v2662
      %v2687 = vpack.c.bf16 %v2663, %v2663
      %v2688 = vpack.c.bf16 %v2664, %v2664
      %v2689 = vpack.c.bf16 %v2665, %v2665
      %v2690 = vpack.c.bf16 %v2666, %v2666
      %v2691 = vpack.c.bf16 %v2667, %v2667
      %v2692 = vpack.c.bf16 %v2668, %v2668
      %v2693 = vpack.c.bf16 %v2669, %v2669
      %v2694 = vpack.c.bf16 %v2670, %v2670
      %v2695 = vpack.c.bf16 %v2671, %v2671
      %2696 = vst.msk [vmem:[%s347] sm:$0xf] %vm385, %v2672
      %2697 = vst.msk [vmem:[%s347 + $0x4] sm:$0xf] %vm385, %v2673
      %2698 = vst.msk [vmem:[%s347 + $0x8] sm:$0xf] %vm385, %v2674
      %2699 = vst.msk [vmem:[%s347 + $0xc] sm:$0xf] %vm385, %v2675
      %2700 = vst.msk [vmem:[%s347 + $0x10] sm:$0xf] %vm385, %v2676
      %2701 = vst.msk [vmem:[%s347 + $0x14] sm:$0xf] %vm385, %v2677
      %2702 = vst.msk [vmem:[%s347 + $0x18] sm:$0xf] %vm385, %v2678
      %2703 = vst.msk [vmem:[%s347 + $0x1c] sm:$0xf] %vm385, %v2679
      %2704 = vst.msk [vmem:[%s347 + $0x20] sm:$0xf] %vm385, %v2680
      %2705 = vst.msk [vmem:[%s347 + $0x24] sm:$0xf] %vm385, %v2681
      %2706 = vst.msk [vmem:[%s347 + $0x28] sm:$0xf] %vm385, %v2682
      %2707 = vst.msk [vmem:[%s347 + $0x2c] sm:$0xf] %vm385, %v2683
      %2708 = vst.msk [vmem:[%s347 + $0x30] sm:$0xf] %vm385, %v2684
      %2709 = vst.msk [vmem:[%s347 + $0x34] sm:$0xf] %vm385, %v2685
      %2710 = vst.msk [vmem:[%s347 + $0x38] sm:$0xf] %vm385, %v2686
      %2711 = vst.msk [vmem:[%s347 + $0x3c] sm:$0xf] %vm385, %v2687
      %2712 = vst.msk [vmem:[%s347 + $0x40] sm:$0xf] %vm385, %v2688
      %2713 = vst.msk [vmem:[%s347 + $0x44] sm:$0xf] %vm385, %v2689
      %2714 = vst.msk [vmem:[%s347 + $0x48] sm:$0xf] %vm385, %v2690
      %2715 = vst.msk [vmem:[%s347 + $0x4c] sm:$0xf] %vm385, %v2691
      %2716 = vst.msk [vmem:[%s347 + $0x50] sm:$0xf] %vm385, %v2692
      %2717 = vst.msk [vmem:[%s347 + $0x54] sm:$0xf] %vm385, %v2693
      %2718 = vst.msk [vmem:[%s347 + $0x58] sm:$0xf] %vm385, %v2694
      %2719 = vst.msk [vmem:[%s347 + $0x5c] sm:$0xf] %vm385, %v2695
      %s2720 = smul.u32 24, %s24
      %p2721 = scmp.lt.s32.totalorder %s23, 1
      %s2722 = scalar_select %p2721, %s23, 1
      %p2723 = scmp.lt.s32.totalorder %s2720, 47
      %s2724 = scalar_select %p2723, %s2720, 47
      %s2725 = smul.addr %s2722, 48
      %s2726 = sadd.s32 %s2724, %s2725
      %s2727 = smul.addr %s2726, 4
      %s2728 = scalar_lea.vmem %s8, %s2727
      // Predicated region
      $region53: #{tpu_custom_call.1} parent=51 // pred_check
        %p2729 = pneg %p229
      $region54: #{tpu_custom_call.1} parent=51 // pred_check_branch
        %2731 = sbr.rel (%p2729) target = $region56
      $region55: #{tpu_custom_call.1} parent=51 // pred_region
        %s2732 = smul.u32 24, %s24
      $region56: #{tpu_custom_call.1} parent=51 // pred_fallthru
        _
    $region52: #{tpu_custom_call.1} parent=5 // pred_fallthru
      _
    %p2733 = scmp.le.s32.totalorder 2, %s14
    // Predicated region
    $region57: #{tpu_custom_call.1} parent=5 // pred_check
      %p2734 = pneg %p2733
    $region58: #{tpu_custom_call.1} parent=5 // pred_check_branch
      %2736 = sbr.rel (%p2734) target = $region60
    $region59: #{tpu_custom_call.1} parent=5 // pred_region
      %s2737 = ssub.s32 %s14, 2
      // Predicated region
      $region61: #{tpu_custom_call.1} parent=59 // pred_check
        %p2738 = pneg %p235
      $region62: #{tpu_custom_call.1} parent=59 // pred_check_branch
        %2740 = sbr.rel (%p2738) target = $region64
      $region63: #{tpu_custom_call.1} parent=59 // pred_region
        %s2741 = smul.u32 24, %s26
        %p2742 = scmp.lt.s32.totalorder %s25, 1
        %s2743 = scalar_select %p2742, %s25, 1
        %p2744 = scmp.lt.s32.totalorder %s2741, 47
        %s2745 = scalar_select %p2744, %s2741, 47
        %s2746 = smul.addr %s2743, 48
        %s2747 = sadd.s32 %s2745, %s2746
        %s2748 = smul.addr %s2747, 4
        %s2749 = scalar_lea.vmem %s8, %s2748
      $region64: #{tpu_custom_call.1} parent=59 // pred_fallthru
        _
    $region60: #{tpu_custom_call.1} parent=5 // pred_fallthru
      _
  $region6: #{tpu_custom_call.1} parent=0 // loop_footer
    %s18 = sadd.s32 1, %s14
  $region7: #{tpu_custom_call.1} parent=0 // loop_footer_branch
    %13 = sbr.rel target = $region3
  $region8: #{tpu_custom_call.1} parent=0 // loop_exit
    _

// kernel: tpu_custom_call.1
$region0: #{tpu_custom_call.1}
  #allocation0 [shape = 'u32[]', space=smem, size = 0x4, offset = 0x4, fixed_abs, tag = 'smem constant byte address 0x4 - core index']
  #allocation1 [shape = 'u32[72,128]{1,0:T(1,128)}', space=vmem, size = 0x9000, scoped, tag = 'internal scratch']
  #allocation2 [shape = 'bf16[240,12]{1,0:T(8,128)(2,1)}', space=vmem, size = 0xf000, scoped, tag = 'scratch operand']
  #allocation3 [shape = 'bf16[192,12]{1,0:T(8,128)(2,1)}', space=vmem, size = 0xc000, scoped, tag = 'scratch operand']
  %s0 = inlined_call_operand.vmem [shape: bf16[2,480,4], index: 0, kind: input, shape index: {}]
  %s1 = inlined_call_operand.vmem [shape: f32[2,240,1], index: 1, kind: input, shape index: {}]
  %s2 = inlined_call_operand.vmem [shape: bf16[12,12], index: 2, kind: input, shape index: {}]
  %s3 = inlined_call_operand.vmem [shape: f32[1,4], index: 3, kind: input, shape index: {}]
  %s4 = inlined_call_operand.vmem [shape: f32[1,4], index: 4, kind: input, shape index: {}]
  %s5 = inlined_call_operand.vmem [shape: bf16[12,12], index: 5, kind: input, shape index: {}]
  %s6 = inlined_call_operand.vmem [shape: f32[1,4], index: 6, kind: input, shape index: {}]
  %s7 = inlined_call_operand.vmem [shape: f32[1,4], index: 7, kind: input, shape index: {}]
  %s8 = inlined_call_operand.vmem [shape: bf16[2,384,4], index: 8, kind: output, shape index: {}]
  %s9 = sld [smem:[#allocation0]]
  $region65: #{tpu_custom_call.1} parent=0
    _
  %s11 = ssub.s32 1, %s9
  %s12 = scalar_select 0, %s11, %s9
  loop: start=0, step=1, limit=6
  $region2: #{tpu_custom_call.1} parent=0 // loop_pre_header
    _
  $region3: #{tpu_custom_call.1} parent=0 // loop_header
    %s14 = sphi 0, %s18
    %p15 = scmp.ge.s32.totalorder %s14, 6
    %s21 = sphi 0, %s33
    %s22 = sphi 0, %s29
    %s23 = sphi 0, %s21
    %s24 = sphi 0, %s22
    %s25 = sphi 0, %s23
    %s26 = sphi 0, %s24
    %s36 = sphi 0, %s38
    %s39 = sphi 0, %s36
    %s40 = sphi 0, %s39
    %s56 = sphi 0, %s40
    %s62 = sphi 0, %s64
    %s65 = sphi 0, %s62
    %s66 = sphi 0, %s65
    %s82 = sphi 0, %s66
    %s86 = sphi 0, %s86
    %s88 = sphi 0, %s86
    %s89 = sphi 0, %s88
    %s103 = sphi 0, %s89
    %s107 = sphi 0, %s107
    %s109 = sphi 0, %s107
    %s110 = sphi 0, %s109
    %s124 = sphi 0, %s110
    %s128 = sphi 0, %s128
    %s130 = sphi 0, %s128
    %s131 = sphi 0, %s130
    %s145 = sphi 0, %s131
    %s149 = sphi 0, %s149
    %s151 = sphi 0, %s149
    %s152 = sphi 0, %s151
    %s166 = sphi 0, %s152
    %s170 = sphi 0, %s170
    %s172 = sphi 0, %s170
    %s173 = sphi 0, %s172
    %s187 = sphi 0, %s173
    %s191 = sphi 0, %s191
    %s193 = sphi 0, %s191
    %s194 = sphi 0, %s193
    %s208 = sphi 0, %s194
    %s216 = sphi 0, %s218
    %s219 = sphi 0, %s216
    %s220 = sphi 0, %s219
    %s236 = sphi 0, %s220
  $region4: #{tpu_custom_call.1} parent=0 // loop_header_branch
    %17 = sbr.rel (%p15) target = $region8
  $region5: #{tpu_custom_call.1} parent=0 // loop_body
    %s19 = ssub.s32 %s14, 1
    %s20 = ssub.s32 %s14, 2
    %s27 = sadd.s32 1, %s22
    %p28 = scmp.ge.s32.totalorder %s27, 2
    %s29 = scalar_select %p28, 0, %s27
    %s30 = sadd.s32 1, %s21
    %s31 = scalar_select %p28, %s30, %s21
    %p32 = scmp.ge.s32.totalorder %s31, 2
    %s33 = scalar_select %p32, 0, %s31
    %s34 = ssub.s32 %s21, %s33
    %p35 = scmp.eq.s32.totalorder %s34, 0
    %s37 = sadd.s32 %s36, 1
    %s38 = scalar_select %p35, %s36, %s37
    %p41 = pneg %p35
    %p42 = scmp.eq.s32.totalorder %s14, 3
    %p43 = por %p41, %p42
    %p44 = scmp.ne.s32.totalorder %s36, %s39
    %p45 = scmp.eq.s32.totalorder %s14, 0
    %p46 = por %p44, %p45
    %p47 = scmp.ne.s32.totalorder %s36, %s39
    %p48 = scmp.eq.s32.totalorder %s19, 3
    %p49 = por %p47, %p48
    %p50 = scmp.ne.s32.totalorder %s39, %s40
    %p51 = scmp.eq.s32.totalorder %s19, 0
    %p52 = por %p50, %p51
    %p53 = scmp.ne.s32.totalorder %s39, %s40
    %p54 = scmp.eq.s32.totalorder %s20, 3
    %p55 = por %p53, %p54
    %p57 = scmp.ne.s32.totalorder %s40, %s56
    %p58 = scmp.eq.s32.totalorder %s20, 0
    %p59 = por %p57, %p58
    %s60 = ssub.s32 %s22, %s29
    %p61 = scmp.eq.s32.totalorder %s60, 0
    %s63 = sadd.s32 %s62, 1
    %s64 = scalar_select %p61, %s62, %s63
    %p67 = pneg %p61
    %p68 = scmp.eq.s32.totalorder %s14, 3
    %p69 = por %p67, %p68
    %p70 = scmp.ne.s32.totalorder %s62, %s65
    %p71 = scmp.eq.s32.totalorder %s14, 0
    %p72 = por %p70, %p71
    %p73 = scmp.ne.s32.totalorder %s62, %s65
    %p74 = scmp.eq.s32.totalorder %s19, 3
    %p75 = por %p73, %p74
    %p76 = scmp.ne.s32.totalorder %s65, %s66
    %p77 = scmp.eq.s32.totalorder %s19, 0
    %p78 = por %p76, %p77
    %p79 = scmp.ne.s32.totalorder %s65, %s66
    %p80 = scmp.eq.s32.totalorder %s20, 3
    %p81 = por %p79, %p80
    %p83 = scmp.ne.s32.totalorder %s66, %s82
    %p84 = scmp.eq.s32.totalorder %s20, 0
    %p85 = por %p83, %p84
    %s87 = sadd.s32 %s86, 1
    %p90 = scmp.eq.s32.totalorder %s14, 3
    %p91 = scmp.ne.s32.totalorder %s86, %s88
    %p92 = scmp.eq.s32.totalorder %s14, 0
    %p93 = por %p91, %p92
    %p94 = scmp.ne.s32.totalorder %s86, %s88
    %p95 = scmp.eq.s32.totalorder %s19, 3
    %p96 = por %p94, %p95
    %p97 = scmp.ne.s32.totalorder %s88, %s89
    %p98 = scmp.eq.s32.totalorder %s19, 0
    %p99 = por %p97, %p98
    %p100 = scmp.ne.s32.totalorder %s88, %s89
    %p101 = scmp.eq.s32.totalorder %s20, 3
    %p102 = por %p100, %p101
    %p104 = scmp.ne.s32.totalorder %s89, %s103
    %p105 = scmp.eq.s32.totalorder %s20, 0
    %p106 = por %p104, %p105
    %s108 = sadd.s32 %s107, 1
    %p111 = scmp.eq.s32.totalorder %s14, 3
    %p112 = scmp.ne.s32.totalorder %s107, %s109
    %p113 = scmp.eq.s32.totalorder %s14, 0
    %p114 = por %p112, %p113
    %p115 = scmp.ne.s32.totalorder %s107, %s109
    %p116 = scmp.eq.s32.totalorder %s19, 3
    %p117 = por %p115, %p116
    %p118 = scmp.ne.s32.totalorder %s109, %s110
    %p119 = scmp.eq.s32.totalorder %s19, 0
    %p120 = por %p118, %p119
    %p121 = scmp.ne.s32.totalorder %s109, %s110
    %p122 = scmp.eq.s32.totalorder %s20, 3
    %p123 = por %p121, %p122
    %p125 = scmp.ne.s32.totalorder %s110, %s124
    %p126 = scmp.eq.s32.totalorder %s20, 0
    %p127 = por %p125, %p126
    %s129 = sadd.s32 %s128, 1
    %p132 = scmp.eq.s32.totalorder %s14, 3
    %p133 = scmp.ne.s32.totalorder %s128, %s130
    %p134 = scmp.eq.s32.totalorder %s14, 0
    %p135 = por %p133, %p134
    %p136 = scmp.ne.s32.totalorder %s128, %s130
    %p137 = scmp.eq.s32.totalorder %s19, 3
    %p138 = por %p136, %p137
    %p139 = scmp.ne.s32.totalorder %s130, %s131
    %p140 = scmp.eq.s32.totalorder %s19, 0
    %p141 = por %p139, %p140
    %p142 = scmp.ne.s32.totalorder %s130, %s131
    %p143 = scmp.eq.s32.totalorder %s20, 3
    %p144 = por %p142, %p143
    %p146 = scmp.ne.s32.totalorder %s131, %s145
    %p147 = scmp.eq.s32.totalorder %s20, 0
    %p148 = por %p146, %p147
    %s150 = sadd.s32 %s149, 1
    %p153 = scmp.eq.s32.totalorder %s14, 3
    %p154 = scmp.ne.s32.totalorder %s149, %s151
    %p155 = scmp.eq.s32.totalorder %s14, 0
    %p156 = por %p154, %p155
    %p157 = scmp.ne.s32.totalorder %s149, %s151
    %p158 = scmp.eq.s32.totalorder %s19, 3
    %p159 = por %p157, %p158
    %p160 = scmp.ne.s32.totalorder %s151, %s152
    %p161 = scmp.eq.s32.totalorder %s19, 0
    %p162 = por %p160, %p161
    %p163 = scmp.ne.s32.totalorder %s151, %s152
    %p164 = scmp.eq.s32.totalorder %s20, 3
    %p165 = por %p163, %p164
    %p167 = scmp.ne.s32.totalorder %s152, %s166
    %p168 = scmp.eq.s32.totalorder %s20, 0
    %p169 = por %p167, %p168
    %s171 = sadd.s32 %s170, 1
    %p174 = scmp.eq.s32.totalorder %s14, 3
    %p175 = scmp.ne.s32.totalorder %s170, %s172
    %p176 = scmp.eq.s32.totalorder %s14, 0
    %p177 = por %p175, %p176
    %p178 = scmp.ne.s32.totalorder %s170, %s172
    %p179 = scmp.eq.s32.totalorder %s19, 3
    %p180 = por %p178, %p179
    %p181 = scmp.ne.s32.totalorder %s172, %s173
    %p182 = scmp.eq.s32.totalorder %s19, 0
    %p183 = por %p181, %p182
    %p184 = scmp.ne.s32.totalorder %s172, %s173
    %p185 = scmp.eq.s32.totalorder %s20, 3
    %p186 = por %p184, %p185
    %p188 = scmp.ne.s32.totalorder %s173, %s187
    %p189 = scmp.eq.s32.totalorder %s20, 0
    %p190 = por %p188, %p189
    %s192 = sadd.s32 %s191, 1
    %p195 = scmp.eq.s32.totalorder %s14, 3
    %p196 = scmp.ne.s32.totalorder %s191, %s193
    %p197 = scmp.eq.s32.totalorder %s14, 0
    %p198 = por %p196, %p197
    %p199 = scmp.ne.s32.totalorder %s191, %s193
    %p200 = scmp.eq.s32.totalorder %s19, 3
    %p201 = por %p199, %p200
    %p202 = scmp.ne.s32.totalorder %s193, %s194
    %p203 = scmp.eq.s32.totalorder %s19, 0
    %p204 = por %p202, %p203
    %p205 = scmp.ne.s32.totalorder %s193, %s194
    %p206 = scmp.eq.s32.totalorder %s20, 3
    %p207 = por %p205, %p206
    %p209 = scmp.ne.s32.totalorder %s194, %s208
    %p210 = scmp.eq.s32.totalorder %s20, 0
    %p211 = por %p209, %p210
    %s212 = ssub.s32 %s21, %s33
    %s213 = ssub.s32 %s22, %s29
    %s214 = sor.u32 %s212, %s213
    %p215 = scmp.eq.s32.totalorder %s214, 0
    %s217 = sadd.s32 %s216, 1
    %s218 = scalar_select %p215, %s216, %s217
    %p221 = pneg %p215
    %p222 = scmp.eq.s32.totalorder %s14, 3
    %p223 = por %p221, %p222
    %p224 = scmp.ne.s32.totalorder %s216, %s219
    %p225 = scmp.eq.s32.totalorder %s14, 0
    %p226 = por %p224, %p225
    %p227 = scmp.ne.s32.totalorder %s216, %s219
    %p228 = scmp.eq.s32.totalorder %s19, 3
    %p229 = por %p227, %p228
    %p230 = scmp.ne.s32.totalorder %s219, %s220
    %p231 = scmp.eq.s32.totalorder %s19, 0
    %p232 = por %p230, %p231
    %p233 = scmp.ne.s32.totalorder %s219, %s220
    %p234 = scmp.eq.s32.totalorder %s20, 3
    %p235 = por %p233, %p234
    %p237 = scmp.ne.s32.totalorder %s220, %s236
    %p238 = scmp.eq.s32.totalorder %s20, 0
    %p239 = por %p237, %p238
    %p240 = scmp.le.s32.totalorder 1, %s14
    %p241 = scmp.lt.s32.totalorder %s14, 5
    %p242 = pnand %p240, %p241
    %p243 = pneg %p242
    // Predicated region
    $region9: #{tpu_custom_call.1} parent=5 // pred_check
      _
    $region10: #{tpu_custom_call.1} parent=5 // pred_check_branch
      %245 = sbr.rel (%p242) target = $region12
    $region11: #{tpu_custom_call.1} parent=5 // pred_region
      %s246 = ssub.s32 %s14, 1
      // Predicated region
      $region13: #{tpu_custom_call.1} parent=11 // pred_check
        %p247 = pneg %p99
      $region14: #{tpu_custom_call.1} parent=11 // pred_check_branch
        %249 = sbr.rel (%p247) target = $region16
      $region15: #{tpu_custom_call.1} parent=11 // pred_region
        _
      $region16: #{tpu_custom_call.1} parent=11 // pred_fallthru
        _
      // Predicated region
      $region17: #{tpu_custom_call.1} parent=11 // pred_check
        %p250 = pneg %p120
      $region18: #{tpu_custom_call.1} parent=11 // pred_check_branch
        %252 = sbr.rel (%p250) target = $region20
      $region19: #{tpu_custom_call.1} parent=11 // pred_region
        _
      $region20: #{tpu_custom_call.1} parent=11 // pred_fallthru
        _
      // Predicated region
      $region21: #{tpu_custom_call.1} parent=11 // pred_check
        %p253 = pneg %p141
      $region22: #{tpu_custom_call.1} parent=11 // pred_check_branch
        %255 = sbr.rel (%p253) target = $region24
      $region23: #{tpu_custom_call.1} parent=11 // pred_region
        _
      $region24: #{tpu_custom_call.1} parent=11 // pred_fallthru
        _
      // Predicated region
      $region25: #{tpu_custom_call.1} parent=11 // pred_check
        %p256 = pneg %p162
      $region26: #{tpu_custom_call.1} parent=11 // pred_check_branch
        %258 = sbr.rel (%p256) target = $region28
      $region27: #{tpu_custom_call.1} parent=11 // pred_region
        _
      $region28: #{tpu_custom_call.1} parent=11 // pred_fallthru
        _
      // Predicated region
      $region29: #{tpu_custom_call.1} parent=11 // pred_check
        %p259 = pneg %p183
      $region30: #{tpu_custom_call.1} parent=11 // pred_check_branch
        %261 = sbr.rel (%p259) target = $region32
      $region31: #{tpu_custom_call.1} parent=11 // pred_region
        _
      $region32: #{tpu_custom_call.1} parent=11 // pred_fallthru
        _
      // Predicated region
      $region33: #{tpu_custom_call.1} parent=11 // pred_check
        %p262 = pneg %p204
      $region34: #{tpu_custom_call.1} parent=11 // pred_check_branch
        %264 = sbr.rel (%p262) target = $region36
      $region35: #{tpu_custom_call.1} parent=11 // pred_region
        _
      $region36: #{tpu_custom_call.1} parent=11 // pred_fallthru
        _
    $region12: #{tpu_custom_call.1} parent=5 // pred_fallthru
      _
    %p265 = scmp.lt.s32.totalorder %s14, 4
    // Predicated region
    $region37: #{tpu_custom_call.1} parent=5 // pred_check
      %p266 = pneg %p265
    $region38: #{tpu_custom_call.1} parent=5 // pred_check_branch
      %268 = sbr.rel (%p266) target = $region40
    $region39: #{tpu_custom_call.1} parent=5 // pred_region
      // Predicated region
      $region41: #{tpu_custom_call.1} parent=39 // pred_check
        %p269 = pneg %p46
      $region42: #{tpu_custom_call.1} parent=39 // pred_check_branch
        %271 = sbr.rel (%p269) target = $region44
      $region43: #{tpu_custom_call.1} parent=39 // pred_region
        %p272 = scmp.lt.s32.totalorder %s21, 1
        %s273 = scalar_select %p272, %s21, 1
        %s274 = smul.addr %s273, 60
        %s275 = smul.addr %s274, 4
        %s276 = scalar_lea.vmem %s0, %s275
      $region44: #{tpu_custom_call.1} parent=39 // pred_fallthru
        _
      // Predicated region
      $region45: #{tpu_custom_call.1} parent=39 // pred_check
        %p277 = pneg %p72
      $region46: #{tpu_custom_call.1} parent=39 // pred_check_branch
        %279 = sbr.rel (%p277) target = $region48
      $region47: #{tpu_custom_call.1} parent=39 // pred_region
        %p280 = scmp.lt.s32.totalorder %s22, 1
        %s281 = scalar_select %p280, %s22, 1
        %s282 = smul.addr %s281, 30
        %s283 = smul.addr %s282, 8
        %s284 = scalar_lea.vmem %s1, %s283
      $region48: #{tpu_custom_call.1} parent=39 // pred_fallthru
        _
    $region40: #{tpu_custom_call.1} parent=5 // pred_fallthru
      _
    %p285 = scmp.le.s32.totalorder 1, %s14
    %p286 = scmp.lt.s32.totalorder %s14, 5
    %p287 = pnand %p285, %p286
    %p288 = pneg %p287
    // Predicated region
    $region49: #{tpu_custom_call.1} parent=5 // pred_check
      _
    $region50: #{tpu_custom_call.1} parent=5 // pred_check_branch
      %290 = sbr.rel (%p287) target = $region52
    $region51: #{tpu_custom_call.1} parent=5 // pred_region
      %s291 = ssub.s32 %s14, 1
      %p292 = scmp.lt.s32.totalorder %s23, 1
      %s293 = scalar_select %p292, %s23, 1
      %s294 = smul.addr %s293, 60
      %s295 = smul.addr %s294, 4
      %s296 = scalar_lea.vmem %s0, %s295
      %p297 = pneg %p52
      %p298 = pneg %p49
      %p299 = scmp.lt.s32.totalorder %s24, 1
      %s300 = scalar_select %p299, %s24, 1
      %s301 = smul.addr %s300, 30
      %s302 = smul.addr %s301, 8
      %s303 = scalar_lea.vmem %s1, %s302
      %p304 = pneg %p78
      %p305 = pneg %p75
      %p306 = pneg %p99
      %p307 = pneg %p96
      %p308 = pneg %p120
      %p309 = pneg %p117
      %p310 = pneg %p141
      %p311 = pneg %p138
      %p312 = pneg %p162
      %p313 = pneg %p159
      %p314 = pneg %p183
      %p315 = pneg %p180
      %p316 = pneg %p204
      %p317 = pneg %p201
      %p318 = pneg %p232
      %p319 = pneg %p229
      %s320 = smul.u32 24, %s24
      %p321 = scmp.lt.s32.totalorder %s23, 1
      %s322 = scalar_select %p321, %s23, 1
      %p323 = scmp.lt.s32.totalorder %s320, 47
      %s324 = scalar_select %p323, %s320, 47
      %s325 = smul.addr %s322, 48
      %s326 = sadd.s32 %s324, %s325
      %s327 = smul.addr %s326, 4
      %s328 = scalar_lea.vmem %s8, %s327
      %p329 = scmp.lt.s32.totalorder %s23, 1
      %s330 = scalar_select %p329, %s23, 1
      %s331 = smul.addr %s330, 60
      %s332 = smul.addr %s331, 4
      %s333 = scalar_lea.vmem %s0, %s332
      %p334 = scmp.lt.s32.totalorder %s24, 1
      %s335 = scalar_select %p334, %s24, 1
      %s336 = smul.addr %s335, 30
      %s337 = smul.addr %s336, 8
      %s338 = scalar_lea.vmem %s1, %s337
      %s339 = smul.u32 24, %s24
      %p340 = scmp.lt.s32.totalorder %s23, 1
      %s341 = scalar_select %p340, %s23, 1
      %p342 = scmp.lt.s32.totalorder %s339, 47
      %s343 = scalar_select %p342, %s339, 47
      %s344 = smul.addr %s341, 48
      %s345 = sadd.s32 %s343, %s344
      %s346 = smul.addr %s345, 4
      %s347 = scalar_lea.vmem %s8, %s346
      %s348 = smul.u32 24, %s24
      %s350 = smul.u32 %s24, 192
      %s351 = sshra.s32 %s350, 3
      %s352 = sand.u32 %s350, 7
      %s353 = smul.addr %s351, 4
      %s354 = scalar_lea.vmem %s333, %s353
      %v355 = vld [vmem:[%s354] sm:$0xf]
      %v356 = vld [vmem:[%s354 + $0x4] sm:$0xf]
      %v357 = vld [vmem:[%s354 + $0x8] sm:$0xf]
      %v358 = vld [vmem:[%s354 + $0xc] sm:$0xf]
      %v359 = vld [vmem:[%s354 + $0x10] sm:$0xf]
      %v360 = vld [vmem:[%s354 + $0x14] sm:$0xf]
      %v361 = vld [vmem:[%s354 + $0x18] sm:$0xf]
      %v362 = vld [vmem:[%s354 + $0x1c] sm:$0xf]
      %v363 = vld [vmem:[%s354 + $0x20] sm:$0xf]
      %v364 = vld [vmem:[%s354 + $0x24] sm:$0xf]
      %v365 = vld [vmem:[%s354 + $0x28] sm:$0xf]
      %v366 = vld [vmem:[%s354 + $0x2c] sm:$0xf]
      %v367 = vld [vmem:[%s354 + $0x30] sm:$0xf]
      %v368 = vld [vmem:[%s354 + $0x34] sm:$0xf]
      %v369 = vld [vmem:[%s354 + $0x38] sm:$0xf]
      %v370 = vld [vmem:[%s354 + $0x3c] sm:$0xf]
      %v371 = vld [vmem:[%s354 + $0x40] sm:$0xf]
      %v372 = vld [vmem:[%s354 + $0x44] sm:$0xf]
      %v373 = vld [vmem:[%s354 + $0x48] sm:$0xf]
      %v374 = vld [vmem:[%s354 + $0x4c] sm:$0xf]
      %v375 = vld [vmem:[%s354 + $0x50] sm:$0xf]
      %v376 = vld [vmem:[%s354 + $0x54] sm:$0xf]
      %v377 = vld [vmem:[%s354 + $0x58] sm:$0xf]
      %v378 = vld [vmem:[%s354 + $0x5c] sm:$0xf]
      %v379 = vld [vmem:[%s354 + $0x60] sm:$0xf]
      %v380 = vld [vmem:[%s354 + $0x64] sm:$0xf]
      %v381 = vld [vmem:[%s354 + $0x68] sm:$0xf]
      %v382 = vld [vmem:[%s354 + $0x6c] sm:$0xf]
      %v383 = vld [vmem:[%s354 + $0x70] sm:$0xf]
      %v384 = vld [vmem:[%s354 + $0x74] sm:$0xf]
      %vm385 = vcmask 27648
      %386 = vst.msk [vmem:[#allocation2] sm:$0xf] %vm385, %v355
      %387 = vst.msk [vmem:[#allocation2 + $0x4] sm:$0xf] %vm385, %v356
      %388 = vst.msk [vmem:[#allocation2 + $0x8] sm:$0xf] %vm385, %v357
      %389 = vst.msk [vmem:[#allocation2 + $0xc] sm:$0xf] %vm385, %v358
      %390 = vst.msk [vmem:[#allocation2 + $0x10] sm:$0xf] %vm385, %v359
      %391 = vst.msk [vmem:[#allocation2 + $0x14] sm:$0xf] %vm385, %v360
      %392 = vst.msk [vmem:[#allocation2 + $0x18] sm:$0xf] %vm385, %v361
      %393 = vst.msk [vmem:[#allocation2 + $0x1c] sm:$0xf] %vm385, %v362
      %394 = vst.msk [vmem:[#allocation2 + $0x20] sm:$0xf] %vm385, %v363
      %395 = vst.msk [vmem:[#allocation2 + $0x24] sm:$0xf] %vm385, %v364
      %396 = vst.msk [vmem:[#allocation2 + $0x28] sm:$0xf] %vm385, %v365
      %397 = vst.msk [vmem:[#allocation2 + $0x2c] sm:$0xf] %vm385, %v366
      %398 = vst.msk [vmem:[#allocation2 + $0x30] sm:$0xf] %vm385, %v367
      %399 = vst.msk [vmem:[#allocation2 + $0x34] sm:$0xf] %vm385, %v368
      %400 = vst.msk [vmem:[#allocation2 + $0x38] sm:$0xf] %vm385, %v369
      %401 = vst.msk [vmem:[#allocation2 + $0x3c] sm:$0xf] %vm385, %v370
      %402 = vst.msk [vmem:[#allocation2 + $0x40] sm:$0xf] %vm385, %v371
      %403 = vst.msk [vmem:[#allocation2 + $0x44] sm:$0xf] %vm385, %v372
      %404 = vst.msk [vmem:[#allocation2 + $0x48] sm:$0xf] %vm385, %v373
      %405 = vst.msk [vmem:[#allocation2 + $0x4c] sm:$0xf] %vm385, %v374
      %406 = vst.msk [vmem:[#allocation2 + $0x50] sm:$0xf] %vm385, %v375
      %407 = vst.msk [vmem:[#allocation2 + $0x54] sm:$0xf] %vm385, %v376
      %408 = vst.msk [vmem:[#allocation2 + $0x58] sm:$0xf] %vm385, %v377
      %409 = vst.msk [vmem:[#allocation2 + $0x5c] sm:$0xf] %vm385, %v378
      %410 = vst.msk [vmem:[#allocation2 + $0x60] sm:$0xf] %vm385, %v379
      %411 = vst.msk [vmem:[#allocation2 + $0x64] sm:$0xf] %vm385, %v380
      %412 = vst.msk [vmem:[#allocation2 + $0x68] sm:$0xf] %vm385, %v381
      %413 = vst.msk [vmem:[#allocation2 + $0x6c] sm:$0xf] %vm385, %v382
      %414 = vst.msk [vmem:[#allocation2 + $0x70] sm:$0xf] %vm385, %v383
      %415 = vst.msk [vmem:[#allocation2 + $0x74] sm:$0xf] %vm385, %v384
      %s416 = sadd.s32 %s350, 24
      %s417 = sshra.s32 %s416, 3
      %s418 = sand.u32 %s416, 7
      %s419 = smul.addr %s417, 4
      %s420 = scalar_lea.vmem %s333, %s419
      %v421 = vld [vmem:[%s420] sm:$0xf]
      %v422 = vld [vmem:[%s420 + $0x4] sm:$0xf]
      %v423 = vld [vmem:[%s420 + $0x8] sm:$0xf]
      %v424 = vld [vmem:[%s420 + $0xc] sm:$0xf]
      %v425 = vld [vmem:[%s420 + $0x10] sm:$0xf]
      %v426 = vld [vmem:[%s420 + $0x14] sm:$0xf]
      %v427 = vld [vmem:[%s420 + $0x18] sm:$0xf]
      %v428 = vld [vmem:[%s420 + $0x1c] sm:$0xf]
      %v429 = vld [vmem:[%s420 + $0x20] sm:$0xf]
      %v430 = vld [vmem:[%s420 + $0x24] sm:$0xf]
      %v431 = vld [vmem:[%s420 + $0x28] sm:$0xf]
      %v432 = vld [vmem:[%s420 + $0x2c] sm:$0xf]
      %v433 = vld [vmem:[%s420 + $0x30] sm:$0xf]
      %v434 = vld [vmem:[%s420 + $0x34] sm:$0xf]
      %v435 = vld [vmem:[%s420 + $0x38] sm:$0xf]
      %v436 = vld [vmem:[%s420 + $0x3c] sm:$0xf]
      %v437 = vld [vmem:[%s420 + $0x40] sm:$0xf]
      %v438 = vld [vmem:[%s420 + $0x44] sm:$0xf]
      %v439 = vld [vmem:[%s420 + $0x48] sm:$0xf]
      %v440 = vld [vmem:[%s420 + $0x4c] sm:$0xf]
      %v441 = vld [vmem:[%s420 + $0x50] sm:$0xf]
      %v442 = vld [vmem:[%s420 + $0x54] sm:$0xf]
      %v443 = vld [vmem:[%s420 + $0x58] sm:$0xf]
      %v444 = vld [vmem:[%s420 + $0x5c] sm:$0xf]
      %v445 = vld [vmem:[%s420 + $0x60] sm:$0xf]
      %v446 = vld [vmem:[%s420 + $0x64] sm:$0xf]
      %v447 = vld [vmem:[%s420 + $0x68] sm:$0xf]
      %v448 = vld [vmem:[%s420 + $0x6c] sm:$0xf]
      %v449 = vld [vmem:[%s420 + $0x70] sm:$0xf]
      %v450 = vld [vmem:[%s420 + $0x74] sm:$0xf]
      %481 = vrot.lane.b32.xlu0 %v421, 4
      %v482 = vpop.permute.xlu0 %481
      %483 = vrot.lane.b32.xlu0 %v422, 4
      %v484 = vpop.permute.xlu0 %483
      %485 = vrot.lane.b32.xlu0 %v423, 4
      %v486 = vpop.permute.xlu0 %485
      %487 = vrot.lane.b32.xlu0 %v424, 4
      %v488 = vpop.permute.xlu0 %487
      %489 = vrot.lane.b32.xlu0 %v425, 4
      %v490 = vpop.permute.xlu0 %489
      %491 = vrot.lane.b32.xlu0 %v426, 4
      %v492 = vpop.permute.xlu0 %491
      %493 = vrot.lane.b32.xlu0 %v427, 4
      %v494 = vpop.permute.xlu0 %493
      %495 = vrot.lane.b32.xlu0 %v428, 4
      %v496 = vpop.permute.xlu0 %495
      %497 = vrot.lane.b32.xlu0 %v429, 4
      %v498 = vpop.permute.xlu0 %497
      %499 = vrot.lane.b32.xlu0 %v430, 4
      %v500 = vpop.permute.xlu0 %499
      %501 = vrot.lane.b32.xlu0 %v431, 4
      %v502 = vpop.permute.xlu0 %501
      %503 = vrot.lane.b32.xlu0 %v432, 4
      %v504 = vpop.permute.xlu0 %503
      %505 = vrot.lane.b32.xlu0 %v433, 4
      %v506 = vpop.permute.xlu0 %505
      %507 = vrot.lane.b32.xlu0 %v434, 4
      %v508 = vpop.permute.xlu0 %507
      %509 = vrot.lane.b32.xlu0 %v435, 4
      %v510 = vpop.permute.xlu0 %509
      %511 = vrot.lane.b32.xlu0 %v436, 4
      %v512 = vpop.permute.xlu0 %511
      %513 = vrot.lane.b32.xlu0 %v437, 4
      %v514 = vpop.permute.xlu0 %513
      %515 = vrot.lane.b32.xlu0 %v438, 4
      %v516 = vpop.permute.xlu0 %515
      %517 = vrot.lane.b32.xlu0 %v439, 4
      %v518 = vpop.permute.xlu0 %517
      %519 = vrot.lane.b32.xlu0 %v440, 4
      %v520 = vpop.permute.xlu0 %519
      %521 = vrot.lane.b32.xlu0 %v441, 4
      %v522 = vpop.permute.xlu0 %521
      %523 = vrot.lane.b32.xlu0 %v442, 4
      %v524 = vpop.permute.xlu0 %523
      %525 = vrot.lane.b32.xlu0 %v443, 4
      %v526 = vpop.permute.xlu0 %525
      %527 = vrot.lane.b32.xlu0 %v444, 4
      %v528 = vpop.permute.xlu0 %527
      %529 = vrot.lane.b32.xlu0 %v445, 4
      %v530 = vpop.permute.xlu0 %529
      %531 = vrot.lane.b32.xlu0 %v446, 4
      %v532 = vpop.permute.xlu0 %531
      %533 = vrot.lane.b32.xlu0 %v447, 4
      %v534 = vpop.permute.xlu0 %533
      %535 = vrot.lane.b32.xlu0 %v448, 4
      %v536 = vpop.permute.xlu0 %535
      %537 = vrot.lane.b32.xlu0 %v449, 4
      %v538 = vpop.permute.xlu0 %537
      %539 = vrot.lane.b32.xlu0 %v450, 4
      %v540 = vpop.permute.xlu0 %539
      %vm571 = vcmask 60448
      %572 = vst.msk [vmem:[#allocation2] sm:$0xf] %vm571, %v482
      %573 = vst.msk [vmem:[#allocation2 + $0x4] sm:$0xf] %vm571, %v484
      %574 = vst.msk [vmem:[#allocation2 + $0x8] sm:$0xf] %vm571, %v486
      %575 = vst.msk [vmem:[#allocation2 + $0xc] sm:$0xf] %vm571, %v488
      %576 = vst.msk [vmem:[#allocation2 + $0x10] sm:$0xf] %vm571, %v490
      %577 = vst.msk [vmem:[#allocation2 + $0x14] sm:$0xf] %vm571, %v492
      %578 = vst.msk [vmem:[#allocation2 + $0x18] sm:$0xf] %vm571, %v494
      %579 = vst.msk [vmem:[#allocation2 + $0x1c] sm:$0xf] %vm571, %v496
      %580 = vst.msk [vmem:[#allocation2 + $0x20] sm:$0xf] %vm571, %v498
      %581 = vst.msk [vmem:[#allocation2 + $0x24] sm:$0xf] %vm571, %v500
      %582 = vst.msk [vmem:[#allocation2 + $0x28] sm:$0xf] %vm571, %v502
      %583 = vst.msk [vmem:[#allocation2 + $0x2c] sm:$0xf] %vm571, %v504
      %584 = vst.msk [vmem:[#allocation2 + $0x30] sm:$0xf] %vm571, %v506
      %585 = vst.msk [vmem:[#allocation2 + $0x34] sm:$0xf] %vm571, %v508
      %586 = vst.msk [vmem:[#allocation2 + $0x38] sm:$0xf] %vm571, %v510
      %587 = vst.msk [vmem:[#allocation2 + $0x3c] sm:$0xf] %vm571, %v512
      %588 = vst.msk [vmem:[#allocation2 + $0x40] sm:$0xf] %vm571, %v514
      %589 = vst.msk [vmem:[#allocation2 + $0x44] sm:$0xf] %vm571, %v516
      %590 = vst.msk [vmem:[#allocation2 + $0x48] sm:$0xf] %vm571, %v518
      %591 = vst.msk [vmem:[#allocation2 + $0x4c] sm:$0xf] %vm571, %v520
      %592 = vst.msk [vmem:[#allocation2 + $0x50] sm:$0xf] %vm571, %v522
      %593 = vst.msk [vmem:[#allocation2 + $0x54] sm:$0xf] %vm571, %v524
      %594 = vst.msk [vmem:[#allocation2 + $0x58] sm:$0xf] %vm571, %v526
      %595 = vst.msk [vmem:[#allocation2 + $0x5c] sm:$0xf] %vm571, %v528
      %596 = vst.msk [vmem:[#allocation2 + $0x60] sm:$0xf] %vm571, %v530
      %597 = vst.msk [vmem:[#allocation2 + $0x64] sm:$0xf] %vm571, %v532
      %598 = vst.msk [vmem:[#allocation2 + $0x68] sm:$0xf] %vm571, %v534
      %599 = vst.msk [vmem:[#allocation2 + $0x6c] sm:$0xf] %vm571, %v536
      %600 = vst.msk [vmem:[#allocation2 + $0x70] sm:$0xf] %vm571, %v538
      %601 = vst.msk [vmem:[#allocation2 + $0x74] sm:$0xf] %vm571, %v540
      %s602 = sadd.s32 %s350, 48
      %s603 = sshra.s32 %s602, 3
      %s604 = sand.u32 %s602, 7
      %s605 = smul.addr %s603, 4
      %s606 = scalar_lea.vmem %s333, %s605
      %v607 = vld [vmem:[%s606] sm:$0xf]
      %v608 = vld [vmem:[%s606 + $0x4] sm:$0xf]
      %v609 = vld [vmem:[%s606 + $0x8] sm:$0xf]
      %v610 = vld [vmem:[%s606 + $0xc] sm:$0xf]
      %v611 = vld [vmem:[%s606 + $0x10] sm:$0xf]
      %v612 = vld [vmem:[%s606 + $0x14] sm:$0xf]
      %v613 = vld [vmem:[%s606 + $0x18] sm:$0xf]
      %v614 = vld [vmem:[%s606 + $0x1c] sm:$0xf]
      %v615 = vld [vmem:[%s606 + $0x20] sm:$0xf]
      %v616 = vld [vmem:[%s606 + $0x24] sm:$0xf]
      %v617 = vld [vmem:[%s606 + $0x28] sm:$0xf]
      %v618 = vld [vmem:[%s606 + $0x2c] sm:$0xf]
      %v619 = vld [vmem:[%s606 + $0x30] sm:$0xf]
      %v620 = vld [vmem:[%s606 + $0x34] sm:$0xf]
      %v621 = vld [vmem:[%s606 + $0x38] sm:$0xf]
      %v622 = vld [vmem:[%s606 + $0x3c] sm:$0xf]
      %v623 = vld [vmem:[%s606 + $0x40] sm:$0xf]
      %v624 = vld [vmem:[%s606 + $0x44] sm:$0xf]
      %v625 = vld [vmem:[%s606 + $0x48] sm:$0xf]
      %v626 = vld [vmem:[%s606 + $0x4c] sm:$0xf]
      %v627 = vld [vmem:[%s606 + $0x50] sm:$0xf]
      %v628 = vld [vmem:[%s606 + $0x54] sm:$0xf]
      %v629 = vld [vmem:[%s606 + $0x58] sm:$0xf]
      %v630 = vld [vmem:[%s606 + $0x5c] sm:$0xf]
      %v631 = vld [vmem:[%s606 + $0x60] sm:$0xf]
      %v632 = vld [vmem:[%s606 + $0x64] sm:$0xf]
      %v633 = vld [vmem:[%s606 + $0x68] sm:$0xf]
      %v634 = vld [vmem:[%s606 + $0x6c] sm:$0xf]
      %v635 = vld [vmem:[%s606 + $0x70] sm:$0xf]
      %v636 = vld [vmem:[%s606 + $0x74] sm:$0xf]
      %667 = vrot.lane.b32.xlu0 %v607, 8
      %v668 = vpop.permute.xlu0 %667
      %669 = vrot.lane.b32.xlu0 %v608, 8
      %v670 = vpop.permute.xlu0 %669
      %671 = vrot.lane.b32.xlu0 %v609, 8
      %v672 = vpop.permute.xlu0 %671
      %673 = vrot.lane.b32.xlu0 %v610, 8
      %v674 = vpop.permute.xlu0 %673
      %675 = vrot.lane.b32.xlu0 %v611, 8
      %v676 = vpop.permute.xlu0 %675
      %677 = vrot.lane.b32.xlu0 %v612, 8
      %v678 = vpop.permute.xlu0 %677
      %679 = vrot.lane.b32.xlu0 %v613, 8
      %v680 = vpop.permute.xlu0 %679
      %681 = vrot.lane.b32.xlu0 %v614, 8
      %v682 = vpop.permute.xlu0 %681
      %683 = vrot.lane.b32.xlu0 %v615, 8
      %v684 = vpop.permute.xlu0 %683
      %685 = vrot.lane.b32.xlu0 %v616, 8
      %v686 = vpop.permute.xlu0 %685
      %687 = vrot.lane.b32.xlu0 %v617, 8
      %v688 = vpop.permute.xlu0 %687
      %689 = vrot.lane.b32.xlu0 %v618, 8
      %v690 = vpop.permute.xlu0 %689
      %691 = vrot.lane.b32.xlu0 %v619, 8
      %v692 = vpop.permute.xlu0 %691
      %693 = vrot.lane.b32.xlu0 %v620, 8
      %v694 = vpop.permute.xlu0 %693
      %695 = vrot.lane.b32.xlu0 %v621, 8
      %v696 = vpop.permute.xlu0 %695
      %697 = vrot.lane.b32.xlu0 %v622, 8
      %v698 = vpop.permute.xlu0 %697
      %699 = vrot.lane.b32.xlu0 %v623, 8
      %v700 = vpop.permute.xlu0 %699
      %701 = vrot.lane.b32.xlu0 %v624, 8
      %v702 = vpop.permute.xlu0 %701
      %703 = vrot.lane.b32.xlu0 %v625, 8
      %v704 = vpop.permute.xlu0 %703
      %705 = vrot.lane.b32.xlu0 %v626, 8
      %v706 = vpop.permute.xlu0 %705
      %707 = vrot.lane.b32.xlu0 %v627, 8
      %v708 = vpop.permute.xlu0 %707
      %709 = vrot.lane.b32.xlu0 %v628, 8
      %v710 = vpop.permute.xlu0 %709
      %711 = vrot.lane.b32.xlu0 %v629, 8
      %v712 = vpop.permute.xlu0 %711
      %713 = vrot.lane.b32.xlu0 %v630, 8
      %v714 = vpop.permute.xlu0 %713
      %715 = vrot.lane.b32.xlu0 %v631, 8
      %v716 = vpop.permute.xlu0 %715
      %717 = vrot.lane.b32.xlu0 %v632, 8
      %v718 = vpop.permute.xlu0 %717
      %719 = vrot.lane.b32.xlu0 %v633, 8
      %v720 = vpop.permute.xlu0 %719
      %721 = vrot.lane.b32.xlu0 %v634, 8
      %v722 = vpop.permute.xlu0 %721
      %723 = vrot.lane.b32.xlu0 %v635, 8
      %v724 = vpop.permute.xlu0 %723
      %725 = vrot.lane.b32.xlu0 %v636, 8
      %v726 = vpop.permute.xlu0 %725
      %vm757 = vcmask 93248
      %758 = vst.msk [vmem:[#allocation2] sm:$0xf] %vm757, %v668
      %759 = vst.msk [vmem:[#allocation2 + $0x4] sm:$0xf] %vm757, %v670
      %760 = vst.msk [vmem:[#allocation2 + $0x8] sm:$0xf] %vm757, %v672
      %761 = vst.msk [vmem:[#allocation2 + $0xc] sm:$0xf] %vm757, %v674
      %762 = vst.msk [vmem:[#allocation2 + $0x10] sm:$0xf] %vm757, %v676
      %763 = vst.msk [vmem:[#allocation2 + $0x14] sm:$0xf] %vm757, %v678
      %764 = vst.msk [vmem:[#allocation2 + $0x18] sm:$0xf] %vm757, %v680
      %765 = vst.msk [vmem:[#allocation2 + $0x1c] sm:$0xf] %vm757, %v682
      %766 = vst.msk [vmem:[#allocation2 + $0x20] sm:$0xf] %vm757, %v684
      %767 = vst.msk [vmem:[#allocation2 + $0x24] sm:$0xf] %vm757, %v686
      %768 = vst.msk [vmem:[#allocation2 + $0x28] sm:$0xf] %vm757, %v688
      %769 = vst.msk [vmem:[#allocation2 + $0x2c] sm:$0xf] %vm757, %v690
      %770 = vst.msk [vmem:[#allocation2 + $0x30] sm:$0xf] %vm757, %v692
      %771 = vst.msk [vmem:[#allocation2 + $0x34] sm:$0xf] %vm757, %v694
      %772 = vst.msk [vmem:[#allocation2 + $0x38] sm:$0xf] %vm757, %v696
      %773 = vst.msk [vmem:[#allocation2 + $0x3c] sm:$0xf] %vm757, %v698
      %774 = vst.msk [vmem:[#allocation2 + $0x40] sm:$0xf] %vm757, %v700
      %775 = vst.msk [vmem:[#allocation2 + $0x44] sm:$0xf] %vm757, %v702
      %776 = vst.msk [vmem:[#allocation2 + $0x48] sm:$0xf] %vm757, %v704
      %777 = vst.msk [vmem:[#allocation2 + $0x4c] sm:$0xf] %vm757, %v706
      %778 = vst.msk [vmem:[#allocation2 + $0x50] sm:$0xf] %vm757, %v708
      %779 = vst.msk [vmem:[#allocation2 + $0x54] sm:$0xf] %vm757, %v710
      %780 = vst.msk [vmem:[#allocation2 + $0x58] sm:$0xf] %vm757, %v712
      %781 = vst.msk [vmem:[#allocation2 + $0x5c] sm:$0xf] %vm757, %v714
      %782 = vst.msk [vmem:[#allocation2 + $0x60] sm:$0xf] %vm757, %v716
      %783 = vst.msk [vmem:[#allocation2 + $0x64] sm:$0xf] %vm757, %v718
      %784 = vst.msk [vmem:[#allocation2 + $0x68] sm:$0xf] %vm757, %v720
      %785 = vst.msk [vmem:[#allocation2 + $0x6c] sm:$0xf] %vm757, %v722
      %786 = vst.msk [vmem:[#allocation2 + $0x70] sm:$0xf] %vm757, %v724
      %787 = vst.msk [vmem:[#allocation2 + $0x74] sm:$0xf] %vm757, %v726
      %v788 = vld [vmem:[#allocation2] sm:$0xf]
      %v789 = vld [vmem:[#allocation2 + $0x4] sm:$0xf]
      %v790 = vld [vmem:[#allocation2 + $0x8] sm:$0xf]
      %v791 = vld [vmem:[#allocation2 + $0xc] sm:$0xf]
      %v792 = vld [vmem:[#allocation2 + $0x10] sm:$0xf]
      %v793 = vld [vmem:[#allocation2 + $0x14] sm:$0xf]
      %v794 = vld [vmem:[#allocation2 + $0x18] sm:$0xf]
      %v795 = vld [vmem:[#allocation2 + $0x1c] sm:$0xf]
      %v796 = vld [vmem:[#allocation2 + $0x20] sm:$0xf]
      %v797 = vld [vmem:[#allocation2 + $0x24] sm:$0xf]
      %v798 = vld [vmem:[#allocation2 + $0x28] sm:$0xf]
      %v799 = vld [vmem:[#allocation2 + $0x2c] sm:$0xf]
      %v800 = vld [vmem:[#allocation2 + $0x30] sm:$0xf]
      %v801 = vld [vmem:[#allocation2 + $0x34] sm:$0xf]
      %v802 = vld [vmem:[#allocation2 + $0x38] sm:$0xf]
      %v803 = vld [vmem:[#allocation2 + $0x3c] sm:$0xf]
      %v804 = vld [vmem:[#allocation2 + $0x40] sm:$0xf]
      %v805 = vld [vmem:[#allocation2 + $0x44] sm:$0xf]
      %v806 = vld [vmem:[#allocation2 + $0x48] sm:$0xf]
      %v807 = vld [vmem:[#allocation2 + $0x4c] sm:$0xf]
      %v808 = vld [vmem:[#allocation2 + $0x50] sm:$0xf]
      %v809 = vld [vmem:[#allocation2 + $0x54] sm:$0xf]
      %v810 = vld [vmem:[#allocation2 + $0x58] sm:$0xf]
      %v811 = vld [vmem:[#allocation2 + $0x5c] sm:$0xf]
      %v812 = vld [vmem:[#allocation2 + $0x60] sm:$0xf]
      %v813 = vld [vmem:[#allocation2 + $0x64] sm:$0xf]
      %v814 = vld [vmem:[#allocation2 + $0x68] sm:$0xf]
      %v815 = vld [vmem:[#allocation2 + $0x6c] sm:$0xf]
      %v816 = vld [vmem:[#allocation2 + $0x70] sm:$0xf]
      %v817 = vld [vmem:[#allocation2 + $0x74] sm:$0xf]
      %v818 = vld [vmem:[%s2] sm:$0xf]
      %v819 = vld [vmem:[%s2 + $0x4] sm:$0x3]
      %v850 = vunpack.c.l.b16 %v788
      %v851 = vunpack.c.l.b16 %v789
      %v852 = vunpack.c.l.b16 %v790
      %v853 = vunpack.c.l.b16 %v791
      %v854 = vunpack.c.l.b16 %v792
      %v855 = vunpack.c.l.b16 %v793
      %v856 = vunpack.c.l.b16 %v794
      %v857 = vunpack.c.l.b16 %v795
      %v858 = vunpack.c.l.b16 %v796
      %v859 = vunpack.c.l.b16 %v797
      %v860 = vunpack.c.l.b16 %v798
      %v861 = vunpack.c.l.b16 %v799
      %v862 = vunpack.c.l.b16 %v800
      %v863 = vunpack.c.l.b16 %v801
      %v864 = vunpack.c.l.b16 %v802
      %v865 = vunpack.c.l.b16 %v803
      %v866 = vunpack.c.l.b16 %v804
      %v867 = vunpack.c.l.b16 %v805
      %v868 = vunpack.c.l.b16 %v806
      %v869 = vunpack.c.l.b16 %v807
      %v870 = vunpack.c.l.b16 %v808
      %v871 = vunpack.c.l.b16 %v809
      %v872 = vunpack.c.l.b16 %v810
      %v873 = vunpack.c.l.b16 %v811
      %v874 = vunpack.c.l.b16 %v812
      %v875 = vunpack.c.l.b16 %v813
      %v876 = vunpack.c.l.b16 %v814
      %v877 = vunpack.c.l.b16 %v815
      %v878 = vunpack.c.l.b16 %v816
      %v879 = vunpack.c.l.b16 %v817
      %v880 = vpack.c.b16 %v851, %v850
      %v881 = vpack.c.b16 %v853, %v852
      %v882 = vpack.c.b16 %v855, %v854
      %v883 = vpack.c.b16 %v857, %v856
      %v884 = vpack.c.b16 %v859, %v858
      %v885 = vpack.c.b16 %v861, %v860
      %v886 = vpack.c.b16 %v863, %v862
      %v887 = vpack.c.b16 %v865, %v864
      %v888 = vpack.c.b16 %v867, %v866
      %v889 = vpack.c.b16 %v869, %v868
      %v890 = vpack.c.b16 %v871, %v870
      %v891 = vpack.c.b16 %v873, %v872
      %v892 = vpack.c.b16 %v875, %v874
      %v893 = vpack.c.b16 %v877, %v876
      %v894 = vpack.c.b16 %v879, %v878
      %v897 = vunpack.c.l.b16 %v818
      %v898 = vunpack.c.l.b16 %v819
      %v899 = vpack.c.b16 %v898, %v897
      %vm900 = vcmask 97280
      %v902 = vsel %vm900, %v880, 0
      %v905 = vsel %vm900, %v881, 0
      %v908 = vsel %vm900, %v882, 0
      %v911 = vsel %vm900, %v883, 0
      %v914 = vsel %vm900, %v884, 0
      %v917 = vsel %vm900, %v885, 0
      %v920 = vsel %vm900, %v886, 0
      %v923 = vsel %vm900, %v887, 0
      %v926 = vsel %vm900, %v888, 0
      %v929 = vsel %vm900, %v889, 0
      %v932 = vsel %vm900, %v890, 0
      %v935 = vsel %vm900, %v891, 0
      %v938 = vsel %vm900, %v892, 0
      %v941 = vsel %vm900, %v893, 0
      %v944 = vsel %vm900, %v894, 0
      %vm946 = vcmask 1045504
      %v948 = vsel %vm946, %v899, 0
      %950 = vmatpush.bf16.msra.mxu0 0
      %951 = vmatpush.bf16.msra.mxu0 0
      %952 = vmatpush.bf16.msra.mxu0 0
      %953 = vmatpush.bf16.msra.mxu0 0
      %954 = vmatpush.bf16.msra.mxu0 0
      %955 = vmatpush.bf16.msra.mxu0 0
      %956 = vmatpush.bf16.msra.mxu0 0
      %957 = vmatpush.bf16.msra.mxu0 %v948
      %958 = vmatmul.bf16.gmra.mxu0 %v902
      %v959 = vpop.f32.mrf.mxu0
      %v960 = vadd.f32 0.0, %v959
      %v961 = vpop.f32.mrf.mxu0
      %v962 = vadd.f32 0.0, %v961
      %963 = vmatmul.bf16.gmra.mxu0 %v905
      %v964 = vpop.f32.mrf.mxu0
      %v965 = vadd.f32 0.0, %v964
      %v966 = vpop.f32.mrf.mxu0
      %v967 = vadd.f32 0.0, %v966
      %968 = vmatmul.bf16.gmra.mxu0 %v908
      %v969 = vpop.f32.mrf.mxu0
      %v970 = vadd.f32 0.0, %v969
      %v971 = vpop.f32.mrf.mxu0
      %v972 = vadd.f32 0.0, %v971
      %973 = vmatmul.bf16.gmra.mxu0 %v911
      %v974 = vpop.f32.mrf.mxu0
      %v975 = vadd.f32 0.0, %v974
      %v976 = vpop.f32.mrf.mxu0
      %v977 = vadd.f32 0.0, %v976
      %978 = vmatmul.bf16.gmra.mxu0 %v914
      %v979 = vpop.f32.mrf.mxu0
      %v980 = vadd.f32 0.0, %v979
      %v981 = vpop.f32.mrf.mxu0
      %v982 = vadd.f32 0.0, %v981
      %983 = vmatmul.bf16.gmra.mxu0 %v917
      %v984 = vpop.f32.mrf.mxu0
      %v985 = vadd.f32 0.0, %v984
      %v986 = vpop.f32.mrf.mxu0
      %v987 = vadd.f32 0.0, %v986
      %988 = vmatmul.bf16.gmra.mxu0 %v920
      %v989 = vpop.f32.mrf.mxu0
      %v990 = vadd.f32 0.0, %v989
      %v991 = vpop.f32.mrf.mxu0
      %v992 = vadd.f32 0.0, %v991
      %993 = vmatmul.bf16.gmra.mxu0 %v923
      %v994 = vpop.f32.mrf.mxu0
      %v995 = vadd.f32 0.0, %v994
      %v996 = vpop.f32.mrf.mxu0
      %v997 = vadd.f32 0.0, %v996
      %998 = vmatmul.bf16.gmra.mxu0 %v926
      %v999 = vpop.f32.mrf.mxu0
      %v1000 = vadd.f32 0.0, %v999
      %v1001 = vpop.f32.mrf.mxu0
      %v1002 = vadd.f32 0.0, %v1001
      %1003 = vmatmul.bf16.gmra.mxu0 %v929
      %v1004 = vpop.f32.mrf.mxu0
      %v1005 = vadd.f32 0.0, %v1004
      %v1006 = vpop.f32.mrf.mxu0
      %v1007 = vadd.f32 0.0, %v1006
      %1008 = vmatmul.bf16.gmra.mxu0 %v932
      %v1009 = vpop.f32.mrf.mxu0
      %v1010 = vadd.f32 0.0, %v1009
      %v1011 = vpop.f32.mrf.mxu0
      %v1012 = vadd.f32 0.0, %v1011
      %1013 = vmatmul.bf16.gmra.mxu0 %v935
      %v1014 = vpop.f32.mrf.mxu0
      %v1015 = vadd.f32 0.0, %v1014
      %v1016 = vpop.f32.mrf.mxu0
      %v1017 = vadd.f32 0.0, %v1016
      %1018 = vmatmul.bf16.gmra.mxu0 %v938
      %v1019 = vpop.f32.mrf.mxu0
      %v1020 = vadd.f32 0.0, %v1019
      %v1021 = vpop.f32.mrf.mxu0
      %v1022 = vadd.f32 0.0, %v1021
      %1023 = vmatmul.bf16.gmra.mxu0 %v941
      %v1024 = vpop.f32.mrf.mxu0
      %v1025 = vadd.f32 0.0, %v1024
      %v1026 = vpop.f32.mrf.mxu0
      %v1027 = vadd.f32 0.0, %v1026
      %1028 = vmatmul.bf16.gmra.mxu0 %v944
      %v1029 = vpop.f32.mrf.mxu0
      %v1030 = vadd.f32 0.0, %v1029
      %v1031 = vpop.f32.mrf.mxu0
      %v1032 = vadd.f32 0.0, %v1031
      %1033 = vdwg.mxu0
      %v1034 = vrot.slane %v960, 7
      %v1035 = vrot.slane %v962, 7
      %v1036 = vrot.slane %v965, 7
      %v1037 = vrot.slane %v967, 7
      %v1038 = vrot.slane %v970, 7
      %v1039 = vrot.slane %v972, 7
      %v1040 = vrot.slane %v975, 7
      %v1041 = vrot.slane %v977, 7
      %v1042 = vrot.slane %v980, 7
      %v1043 = vrot.slane %v982, 7
      %v1044 = vrot.slane %v985, 7
      %v1045 = vrot.slane %v987, 7
      %v1046 = vrot.slane %v990, 7
      %v1047 = vrot.slane %v992, 7
      %v1048 = vrot.slane %v995, 7
      %v1049 = vrot.slane %v997, 7
      %v1050 = vrot.slane %v1000, 7
      %v1051 = vrot.slane %v1002, 7
      %v1052 = vrot.slane %v1005, 7
      %v1053 = vrot.slane %v1007, 7
      %v1054 = vrot.slane %v1010, 7
      %v1055 = vrot.slane %v1012, 7
      %v1056 = vrot.slane %v1015, 7
      %v1057 = vrot.slane %v1017, 7
      %v1058 = vrot.slane %v1020, 7
      %v1059 = vrot.slane %v1022, 7
      %v1060 = vrot.slane %v1025, 7
      %v1061 = vrot.slane %v1027, 7
      %v1062 = vrot.slane %v1030, 7
      %v1063 = vrot.slane %v1032, 7
      %v1064 = vlaneseq
      %v1065 = vshrl.u32 %v1064, 7
      %vm1066 = vcmp.lt.s32.totalorder %v1065, 1
      %v1067 = vsel %vm1066, %v1062, %v1063
      %v1068 = vsel %vm1066, %v1061, %v1062
      %v1069 = vsel %vm1066, %v1060, %v1061
      %v1070 = vsel %vm1066, %v1059, %v1060
      %v1071 = vsel %vm1066, %v1058, %v1059
      %v1072 = vsel %vm1066, %v1057, %v1058
      %v1073 = vsel %vm1066, %v1056, %v1057
      %v1074 = vsel %vm1066, %v1055, %v1056
      %v1075 = vsel %vm1066, %v1054, %v1055
      %v1076 = vsel %vm1066, %v1053, %v1054
      %v1077 = vsel %vm1066, %v1052, %v1053
      %v1078 = vsel %vm1066, %v1051, %v1052
      %v1079 = vsel %vm1066, %v1050, %v1051
      %v1080 = vsel %vm1066, %v1049, %v1050
      %v1081 = vsel %vm1066, %v1048, %v1049
      %v1082 = vsel %vm1066, %v1047, %v1048
      %v1083 = vsel %vm1066, %v1046, %v1047
      %v1084 = vsel %vm1066, %v1045, %v1046
      %v1085 = vsel %vm1066, %v1044, %v1045
      %v1086 = vsel %vm1066, %v1043, %v1044
      %v1087 = vsel %vm1066, %v1042, %v1043
      %v1088 = vsel %vm1066, %v1041, %v1042
      %v1089 = vsel %vm1066, %v1040, %v1041
      %v1090 = vsel %vm1066, %v1039, %v1040
      %v1091 = vsel %vm1066, %v1038, %v1039
      %v1092 = vsel %vm1066, %v1037, %v1038
      %v1093 = vsel %vm1066, %v1036, %v1037
      %v1094 = vsel %vm1066, %v1035, %v1036
      %v1095 = vsel %vm1066, %v1034, %v1035
      %v1096 = vsel %vm1066, %v1063, %v1034
      %1127 = vrot.lane.b32.xlu0 %v960, 124
      %v1128 = vpop.permute.xlu0 %1127
      %1129 = vrot.lane.b32.xlu0 %v962, 124
      %v1130 = vpop.permute.xlu0 %1129
      %1131 = vrot.lane.b32.xlu0 %v965, 124
      %v1132 = vpop.permute.xlu0 %1131
      %1133 = vrot.lane.b32.xlu0 %v967, 124
      %v1134 = vpop.permute.xlu0 %1133
      %1135 = vrot.lane.b32.xlu0 %v970, 124
      %v1136 = vpop.permute.xlu0 %1135
      %1137 = vrot.lane.b32.xlu0 %v972, 124
      %v1138 = vpop.permute.xlu0 %1137
      %1139 = vrot.lane.b32.xlu0 %v975, 124
      %v1140 = vpop.permute.xlu0 %1139
      %1141 = vrot.lane.b32.xlu0 %v977, 124
      %v1142 = vpop.permute.xlu0 %1141
      %1143 = vrot.lane.b32.xlu0 %v980, 124
      %v1144 = vpop.permute.xlu0 %1143
      %1145 = vrot.lane.b32.xlu0 %v982, 124
      %v1146 = vpop.permute.xlu0 %1145
      %1147 = vrot.lane.b32.xlu0 %v985, 124
      %v1148 = vpop.permute.xlu0 %1147
      %1149 = vrot.lane.b32.xlu0 %v987, 124
      %v1150 = vpop.permute.xlu0 %1149
      %1151 = vrot.lane.b32.xlu0 %v990, 124
      %v1152 = vpop.permute.xlu0 %1151
      %1153 = vrot.lane.b32.xlu0 %v992, 124
      %v1154 = vpop.permute.xlu0 %1153
      %1155 = vrot.lane.b32.xlu0 %v995, 124
      %v1156 = vpop.permute.xlu0 %1155
      %1157 = vrot.lane.b32.xlu0 %v997, 124
      %v1158 = vpop.permute.xlu0 %1157
      %1159 = vrot.lane.b32.xlu0 %v1000, 124
      %v1160 = vpop.permute.xlu0 %1159
      %1161 = vrot.lane.b32.xlu0 %v1002, 124
      %v1162 = vpop.permute.xlu0 %1161
      %1163 = vrot.lane.b32.xlu0 %v1005, 124
      %v1164 = vpop.permute.xlu0 %1163
      %1165 = vrot.lane.b32.xlu0 %v1007, 124
      %v1166 = vpop.permute.xlu0 %1165
      %1167 = vrot.lane.b32.xlu0 %v1010, 124
      %v1168 = vpop.permute.xlu0 %1167
      %1169 = vrot.lane.b32.xlu0 %v1012, 124
      %v1170 = vpop.permute.xlu0 %1169
      %1171 = vrot.lane.b32.xlu0 %v1015, 124
      %v1172 = vpop.permute.xlu0 %1171
      %1173 = vrot.lane.b32.xlu0 %v1017, 124
      %v1174 = vpop.permute.xlu0 %1173
      %1175 = vrot.lane.b32.xlu0 %v1020, 124
      %v1176 = vpop.permute.xlu0 %1175
      %1177 = vrot.lane.b32.xlu0 %v1022, 124
      %v1178 = vpop.permute.xlu0 %1177
      %1179 = vrot.lane.b32.xlu0 %v1025, 124
      %v1180 = vpop.permute.xlu0 %1179
      %1181 = vrot.lane.b32.xlu0 %v1027, 124
      %v1182 = vpop.permute.xlu0 %1181
      %1183 = vrot.lane.b32.xlu0 %v1030, 124
      %v1184 = vpop.permute.xlu0 %1183
      %1185 = vrot.lane.b32.xlu0 %v1032, 124
      %v1186 = vpop.permute.xlu0 %1185
      %v1217 = vadd.f32 %v1096, %v1128
      %v1218 = vadd.f32 %v1095, %v1130
      %v1219 = vadd.f32 %v1094, %v1132
      %v1220 = vadd.f32 %v1093, %v1134
      %v1221 = vadd.f32 %v1092, %v1136
      %v1222 = vadd.f32 %v1091, %v1138
      %v1223 = vadd.f32 %v1090, %v1140
      %v1224 = vadd.f32 %v1089, %v1142
      %v1225 = vadd.f32 %v1088, %v1144
      %v1226 = vadd.f32 %v1087, %v1146
      %v1227 = vadd.f32 %v1086, %v1148
      %v1228 = vadd.f32 %v1085, %v1150
      %v1229 = vadd.f32 %v1084, %v1152
      %v1230 = vadd.f32 %v1083, %v1154
      %v1231 = vadd.f32 %v1082, %v1156
      %v1232 = vadd.f32 %v1081, %v1158
      %v1233 = vadd.f32 %v1080, %v1160
      %v1234 = vadd.f32 %v1079, %v1162
      %v1235 = vadd.f32 %v1078, %v1164
      %v1236 = vadd.f32 %v1077, %v1166
      %v1237 = vadd.f32 %v1076, %v1168
      %v1238 = vadd.f32 %v1075, %v1170
      %v1239 = vadd.f32 %v1074, %v1172
      %v1240 = vadd.f32 %v1073, %v1174
      %v1241 = vadd.f32 %v1072, %v1176
      %v1242 = vadd.f32 %v1071, %v1178
      %v1243 = vadd.f32 %v1070, %v1180
      %v1244 = vadd.f32 %v1069, %v1182
      %v1245 = vadd.f32 %v1068, %v1184
      %v1246 = vadd.f32 %v1067, %v1186
      %1247 = vrot.lane.b32.xlu0 %v960, 120
      %v1248 = vpop.permute.xlu0 %1247
      %1249 = vrot.lane.b32.xlu0 %v962, 120
      %v1250 = vpop.permute.xlu0 %1249
      %1251 = vrot.lane.b32.xlu0 %v965, 120
      %v1252 = vpop.permute.xlu0 %1251
      %1253 = vrot.lane.b32.xlu0 %v967, 120
      %v1254 = vpop.permute.xlu0 %1253
      %1255 = vrot.lane.b32.xlu0 %v970, 120
      %v1256 = vpop.permute.xlu0 %1255
      %1257 = vrot.lane.b32.xlu0 %v972, 120
      %v1258 = vpop.permute.xlu0 %1257
      %1259 = vrot.lane.b32.xlu0 %v975, 120
      %v1260 = vpop.permute.xlu0 %1259
      %1261 = vrot.lane.b32.xlu0 %v977, 120
      %v1262 = vpop.permute.xlu0 %1261
      %1263 = vrot.lane.b32.xlu0 %v980, 120
      %v1264 = vpop.permute.xlu0 %1263
      %1265 = vrot.lane.b32.xlu0 %v982, 120
      %v1266 = vpop.permute.xlu0 %1265
      %1267 = vrot.lane.b32.xlu0 %v985, 120
      %v1268 = vpop.permute.xlu0 %1267
      %1269 = vrot.lane.b32.xlu0 %v987, 120
      %v1270 = vpop.permute.xlu0 %1269
      %1271 = vrot.lane.b32.xlu0 %v990, 120
      %v1272 = vpop.permute.xlu0 %1271
      %1273 = vrot.lane.b32.xlu0 %v992, 120
      %v1274 = vpop.permute.xlu0 %1273
      %1275 = vrot.lane.b32.xlu0 %v995, 120
      %v1276 = vpop.permute.xlu0 %1275
      %1277 = vrot.lane.b32.xlu0 %v997, 120
      %v1278 = vpop.permute.xlu0 %1277
      %1279 = vrot.lane.b32.xlu0 %v1000, 120
      %v1280 = vpop.permute.xlu0 %1279
      %1281 = vrot.lane.b32.xlu0 %v1002, 120
      %v1282 = vpop.permute.xlu0 %1281
      %1283 = vrot.lane.b32.xlu0 %v1005, 120
      %v1284 = vpop.permute.xlu0 %1283
      %1285 = vrot.lane.b32.xlu0 %v1007, 120
      %v1286 = vpop.permute.xlu0 %1285
      %1287 = vrot.lane.b32.xlu0 %v1010, 120
      %v1288 = vpop.permute.xlu0 %1287
      %1289 = vrot.lane.b32.xlu0 %v1012, 120
      %v1290 = vpop.permute.xlu0 %1289
      %1291 = vrot.lane.b32.xlu0 %v1015, 120
      %v1292 = vpop.permute.xlu0 %1291
      %1293 = vrot.lane.b32.xlu0 %v1017, 120
      %v1294 = vpop.permute.xlu0 %1293
      %1295 = vrot.lane.b32.xlu0 %v1020, 120
      %v1296 = vpop.permute.xlu0 %1295
      %1297 = vrot.lane.b32.xlu0 %v1022, 120
      %v1298 = vpop.permute.xlu0 %1297
      %1299 = vrot.lane.b32.xlu0 %v1025, 120
      %v1300 = vpop.permute.xlu0 %1299
      %1301 = vrot.lane.b32.xlu0 %v1027, 120
      %v1302 = vpop.permute.xlu0 %1301
      %1303 = vrot.lane.b32.xlu0 %v1030, 120
      %v1304 = vpop.permute.xlu0 %1303
      %1305 = vrot.lane.b32.xlu0 %v1032, 120
      %v1306 = vpop.permute.xlu0 %1305
      %v1337 = vrot.slane %v1248, 1
      %v1338 = vrot.slane %v1250, 1
      %v1339 = vrot.slane %v1252, 1
      %v1340 = vrot.slane %v1254, 1
      %v1341 = vrot.slane %v1256, 1
      %v1342 = vrot.slane %v1258, 1
      %v1343 = vrot.slane %v1260, 1
      %v1344 = vrot.slane %v1262, 1
      %v1345 = vrot.slane %v1264, 1
      %v1346 = vrot.slane %v1266, 1
      %v1347 = vrot.slane %v1268, 1
      %v1348 = vrot.slane %v1270, 1
      %v1349 = vrot.slane %v1272, 1
      %v1350 = vrot.slane %v1274, 1
      %v1351 = vrot.slane %v1276, 1
      %v1352 = vrot.slane %v1278, 1
      %v1353 = vrot.slane %v1280, 1
      %v1354 = vrot.slane %v1282, 1
      %v1355 = vrot.slane %v1284, 1
      %v1356 = vrot.slane %v1286, 1
      %v1357 = vrot.slane %v1288, 1
      %v1358 = vrot.slane %v1290, 1
      %v1359 = vrot.slane %v1292, 1
      %v1360 = vrot.slane %v1294, 1
      %v1361 = vrot.slane %v1296, 1
      %v1362 = vrot.slane %v1298, 1
      %v1363 = vrot.slane %v1300, 1
      %v1364 = vrot.slane %v1302, 1
      %v1365 = vrot.slane %v1304, 1
      %v1366 = vrot.slane %v1306, 1
      %vm1367 = vcmp.lt.s32.totalorder %v1065, 7
      %v1368 = vsel %vm1367, %v1365, %v1366
      %v1369 = vsel %vm1367, %v1364, %v1365
      %v1370 = vsel %vm1367, %v1363, %v1364
      %v1371 = vsel %vm1367, %v1362, %v1363
      %v1372 = vsel %vm1367, %v1361, %v1362
      %v1373 = vsel %vm1367, %v1360, %v1361
      %v1374 = vsel %vm1367, %v1359, %v1360
      %v1375 = vsel %vm1367, %v1358, %v1359
      %v1376 = vsel %vm1367, %v1357, %v1358
      %v1377 = vsel %vm1367, %v1356, %v1357
      %v1378 = vsel %vm1367, %v1355, %v1356
      %v1379 = vsel %vm1367, %v1354, %v1355
      %v1380 = vsel %vm1367, %v1353, %v1354
      %v1381 = vsel %vm1367, %v1352, %v1353
      %v1382 = vsel %vm1367, %v1351, %v1352
      %v1383 = vsel %vm1367, %v1350, %v1351
      %v1384 = vsel %vm1367, %v1349, %v1350
      %v1385 = vsel %vm1367, %v1348, %v1349
      %v1386 = vsel %vm1367, %v1347, %v1348
      %v1387 = vsel %vm1367, %v1346, %v1347
      %v1388 = vsel %vm1367, %v1345, %v1346
      %v1389 = vsel %vm1367, %v1344, %v1345
      %v1390 = vsel %vm1367, %v1343, %v1344
      %v1391 = vsel %vm1367, %v1342, %v1343
      %v1392 = vsel %vm1367, %v1341, %v1342
      %v1393 = vsel %vm1367, %v1340, %v1341
      %v1394 = vsel %vm1367, %v1339, %v1340
      %v1395 = vsel %vm1367, %v1338, %v1339
      %v1396 = vsel %vm1367, %v1337, %v1338
      %v1397 = vsel %vm1367, %v1366, %v1337
      %v1398 = vadd.f32 %v1217, %v1396
      %v1399 = vadd.f32 %v1218, %v1395
      %v1400 = vadd.f32 %v1219, %v1394
      %v1401 = vadd.f32 %v1220, %v1393
      %v1402 = vadd.f32 %v1221, %v1392
      %v1403 = vadd.f32 %v1222, %v1391
      %v1404 = vadd.f32 %v1223, %v1390
      %v1405 = vadd.f32 %v1224, %v1389
      %v1406 = vadd.f32 %v1225, %v1388
      %v1407 = vadd.f32 %v1226, %v1387
      %v1408 = vadd.f32 %v1227, %v1386
      %v1409 = vadd.f32 %v1228, %v1385
      %v1410 = vadd.f32 %v1229, %v1384
      %v1411 = vadd.f32 %v1230, %v1383
      %v1412 = vadd.f32 %v1231, %v1382
      %v1413 = vadd.f32 %v1232, %v1381
      %v1414 = vadd.f32 %v1233, %v1380
      %v1415 = vadd.f32 %v1234, %v1379
      %v1416 = vadd.f32 %v1235, %v1378
      %v1417 = vadd.f32 %v1236, %v1377
      %v1418 = vadd.f32 %v1237, %v1376
      %v1419 = vadd.f32 %v1238, %v1375
      %v1420 = vadd.f32 %v1239, %v1374
      %v1421 = vadd.f32 %v1240, %v1373
      %v1422 = vadd.f32 %v1241, %v1372
      %v1423 = vadd.f32 %v1242, %v1371
      %v1424 = vadd.f32 %v1243, %v1370
      %v1425 = vadd.f32 %v1244, %v1369
      %v1426 = vadd.f32 %v1245, %v1368
      %v1427 = vadd.f32 %v1246, %v1397
      %v1428 = vld [vmem:[%s3] sm:$0x1]
      %v1430 = vperm.slane %v1428, 0
      %v1432 = vmul.f32 %v1398, %v1430
      %v1433 = vmul.f32 %v1399, %v1430
      %v1434 = vmul.f32 %v1400, %v1430
      %v1435 = vmul.f32 %v1401, %v1430
      %v1436 = vmul.f32 %v1402, %v1430
      %v1437 = vmul.f32 %v1403, %v1430
      %v1438 = vmul.f32 %v1404, %v1430
      %v1439 = vmul.f32 %v1405, %v1430
      %v1440 = vmul.f32 %v1406, %v1430
      %v1441 = vmul.f32 %v1407, %v1430
      %v1442 = vmul.f32 %v1408, %v1430
      %v1443 = vmul.f32 %v1409, %v1430
      %v1444 = vmul.f32 %v1410, %v1430
      %v1445 = vmul.f32 %v1411, %v1430
      %v1446 = vmul.f32 %v1412, %v1430
      %v1447 = vmul.f32 %v1413, %v1430
      %v1448 = vmul.f32 %v1414, %v1430
      %v1449 = vmul.f32 %v1415, %v1430
      %v1450 = vmul.f32 %v1416, %v1430
      %v1451 = vmul.f32 %v1417, %v1430
      %v1452 = vmul.f32 %v1418, %v1430
      %v1453 = vmul.f32 %v1419, %v1430
      %v1454 = vmul.f32 %v1420, %v1430
      %v1455 = vmul.f32 %v1421, %v1430
      %v1456 = vmul.f32 %v1422, %v1430
      %v1457 = vmul.f32 %v1423, %v1430
      %v1458 = vmul.f32 %v1424, %v1430
      %v1459 = vmul.f32 %v1425, %v1430
      %v1460 = vmul.f32 %v1426, %v1430
      %v1461 = vmul.f32 %v1427, %v1430
      %v1462 = vld [vmem:[%s4] sm:$0x1]
      %v1464 = vperm.slane %v1462, 0
      %v1466 = vadd.f32 %v1432, %v1464
      %v1467 = vadd.f32 %v1433, %v1464
      %v1468 = vadd.f32 %v1434, %v1464
      %v1469 = vadd.f32 %v1435, %v1464
      %v1470 = vadd.f32 %v1436, %v1464
      %v1471 = vadd.f32 %v1437, %v1464
      %v1472 = vadd.f32 %v1438, %v1464
      %v1473 = vadd.f32 %v1439, %v1464
      %v1474 = vadd.f32 %v1440, %v1464
      %v1475 = vadd.f32 %v1441, %v1464
      %v1476 = vadd.f32 %v1442, %v1464
      %v1477 = vadd.f32 %v1443, %v1464
      %v1478 = vadd.f32 %v1444, %v1464
      %v1479 = vadd.f32 %v1445, %v1464
      %v1480 = vadd.f32 %v1446, %v1464
      %v1481 = vadd.f32 %v1447, %v1464
      %v1482 = vadd.f32 %v1448, %v1464
      %v1483 = vadd.f32 %v1449, %v1464
      %v1484 = vadd.f32 %v1450, %v1464
      %v1485 = vadd.f32 %v1451, %v1464
      %v1486 = vadd.f32 %v1452, %v1464
      %v1487 = vadd.f32 %v1453, %v1464
      %v1488 = vadd.f32 %v1454, %v1464
      %v1489 = vadd.f32 %v1455, %v1464
      %v1490 = vadd.f32 %v1456, %v1464
      %v1491 = vadd.f32 %v1457, %v1464
      %v1492 = vadd.f32 %v1458, %v1464
      %v1493 = vadd.f32 %v1459, %v1464
      %v1494 = vadd.f32 %v1460, %v1464
      %v1495 = vadd.f32 %v1461, %v1464
      %v1496 = vmax.f32 %v1466, 0.0
      %v1497 = vmax.f32 %v1467, 0.0
      %v1498 = vmax.f32 %v1468, 0.0
      %v1499 = vmax.f32 %v1469, 0.0
      %v1500 = vmax.f32 %v1470, 0.0
      %v1501 = vmax.f32 %v1471, 0.0
      %v1502 = vmax.f32 %v1472, 0.0
      %v1503 = vmax.f32 %v1473, 0.0
      %v1504 = vmax.f32 %v1474, 0.0
      %v1505 = vmax.f32 %v1475, 0.0
      %v1506 = vmax.f32 %v1476, 0.0
      %v1507 = vmax.f32 %v1477, 0.0
      %v1508 = vmax.f32 %v1478, 0.0
      %v1509 = vmax.f32 %v1479, 0.0
      %v1510 = vmax.f32 %v1480, 0.0
      %v1511 = vmax.f32 %v1481, 0.0
      %v1512 = vmax.f32 %v1482, 0.0
      %v1513 = vmax.f32 %v1483, 0.0
      %v1514 = vmax.f32 %v1484, 0.0
      %v1515 = vmax.f32 %v1485, 0.0
      %v1516 = vmax.f32 %v1486, 0.0
      %v1517 = vmax.f32 %v1487, 0.0
      %v1518 = vmax.f32 %v1488, 0.0
      %v1519 = vmax.f32 %v1489, 0.0
      %v1520 = vmax.f32 %v1490, 0.0
      %v1521 = vmax.f32 %v1491, 0.0
      %v1522 = vmax.f32 %v1492, 0.0
      %v1523 = vmax.f32 %v1493, 0.0
      %v1524 = vmax.f32 %v1494, 0.0
      %v1525 = vmax.f32 %v1495, 0.0
      %v1526 = vld [vmem:[%s338] sm:$0xff]
      %v1527 = vld [vmem:[%s338 + $0x8] sm:$0xff]
      %v1528 = vld [vmem:[%s338 + $0x10] sm:$0xff]
      %v1529 = vld [vmem:[%s338 + $0x18] sm:$0xff]
      %v1530 = vld [vmem:[%s338 + $0x20] sm:$0xff]
      %v1531 = vld [vmem:[%s338 + $0x28] sm:$0xff]
      %v1532 = vld [vmem:[%s338 + $0x30] sm:$0xff]
      %v1533 = vld [vmem:[%s338 + $0x38] sm:$0xff]
      %v1534 = vld [vmem:[%s338 + $0x40] sm:$0xff]
      %v1535 = vld [vmem:[%s338 + $0x48] sm:$0xff]
      %v1536 = vld [vmem:[%s338 + $0x50] sm:$0xff]
      %v1537 = vld [vmem:[%s338 + $0x58] sm:$0xff]
      %v1538 = vld [vmem:[%s338 + $0x60] sm:$0xff]
      %v1539 = vld [vmem:[%s338 + $0x68] sm:$0xff]
      %v1540 = vld [vmem:[%s338 + $0x70] sm:$0xff]
      %v1541 = vld [vmem:[%s338 + $0x78] sm:$0xff]
      %v1542 = vld [vmem:[%s338 + $0x80] sm:$0xff]
      %v1543 = vld [vmem:[%s338 + $0x88] sm:$0xff]
      %v1544 = vld [vmem:[%s338 + $0x90] sm:$0xff]
      %v1545 = vld [vmem:[%s338 + $0x98] sm:$0xff]
      %v1546 = vld [vmem:[%s338 + $0xa0] sm:$0xff]
      %v1547 = vld [vmem:[%s338 + $0xa8] sm:$0xff]
      %v1548 = vld [vmem:[%s338 + $0xb0] sm:$0xff]
      %v1549 = vld [vmem:[%s338 + $0xb8] sm:$0xff]
      %v1550 = vld [vmem:[%s338 + $0xc0] sm:$0xff]
      %v1551 = vld [vmem:[%s338 + $0xc8] sm:$0xff]
      %v1552 = vld [vmem:[%s338 + $0xd0] sm:$0xff]
      %v1553 = vld [vmem:[%s338 + $0xd8] sm:$0xff]
      %v1554 = vld [vmem:[%s338 + $0xe0] sm:$0xff]
      %v1555 = vld [vmem:[%s338 + $0xe8] sm:$0xff]
      %1557 = vset.pattern.permute.xlu0 0
      %1558 = vperm.xlu0 %1557, %v1526
      %v1559 = vpop.permute.xlu0 %1558
      %1562 = vset.pattern.permute.xlu0 0
      %1563 = vperm.xlu0 %1562, %v1527
      %v1564 = vpop.permute.xlu0 %1563
      %1567 = vset.pattern.permute.xlu0 0
      %1568 = vperm.xlu0 %1567, %v1528
      %v1569 = vpop.permute.xlu0 %1568
      %1572 = vset.pattern.permute.xlu0 0
      %1573 = vperm.xlu0 %1572, %v1529
      %v1574 = vpop.permute.xlu0 %1573
      %1577 = vset.pattern.permute.xlu0 0
      %1578 = vperm.xlu0 %1577, %v1530
      %v1579 = vpop.permute.xlu0 %1578
      %1582 = vset.pattern.permute.xlu0 0
      %1583 = vperm.xlu0 %1582, %v1531
      %v1584 = vpop.permute.xlu0 %1583
      %1587 = vset.pattern.permute.xlu0 0
      %1588 = vperm.xlu0 %1587, %v1532
      %v1589 = vpop.permute.xlu0 %1588
      %1592 = vset.pattern.permute.xlu0 0
      %1593 = vperm.xlu0 %1592, %v1533
      %v1594 = vpop.permute.xlu0 %1593
      %1597 = vset.pattern.permute.xlu0 0
      %1598 = vperm.xlu0 %1597, %v1534
      %v1599 = vpop.permute.xlu0 %1598
      %1602 = vset.pattern.permute.xlu0 0
      %1603 = vperm.xlu0 %1602, %v1535
      %v1604 = vpop.permute.xlu0 %1603
      %1607 = vset.pattern.permute.xlu0 0
      %1608 = vperm.xlu0 %1607, %v1536
      %v1609 = vpop.permute.xlu0 %1608
      %1612 = vset.pattern.permute.xlu0 0
      %1613 = vperm.xlu0 %1612, %v1537
      %v1614 = vpop.permute.xlu0 %1613
      %1617 = vset.pattern.permute.xlu0 0
      %1618 = vperm.xlu0 %1617, %v1538
      %v1619 = vpop.permute.xlu0 %1618
      %1622 = vset.pattern.permute.xlu0 0
      %1623 = vperm.xlu0 %1622, %v1539
      %v1624 = vpop.permute.xlu0 %1623
      %1627 = vset.pattern.permute.xlu0 0
      %1628 = vperm.xlu0 %1627, %v1540
      %v1629 = vpop.permute.xlu0 %1628
      %1632 = vset.pattern.permute.xlu0 0
      %1633 = vperm.xlu0 %1632, %v1541
      %v1634 = vpop.permute.xlu0 %1633
      %1637 = vset.pattern.permute.xlu0 0
      %1638 = vperm.xlu0 %1637, %v1542
      %v1639 = vpop.permute.xlu0 %1638
      %1642 = vset.pattern.permute.xlu0 0
      %1643 = vperm.xlu0 %1642, %v1543
      %v1644 = vpop.permute.xlu0 %1643
      %1647 = vset.pattern.permute.xlu0 0
      %1648 = vperm.xlu0 %1647, %v1544
      %v1649 = vpop.permute.xlu0 %1648
      %1652 = vset.pattern.permute.xlu0 0
      %1653 = vperm.xlu0 %1652, %v1545
      %v1654 = vpop.permute.xlu0 %1653
      %1657 = vset.pattern.permute.xlu0 0
      %1658 = vperm.xlu0 %1657, %v1546
      %v1659 = vpop.permute.xlu0 %1658
      %1662 = vset.pattern.permute.xlu0 0
      %1663 = vperm.xlu0 %1662, %v1547
      %v1664 = vpop.permute.xlu0 %1663
      %1667 = vset.pattern.permute.xlu0 0
      %1668 = vperm.xlu0 %1667, %v1548
      %v1669 = vpop.permute.xlu0 %1668
      %1672 = vset.pattern.permute.xlu0 0
      %1673 = vperm.xlu0 %1672, %v1549
      %v1674 = vpop.permute.xlu0 %1673
      %1677 = vset.pattern.permute.xlu0 0
      %1678 = vperm.xlu0 %1677, %v1550
      %v1679 = vpop.permute.xlu0 %1678
      %1682 = vset.pattern.permute.xlu0 0
      %1683 = vperm.xlu0 %1682, %v1551
      %v1684 = vpop.permute.xlu0 %1683
      %1687 = vset.pattern.permute.xlu0 0
      %1688 = vperm.xlu0 %1687, %v1552
      %v1689 = vpop.permute.xlu0 %1688
      %1692 = vset.pattern.permute.xlu0 0
      %1693 = vperm.xlu0 %1692, %v1553
      %v1694 = vpop.permute.xlu0 %1693
      %1697 = vset.pattern.permute.xlu0 0
      %1698 = vperm.xlu0 %1697, %v1554
      %v1699 = vpop.permute.xlu0 %1698
      %1702 = vset.pattern.permute.xlu0 0
      %1703 = vperm.xlu0 %1702, %v1555
      %v1704 = vpop.permute.xlu0 %1703
      %v1706 = vmul.f32 %v1496, %v1559
      %v1707 = vmul.f32 %v1497, %v1564
      %v1708 = vmul.f32 %v1498, %v1569
      %v1709 = vmul.f32 %v1499, %v1574
      %v1710 = vmul.f32 %v1500, %v1579
      %v1711 = vmul.f32 %v1501, %v1584
      %v1712 = vmul.f32 %v1502, %v1589
      %v1713 = vmul.f32 %v1503, %v1594
      %v1714 = vmul.f32 %v1504, %v1599
      %v1715 = vmul.f32 %v1505, %v1604
      %v1716 = vmul.f32 %v1506, %v1609
      %v1717 = vmul.f32 %v1507, %v1614
      %v1718 = vmul.f32 %v1508, %v1619
      %v1719 = vmul.f32 %v1509, %v1624
      %v1720 = vmul.f32 %v1510, %v1629
      %v1721 = vmul.f32 %v1511, %v1634
      %v1722 = vmul.f32 %v1512, %v1639
      %v1723 = vmul.f32 %v1513, %v1644
      %v1724 = vmul.f32 %v1514, %v1649
      %v1725 = vmul.f32 %v1515, %v1654
      %v1726 = vmul.f32 %v1516, %v1659
      %v1727 = vmul.f32 %v1517, %v1664
      %v1728 = vmul.f32 %v1518, %v1669
      %v1729 = vmul.f32 %v1519, %v1674
      %v1730 = vmul.f32 %v1520, %v1679
      %v1731 = vmul.f32 %v1521, %v1684
      %v1732 = vmul.f32 %v1522, %v1689
      %v1733 = vmul.f32 %v1523, %v1694
      %v1734 = vmul.f32 %v1524, %v1699
      %v1735 = vmul.f32 %v1525, %v1704
      %v1736 = vpack.c.bf16 %v1706, %v1706
      %v1737 = vpack.c.bf16 %v1707, %v1707
      %v1738 = vpack.c.bf16 %v1708, %v1708
      %v1739 = vpack.c.bf16 %v1709, %v1709
      %v1740 = vpack.c.bf16 %v1710, %v1710
      %v1741 = vpack.c.bf16 %v1711, %v1711
      %v1742 = vpack.c.bf16 %v1712, %v1712
      %v1743 = vpack.c.bf16 %v1713, %v1713
      %v1744 = vpack.c.bf16 %v1714, %v1714
      %v1745 = vpack.c.bf16 %v1715, %v1715
      %v1746 = vpack.c.bf16 %v1716, %v1716
      %v1747 = vpack.c.bf16 %v1717, %v1717
      %v1748 = vpack.c.bf16 %v1718, %v1718
      %v1749 = vpack.c.bf16 %v1719, %v1719
      %v1750 = vpack.c.bf16 %v1720, %v1720
      %v1751 = vpack.c.bf16 %v1721, %v1721
      %v1752 = vpack.c.bf16 %v1722, %v1722
      %v1753 = vpack.c.bf16 %v1723, %v1723
      %v1754 = vpack.c.bf16 %v1724, %v1724
      %v1755 = vpack.c.bf16 %v1725, %v1725
      %v1756 = vpack.c.bf16 %v1726, %v1726
      %v1757 = vpack.c.bf16 %v1727, %v1727
      %v1758 = vpack.c.bf16 %v1728, %v1728
      %v1759 = vpack.c.bf16 %v1729, %v1729
      %1760 = vst.msk [vmem:[#allocation3] sm:$0xf] %vm385, %v1736
      %1761 = vst.msk [vmem:[#allocation3 + $0x4] sm:$0xf] %vm385, %v1737
      %1762 = vst.msk [vmem:[#allocation3 + $0x8] sm:$0xf] %vm385, %v1738
      %1763 = vst.msk [vmem:[#allocation3 + $0xc] sm:$0xf] %vm385, %v1739
      %1764 = vst.msk [vmem:[#allocation3 + $0x10] sm:$0xf] %vm385, %v1740
      %1765 = vst.msk [vmem:[#allocation3 + $0x14] sm:$0xf] %vm385, %v1741
      %1766 = vst.msk [vmem:[#allocation3 + $0x18] sm:$0xf] %vm385, %v1742
      %1767 = vst.msk [vmem:[#allocation3 + $0x1c] sm:$0xf] %vm385, %v1743
      %1768 = vst.msk [vmem:[#allocation3 + $0x20] sm:$0xf] %vm385, %v1744
      %1769 = vst.msk [vmem:[#allocation3 + $0x24] sm:$0xf] %vm385, %v1745
      %1770 = vst.msk [vmem:[#allocation3 + $0x28] sm:$0xf] %vm385, %v1746
      %1771 = vst.msk [vmem:[#allocation3 + $0x2c] sm:$0xf] %vm385, %v1747
      %1772 = vst.msk [vmem:[#allocation3 + $0x30] sm:$0xf] %vm385, %v1748
      %1773 = vst.msk [vmem:[#allocation3 + $0x34] sm:$0xf] %vm385, %v1749
      %1774 = vst.msk [vmem:[#allocation3 + $0x38] sm:$0xf] %vm385, %v1750
      %1775 = vst.msk [vmem:[#allocation3 + $0x3c] sm:$0xf] %vm385, %v1751
      %1776 = vst.msk [vmem:[#allocation3 + $0x40] sm:$0xf] %vm385, %v1752
      %1777 = vst.msk [vmem:[#allocation3 + $0x44] sm:$0xf] %vm385, %v1753
      %1778 = vst.msk [vmem:[#allocation3 + $0x48] sm:$0xf] %vm385, %v1754
      %1779 = vst.msk [vmem:[#allocation3 + $0x4c] sm:$0xf] %vm385, %v1755
      %1780 = vst.msk [vmem:[#allocation3 + $0x50] sm:$0xf] %vm385, %v1756
      %1781 = vst.msk [vmem:[#allocation3 + $0x54] sm:$0xf] %vm385, %v1757
      %1782 = vst.msk [vmem:[#allocation3 + $0x58] sm:$0xf] %vm385, %v1758
      %1783 = vst.msk [vmem:[#allocation3 + $0x5c] sm:$0xf] %vm385, %v1759
      %v1784 = vpack.c.bf16 %v1730, %v1730
      %v1785 = vpack.c.bf16 %v1731, %v1731
      %v1786 = vpack.c.bf16 %v1732, %v1732
      %1811 = vrot.lane.b32.xlu0 %v1739, 4
      %v1812 = vpop.permute.xlu0 %1811
      %1813 = vrot.lane.b32.xlu0 %v1740, 4
      %v1814 = vpop.permute.xlu0 %1813
      %1815 = vrot.lane.b32.xlu0 %v1741, 4
      %v1816 = vpop.permute.xlu0 %1815
      %1817 = vrot.lane.b32.xlu0 %v1742, 4
      %v1818 = vpop.permute.xlu0 %1817
      %1819 = vrot.lane.b32.xlu0 %v1743, 4
      %v1820 = vpop.permute.xlu0 %1819
      %1821 = vrot.lane.b32.xlu0 %v1744, 4
      %v1822 = vpop.permute.xlu0 %1821
      %1823 = vrot.lane.b32.xlu0 %v1745, 4
      %v1824 = vpop.permute.xlu0 %1823
      %1825 = vrot.lane.b32.xlu0 %v1746, 4
      %v1826 = vpop.permute.xlu0 %1825
      %1827 = vrot.lane.b32.xlu0 %v1747, 4
      %v1828 = vpop.permute.xlu0 %1827
      %1829 = vrot.lane.b32.xlu0 %v1748, 4
      %v1830 = vpop.permute.xlu0 %1829
      %1831 = vrot.lane.b32.xlu0 %v1749, 4
      %v1832 = vpop.permute.xlu0 %1831
      %1833 = vrot.lane.b32.xlu0 %v1750, 4
      %v1834 = vpop.permute.xlu0 %1833
      %1835 = vrot.lane.b32.xlu0 %v1751, 4
      %v1836 = vpop.permute.xlu0 %1835
      %1837 = vrot.lane.b32.xlu0 %v1752, 4
      %v1838 = vpop.permute.xlu0 %1837
      %1839 = vrot.lane.b32.xlu0 %v1753, 4
      %v1840 = vpop.permute.xlu0 %1839
      %1841 = vrot.lane.b32.xlu0 %v1754, 4
      %v1842 = vpop.permute.xlu0 %1841
      %1843 = vrot.lane.b32.xlu0 %v1755, 4
      %v1844 = vpop.permute.xlu0 %1843
      %1845 = vrot.lane.b32.xlu0 %v1756, 4
      %v1846 = vpop.permute.xlu0 %1845
      %1847 = vrot.lane.b32.xlu0 %v1757, 4
      %v1848 = vpop.permute.xlu0 %1847
      %1849 = vrot.lane.b32.xlu0 %v1758, 4
      %v1850 = vpop.permute.xlu0 %1849
      %1851 = vrot.lane.b32.xlu0 %v1759, 4
      %v1852 = vpop.permute.xlu0 %1851
      %1853 = vrot.lane.b32.xlu0 %v1784, 4
      %v1854 = vpop.permute.xlu0 %1853
      %1855 = vrot.lane.b32.xlu0 %v1785, 4
      %v1856 = vpop.permute.xlu0 %1855
      %1857 = vrot.lane.b32.xlu0 %v1786, 4
      %v1858 = vpop.permute.xlu0 %1857
      %1883 = vst.msk [vmem:[#allocation3] sm:$0xf] %vm571, %v1812
      %1884 = vst.msk [vmem:[#allocation3 + $0x4] sm:$0xf] %vm571, %v1814
      %1885 = vst.msk [vmem:[#allocation3 + $0x8] sm:$0xf] %vm571, %v1816
      %1886 = vst.msk [vmem:[#allocation3 + $0xc] sm:$0xf] %vm571, %v1818
      %1887 = vst.msk [vmem:[#allocation3 + $0x10] sm:$0xf] %vm571, %v1820
      %1888 = vst.msk [vmem:[#allocation3 + $0x14] sm:$0xf] %vm571, %v1822
      %1889 = vst.msk [vmem:[#allocation3 + $0x18] sm:$0xf] %vm571, %v1824
      %1890 = vst.msk [vmem:[#allocation3 + $0x1c] sm:$0xf] %vm571, %v1826
      %1891 = vst.msk [vmem:[#allocation3 + $0x20] sm:$0xf] %vm571, %v1828
      %1892 = vst.msk [vmem:[#allocation3 + $0x24] sm:$0xf] %vm571, %v1830
      %1893 = vst.msk [vmem:[#allocation3 + $0x28] sm:$0xf] %vm571, %v1832
      %1894 = vst.msk [vmem:[#allocation3 + $0x2c] sm:$0xf] %vm571, %v1834
      %1895 = vst.msk [vmem:[#allocation3 + $0x30] sm:$0xf] %vm571, %v1836
      %1896 = vst.msk [vmem:[#allocation3 + $0x34] sm:$0xf] %vm571, %v1838
      %1897 = vst.msk [vmem:[#allocation3 + $0x38] sm:$0xf] %vm571, %v1840
      %1898 = vst.msk [vmem:[#allocation3 + $0x3c] sm:$0xf] %vm571, %v1842
      %1899 = vst.msk [vmem:[#allocation3 + $0x40] sm:$0xf] %vm571, %v1844
      %1900 = vst.msk [vmem:[#allocation3 + $0x44] sm:$0xf] %vm571, %v1846
      %1901 = vst.msk [vmem:[#allocation3 + $0x48] sm:$0xf] %vm571, %v1848
      %1902 = vst.msk [vmem:[#allocation3 + $0x4c] sm:$0xf] %vm571, %v1850
      %1903 = vst.msk [vmem:[#allocation3 + $0x50] sm:$0xf] %vm571, %v1852
      %1904 = vst.msk [vmem:[#allocation3 + $0x54] sm:$0xf] %vm571, %v1854
      %1905 = vst.msk [vmem:[#allocation3 + $0x58] sm:$0xf] %vm571, %v1856
      %1906 = vst.msk [vmem:[#allocation3 + $0x5c] sm:$0xf] %vm571, %v1858
      %v1907 = vpack.c.bf16 %v1733, %v1733
      %v1908 = vpack.c.bf16 %v1734, %v1734
      %v1909 = vpack.c.bf16 %v1735, %v1735
      %1913 = vrot.lane.b32.xlu0 %v1742, 8
      %v1914 = vpop.permute.xlu0 %1913
      %1915 = vrot.lane.b32.xlu0 %v1743, 8
      %v1916 = vpop.permute.xlu0 %1915
      %1917 = vrot.lane.b32.xlu0 %v1744, 8
      %v1918 = vpop.permute.xlu0 %1917
      %1919 = vrot.lane.b32.xlu0 %v1745, 8
      %v1920 = vpop.permute.xlu0 %1919
      %1921 = vrot.lane.b32.xlu0 %v1746, 8
      %v1922 = vpop.permute.xlu0 %1921
      %1923 = vrot.lane.b32.xlu0 %v1747, 8
      %v1924 = vpop.permute.xlu0 %1923
      %1925 = vrot.lane.b32.xlu0 %v1748, 8
      %v1926 = vpop.permute.xlu0 %1925
      %1927 = vrot.lane.b32.xlu0 %v1749, 8
      %v1928 = vpop.permute.xlu0 %1927
      %1929 = vrot.lane.b32.xlu0 %v1750, 8
      %v1930 = vpop.permute.xlu0 %1929
      %1931 = vrot.lane.b32.xlu0 %v1751, 8
      %v1932 = vpop.permute.xlu0 %1931
      %1933 = vrot.lane.b32.xlu0 %v1752, 8
      %v1934 = vpop.permute.xlu0 %1933
      %1935 = vrot.lane.b32.xlu0 %v1753, 8
      %v1936 = vpop.permute.xlu0 %1935
      %1937 = vrot.lane.b32.xlu0 %v1754, 8
      %v1938 = vpop.permute.xlu0 %1937
      %1939 = vrot.lane.b32.xlu0 %v1755, 8
      %v1940 = vpop.permute.xlu0 %1939
      %1941 = vrot.lane.b32.xlu0 %v1756, 8
      %v1942 = vpop.permute.xlu0 %1941
      %1943 = vrot.lane.b32.xlu0 %v1757, 8
      %v1944 = vpop.permute.xlu0 %1943
      %1945 = vrot.lane.b32.xlu0 %v1758, 8
      %v1946 = vpop.permute.xlu0 %1945
      %1947 = vrot.lane.b32.xlu0 %v1759, 8
      %v1948 = vpop.permute.xlu0 %1947
      %1949 = vrot.lane.b32.xlu0 %v1784, 8
      %v1950 = vpop.permute.xlu0 %1949
      %1951 = vrot.lane.b32.xlu0 %v1785, 8
      %v1952 = vpop.permute.xlu0 %1951
      %1953 = vrot.lane.b32.xlu0 %v1786, 8
      %v1954 = vpop.permute.xlu0 %1953
      %1955 = vrot.lane.b32.xlu0 %v1907, 8
      %v1956 = vpop.permute.xlu0 %1955
      %1957 = vrot.lane.b32.xlu0 %v1908, 8
      %v1958 = vpop.permute.xlu0 %1957
      %1959 = vrot.lane.b32.xlu0 %v1909, 8
      %v1960 = vpop.permute.xlu0 %1959
      %1985 = vst.msk [vmem:[#allocation3] sm:$0xf] %vm757, %v1914
      %1986 = vst.msk [vmem:[#allocation3 + $0x4] sm:$0xf] %vm757, %v1916
      %1987 = vst.msk [vmem:[#allocation3 + $0x8] sm:$0xf] %vm757, %v1918
      %1988 = vst.msk [vmem:[#allocation3 + $0xc] sm:$0xf] %vm757, %v1920
      %1989 = vst.msk [vmem:[#allocation3 + $0x10] sm:$0xf] %vm757, %v1922
      %1990 = vst.msk [vmem:[#allocation3 + $0x14] sm:$0xf] %vm757, %v1924
      %1991 = vst.msk [vmem:[#allocation3 + $0x18] sm:$0xf] %vm757, %v1926
      %1992 = vst.msk [vmem:[#allocation3 + $0x1c] sm:$0xf] %vm757, %v1928
      %1993 = vst.msk [vmem:[#allocation3 + $0x20] sm:$0xf] %vm757, %v1930
      %1994 = vst.msk [vmem:[#allocation3 + $0x24] sm:$0xf] %vm757, %v1932
      %1995 = vst.msk [vmem:[#allocation3 + $0x28] sm:$0xf] %vm757, %v1934
      %1996 = vst.msk [vmem:[#allocation3 + $0x2c] sm:$0xf] %vm757, %v1936
      %1997 = vst.msk [vmem:[#allocation3 + $0x30] sm:$0xf] %vm757, %v1938
      %1998 = vst.msk [vmem:[#allocation3 + $0x34] sm:$0xf] %vm757, %v1940
      %1999 = vst.msk [vmem:[#allocation3 + $0x38] sm:$0xf] %vm757, %v1942
      %2000 = vst.msk [vmem:[#allocation3 + $0x3c] sm:$0xf] %vm757, %v1944
      %2001 = vst.msk [vmem:[#allocation3 + $0x40] sm:$0xf] %vm757, %v1946
      %2002 = vst.msk [vmem:[#allocation3 + $0x44] sm:$0xf] %vm757, %v1948
      %2003 = vst.msk [vmem:[#allocation3 + $0x48] sm:$0xf] %vm757, %v1950
      %2004 = vst.msk [vmem:[#allocation3 + $0x4c] sm:$0xf] %vm757, %v1952
      %2005 = vst.msk [vmem:[#allocation3 + $0x50] sm:$0xf] %vm757, %v1954
      %2006 = vst.msk [vmem:[#allocation3 + $0x54] sm:$0xf] %vm757, %v1956
      %2007 = vst.msk [vmem:[#allocation3 + $0x58] sm:$0xf] %vm757, %v1958
      %2008 = vst.msk [vmem:[#allocation3 + $0x5c] sm:$0xf] %vm757, %v1960
      %v2009 = vld [vmem:[#allocation3] sm:$0xf]
      %v2010 = vld [vmem:[#allocation3 + $0x4] sm:$0xf]
      %v2011 = vld [vmem:[#allocation3 + $0x8] sm:$0xf]
      %v2012 = vld [vmem:[#allocation3 + $0xc] sm:$0xf]
      %v2013 = vld [vmem:[#allocation3 + $0x10] sm:$0xf]
      %v2014 = vld [vmem:[#allocation3 + $0x14] sm:$0xf]
      %v2015 = vld [vmem:[#allocation3 + $0x18] sm:$0xf]
      %v2016 = vld [vmem:[#allocation3 + $0x1c] sm:$0xf]
      %v2017 = vld [vmem:[#allocation3 + $0x20] sm:$0xf]
      %v2018 = vld [vmem:[#allocation3 + $0x24] sm:$0xf]
      %v2019 = vld [vmem:[#allocation3 + $0x28] sm:$0xf]
      %v2020 = vld [vmem:[#allocation3 + $0x2c] sm:$0xf]
      %v2021 = vld [vmem:[#allocation3 + $0x30] sm:$0xf]
      %v2022 = vld [vmem:[#allocation3 + $0x34] sm:$0xf]
      %v2023 = vld [vmem:[#allocation3 + $0x38] sm:$0xf]
      %v2024 = vld [vmem:[#allocation3 + $0x3c] sm:$0xf]
      %v2025 = vld [vmem:[#allocation3 + $0x40] sm:$0xf]
      %v2026 = vld [vmem:[#allocation3 + $0x44] sm:$0xf]
      %v2027 = vld [vmem:[#allocation3 + $0x48] sm:$0xf]
      %v2028 = vld [vmem:[#allocation3 + $0x4c] sm:$0xf]
      %v2029 = vld [vmem:[#allocation3 + $0x50] sm:$0xf]
      %v2030 = vld [vmem:[#allocation3 + $0x54] sm:$0xf]
      %v2031 = vld [vmem:[#allocation3 + $0x58] sm:$0xf]
      %v2032 = vld [vmem:[#allocation3 + $0x5c] sm:$0xf]
      %v2033 = vld [vmem:[%s5] sm:$0xf]
      %v2034 = vld [vmem:[%s5 + $0x4] sm:$0x3]
      %v2059 = vunpack.c.l.b16 %v2009
      %v2060 = vunpack.c.l.b16 %v2010
      %v2061 = vunpack.c.l.b16 %v2011
      %v2062 = vunpack.c.l.b16 %v2012
      %v2063 = vunpack.c.l.b16 %v2013
      %v2064 = vunpack.c.l.b16 %v2014
      %v2065 = vunpack.c.l.b16 %v2015
      %v2066 = vunpack.c.l.b16 %v2016
      %v2067 = vunpack.c.l.b16 %v2017
      %v2068 = vunpack.c.l.b16 %v2018
      %v2069 = vunpack.c.l.b16 %v2019
      %v2070 = vunpack.c.l.b16 %v2020
      %v2071 = vunpack.c.l.b16 %v2021
      %v2072 = vunpack.c.l.b16 %v2022
      %v2073 = vunpack.c.l.b16 %v2023
      %v2074 = vunpack.c.l.b16 %v2024
      %v2075 = vunpack.c.l.b16 %v2025
      %v2076 = vunpack.c.l.b16 %v2026
      %v2077 = vunpack.c.l.b16 %v2027
      %v2078 = vunpack.c.l.b16 %v2028
      %v2079 = vunpack.c.l.b16 %v2029
      %v2080 = vunpack.c.l.b16 %v2030
      %v2081 = vunpack.c.l.b16 %v2031
      %v2082 = vunpack.c.l.b16 %v2032
      %v2083 = vpack.c.b16 %v2060, %v2059
      %v2084 = vpack.c.b16 %v2062, %v2061
      %v2085 = vpack.c.b16 %v2064, %v2063
      %v2086 = vpack.c.b16 %v2066, %v2065
      %v2087 = vpack.c.b16 %v2068, %v2067
      %v2088 = vpack.c.b16 %v2070, %v2069
      %v2089 = vpack.c.b16 %v2072, %v2071
      %v2090 = vpack.c.b16 %v2074, %v2073
      %v2091 = vpack.c.b16 %v2076, %v2075
      %v2092 = vpack.c.b16 %v2078, %v2077
      %v2093 = vpack.c.b16 %v2080, %v2079
      %v2094 = vpack.c.b16 %v2082, %v2081
      %v2097 = vunpack.c.l.b16 %v2033
      %v2098 = vunpack.c.l.b16 %v2034
      %v2099 = vpack.c.b16 %v2098, %v2097
      %v2101 = vsel %vm900, %v2083, 0
      %v2104 = vsel %vm900, %v2084, 0
      %v2107 = vsel %vm900, %v2085, 0
      %v2110 = vsel %vm900, %v2086, 0
      %v2113 = vsel %vm900, %v2087, 0
      %v2116 = vsel %vm900, %v2088, 0
      %v2119 = vsel %vm900, %v2089, 0
      %v2122 = vsel %vm900, %v2090, 0
      %v2125 = vsel %vm900, %v2091, 0
      %v2128 = vsel %vm900, %v2092, 0
      %v2131 = vsel %vm900, %v2093, 0
      %v2134 = vsel %vm900, %v2094, 0
      %v2137 = vsel %vm946, %v2099, 0
      %2139 = vmatpush.bf16.msra.mxu0 0
      %2140 = vmatpush.bf16.msra.mxu0 0
      %2141 = vmatpush.bf16.msra.mxu0 0
      %2142 = vmatpush.bf16.msra.mxu0 0
      %2143 = vmatpush.bf16.msra.mxu0 0
      %2144 = vmatpush.bf16.msra.mxu0 0
      %2145 = vmatpush.bf16.msra.mxu0 0
      %2146 = vmatpush.bf16.msra.mxu0 %v2137
      %2147 = vmatmul.bf16.gmra.mxu0 %v2101
      %v2148 = vpop.f32.mrf.mxu0
      %v2149 = vadd.f32 0.0, %v2148
      %v2150 = vpop.f32.mrf.mxu0
      %v2151 = vadd.f32 0.0, %v2150
      %2152 = vmatmul.bf16.gmra.mxu0 %v2104
      %v2153 = vpop.f32.mrf.mxu0
      %v2154 = vadd.f32 0.0, %v2153
      %v2155 = vpop.f32.mrf.mxu0
      %v2156 = vadd.f32 0.0, %v2155
      %2157 = vmatmul.bf16.gmra.mxu0 %v2107
      %v2158 = vpop.f32.mrf.mxu0
      %v2159 = vadd.f32 0.0, %v2158
      %v2160 = vpop.f32.mrf.mxu0
      %v2161 = vadd.f32 0.0, %v2160
      %2162 = vmatmul.bf16.gmra.mxu0 %v2110
      %v2163 = vpop.f32.mrf.mxu0
      %v2164 = vadd.f32 0.0, %v2163
      %v2165 = vpop.f32.mrf.mxu0
      %v2166 = vadd.f32 0.0, %v2165
      %2167 = vmatmul.bf16.gmra.mxu0 %v2113
      %v2168 = vpop.f32.mrf.mxu0
      %v2169 = vadd.f32 0.0, %v2168
      %v2170 = vpop.f32.mrf.mxu0
      %v2171 = vadd.f32 0.0, %v2170
      %2172 = vmatmul.bf16.gmra.mxu0 %v2116
      %v2173 = vpop.f32.mrf.mxu0
      %v2174 = vadd.f32 0.0, %v2173
      %v2175 = vpop.f32.mrf.mxu0
      %v2176 = vadd.f32 0.0, %v2175
      %2177 = vmatmul.bf16.gmra.mxu0 %v2119
      %v2178 = vpop.f32.mrf.mxu0
      %v2179 = vadd.f32 0.0, %v2178
      %v2180 = vpop.f32.mrf.mxu0
      %v2181 = vadd.f32 0.0, %v2180
      %2182 = vmatmul.bf16.gmra.mxu0 %v2122
      %v2183 = vpop.f32.mrf.mxu0
      %v2184 = vadd.f32 0.0, %v2183
      %v2185 = vpop.f32.mrf.mxu0
      %v2186 = vadd.f32 0.0, %v2185
      %2187 = vmatmul.bf16.gmra.mxu0 %v2125
      %v2188 = vpop.f32.mrf.mxu0
      %v2189 = vadd.f32 0.0, %v2188
      %v2190 = vpop.f32.mrf.mxu0
      %v2191 = vadd.f32 0.0, %v2190
      %2192 = vmatmul.bf16.gmra.mxu0 %v2128
      %v2193 = vpop.f32.mrf.mxu0
      %v2194 = vadd.f32 0.0, %v2193
      %v2195 = vpop.f32.mrf.mxu0
      %v2196 = vadd.f32 0.0, %v2195
      %2197 = vmatmul.bf16.gmra.mxu0 %v2131
      %v2198 = vpop.f32.mrf.mxu0
      %v2199 = vadd.f32 0.0, %v2198
      %v2200 = vpop.f32.mrf.mxu0
      %v2201 = vadd.f32 0.0, %v2200
      %2202 = vmatmul.bf16.gmra.mxu0 %v2134
      %v2203 = vpop.f32.mrf.mxu0
      %v2204 = vadd.f32 0.0, %v2203
      %v2205 = vpop.f32.mrf.mxu0
      %v2206 = vadd.f32 0.0, %v2205
      %2207 = vdwg.mxu0
      %v2208 = vrot.slane %v2149, 7
      %v2209 = vrot.slane %v2151, 7
      %v2210 = vrot.slane %v2154, 7
      %v2211 = vrot.slane %v2156, 7
      %v2212 = vrot.slane %v2159, 7
      %v2213 = vrot.slane %v2161, 7
      %v2214 = vrot.slane %v2164, 7
      %v2215 = vrot.slane %v2166, 7
      %v2216 = vrot.slane %v2169, 7
      %v2217 = vrot.slane %v2171, 7
      %v2218 = vrot.slane %v2174, 7
      %v2219 = vrot.slane %v2176, 7
      %v2220 = vrot.slane %v2179, 7
      %v2221 = vrot.slane %v2181, 7
      %v2222 = vrot.slane %v2184, 7
      %v2223 = vrot.slane %v2186, 7
      %v2224 = vrot.slane %v2189, 7
      %v2225 = vrot.slane %v2191, 7
      %v2226 = vrot.slane %v2194, 7
      %v2227 = vrot.slane %v2196, 7
      %v2228 = vrot.slane %v2199, 7
      %v2229 = vrot.slane %v2201, 7
      %v2230 = vrot.slane %v2204, 7
      %v2231 = vrot.slane %v2206, 7
      %v2232 = vsel %vm1066, %v2230, %v2231
      %v2233 = vsel %vm1066, %v2229, %v2230
      %v2234 = vsel %vm1066, %v2228, %v2229
      %v2235 = vsel %vm1066, %v2227, %v2228
      %v2236 = vsel %vm1066, %v2226, %v2227
      %v2237 = vsel %vm1066, %v2225, %v2226
      %v2238 = vsel %vm1066, %v2224, %v2225
      %v2239 = vsel %vm1066, %v2223, %v2224
      %v2240 = vsel %vm1066, %v2222, %v2223
      %v2241 = vsel %vm1066, %v2221, %v2222
      %v2242 = vsel %vm1066, %v2220, %v2221
      %v2243 = vsel %vm1066, %v2219, %v2220
      %v2244 = vsel %vm1066, %v2218, %v2219
      %v2245 = vsel %vm1066, %v2217, %v2218
      %v2246 = vsel %vm1066, %v2216, %v2217
      %v2247 = vsel %vm1066, %v2215, %v2216
      %v2248 = vsel %vm1066, %v2214, %v2215
      %v2249 = vsel %vm1066, %v2213, %v2214
      %v2250 = vsel %vm1066, %v2212, %v2213
      %v2251 = vsel %vm1066, %v2211, %v2212
      %v2252 = vsel %vm1066, %v2210, %v2211
      %v2253 = vsel %vm1066, %v2209, %v2210
      %v2254 = vsel %vm1066, %v2208, %v2209
      %v2255 = vsel %vm1066, %v2231, %v2208
      %2280 = vrot.lane.b32.xlu0 %v2149, 124
      %v2281 = vpop.permute.xlu0 %2280
      %2282 = vrot.lane.b32.xlu0 %v2151, 124
      %v2283 = vpop.permute.xlu0 %2282
      %2284 = vrot.lane.b32.xlu0 %v2154, 124
      %v2285 = vpop.permute.xlu0 %2284
      %2286 = vrot.lane.b32.xlu0 %v2156, 124
      %v2287 = vpop.permute.xlu0 %2286
      %2288 = vrot.lane.b32.xlu0 %v2159, 124
      %v2289 = vpop.permute.xlu0 %2288
      %2290 = vrot.lane.b32.xlu0 %v2161, 124
      %v2291 = vpop.permute.xlu0 %2290
      %2292 = vrot.lane.b32.xlu0 %v2164, 124
      %v2293 = vpop.permute.xlu0 %2292
      %2294 = vrot.lane.b32.xlu0 %v2166, 124
      %v2295 = vpop.permute.xlu0 %2294
      %2296 = vrot.lane.b32.xlu0 %v2169, 124
      %v2297 = vpop.permute.xlu0 %2296
      %2298 = vrot.lane.b32.xlu0 %v2171, 124
      %v2299 = vpop.permute.xlu0 %2298
      %2300 = vrot.lane.b32.xlu0 %v2174, 124
      %v2301 = vpop.permute.xlu0 %2300
      %2302 = vrot.lane.b32.xlu0 %v2176, 124
      %v2303 = vpop.permute.xlu0 %2302
      %2304 = vrot.lane.b32.xlu0 %v2179, 124
      %v2305 = vpop.permute.xlu0 %2304
      %2306 = vrot.lane.b32.xlu0 %v2181, 124
      %v2307 = vpop.permute.xlu0 %2306
      %2308 = vrot.lane.b32.xlu0 %v2184, 124
      %v2309 = vpop.permute.xlu0 %2308
      %2310 = vrot.lane.b32.xlu0 %v2186, 124
      %v2311 = vpop.permute.xlu0 %2310
      %2312 = vrot.lane.b32.xlu0 %v2189, 124
      %v2313 = vpop.permute.xlu0 %2312
      %2314 = vrot.lane.b32.xlu0 %v2191, 124
      %v2315 = vpop.permute.xlu0 %2314
      %2316 = vrot.lane.b32.xlu0 %v2194, 124
      %v2317 = vpop.permute.xlu0 %2316
      %2318 = vrot.lane.b32.xlu0 %v2196, 124
      %v2319 = vpop.permute.xlu0 %2318
      %2320 = vrot.lane.b32.xlu0 %v2199, 124
      %v2321 = vpop.permute.xlu0 %2320
      %2322 = vrot.lane.b32.xlu0 %v2201, 124
      %v2323 = vpop.permute.xlu0 %2322
      %2324 = vrot.lane.b32.xlu0 %v2204, 124
      %v2325 = vpop.permute.xlu0 %2324
      %2326 = vrot.lane.b32.xlu0 %v2206, 124
      %v2327 = vpop.permute.xlu0 %2326
      %v2352 = vadd.f32 %v2255, %v2281
      %v2353 = vadd.f32 %v2254, %v2283
      %v2354 = vadd.f32 %v2253, %v2285
      %v2355 = vadd.f32 %v2252, %v2287
      %v2356 = vadd.f32 %v2251, %v2289
      %v2357 = vadd.f32 %v2250, %v2291
      %v2358 = vadd.f32 %v2249, %v2293
      %v2359 = vadd.f32 %v2248, %v2295
      %v2360 = vadd.f32 %v2247, %v2297
      %v2361 = vadd.f32 %v2246, %v2299
      %v2362 = vadd.f32 %v2245, %v2301
      %v2363 = vadd.f32 %v2244, %v2303
      %v2364 = vadd.f32 %v2243, %v2305
      %v2365 = vadd.f32 %v2242, %v2307
      %v2366 = vadd.f32 %v2241, %v2309
      %v2367 = vadd.f32 %v2240, %v2311
      %v2368 = vadd.f32 %v2239, %v2313
      %v2369 = vadd.f32 %v2238, %v2315
      %v2370 = vadd.f32 %v2237, %v2317
      %v2371 = vadd.f32 %v2236, %v2319
      %v2372 = vadd.f32 %v2235, %v2321
      %v2373 = vadd.f32 %v2234, %v2323
      %v2374 = vadd.f32 %v2233, %v2325
      %v2375 = vadd.f32 %v2232, %v2327
      %2376 = vrot.lane.b32.xlu0 %v2149, 120
      %v2377 = vpop.permute.xlu0 %2376
      %2378 = vrot.lane.b32.xlu0 %v2151, 120
      %v2379 = vpop.permute.xlu0 %2378
      %2380 = vrot.lane.b32.xlu0 %v2154, 120
      %v2381 = vpop.permute.xlu0 %2380
      %2382 = vrot.lane.b32.xlu0 %v2156, 120
      %v2383 = vpop.permute.xlu0 %2382
      %2384 = vrot.lane.b32.xlu0 %v2159, 120
      %v2385 = vpop.permute.xlu0 %2384
      %2386 = vrot.lane.b32.xlu0 %v2161, 120
      %v2387 = vpop.permute.xlu0 %2386
      %2388 = vrot.lane.b32.xlu0 %v2164, 120
      %v2389 = vpop.permute.xlu0 %2388
      %2390 = vrot.lane.b32.xlu0 %v2166, 120
      %v2391 = vpop.permute.xlu0 %2390
      %2392 = vrot.lane.b32.xlu0 %v2169, 120
      %v2393 = vpop.permute.xlu0 %2392
      %2394 = vrot.lane.b32.xlu0 %v2171, 120
      %v2395 = vpop.permute.xlu0 %2394
      %2396 = vrot.lane.b32.xlu0 %v2174, 120
      %v2397 = vpop.permute.xlu0 %2396
      %2398 = vrot.lane.b32.xlu0 %v2176, 120
      %v2399 = vpop.permute.xlu0 %2398
      %2400 = vrot.lane.b32.xlu0 %v2179, 120
      %v2401 = vpop.permute.xlu0 %2400
      %2402 = vrot.lane.b32.xlu0 %v2181, 120
      %v2403 = vpop.permute.xlu0 %2402
      %2404 = vrot.lane.b32.xlu0 %v2184, 120
      %v2405 = vpop.permute.xlu0 %2404
      %2406 = vrot.lane.b32.xlu0 %v2186, 120
      %v2407 = vpop.permute.xlu0 %2406
      %2408 = vrot.lane.b32.xlu0 %v2189, 120
      %v2409 = vpop.permute.xlu0 %2408
      %2410 = vrot.lane.b32.xlu0 %v2191, 120
      %v2411 = vpop.permute.xlu0 %2410
      %2412 = vrot.lane.b32.xlu0 %v2194, 120
      %v2413 = vpop.permute.xlu0 %2412
      %2414 = vrot.lane.b32.xlu0 %v2196, 120
      %v2415 = vpop.permute.xlu0 %2414
      %2416 = vrot.lane.b32.xlu0 %v2199, 120
      %v2417 = vpop.permute.xlu0 %2416
      %2418 = vrot.lane.b32.xlu0 %v2201, 120
      %v2419 = vpop.permute.xlu0 %2418
      %2420 = vrot.lane.b32.xlu0 %v2204, 120
      %v2421 = vpop.permute.xlu0 %2420
      %2422 = vrot.lane.b32.xlu0 %v2206, 120
      %v2423 = vpop.permute.xlu0 %2422
      %v2448 = vrot.slane %v2377, 1
      %v2449 = vrot.slane %v2379, 1
      %v2450 = vrot.slane %v2381, 1
      %v2451 = vrot.slane %v2383, 1
      %v2452 = vrot.slane %v2385, 1
      %v2453 = vrot.slane %v2387, 1
      %v2454 = vrot.slane %v2389, 1
      %v2455 = vrot.slane %v2391, 1
      %v2456 = vrot.slane %v2393, 1
      %v2457 = vrot.slane %v2395, 1
      %v2458 = vrot.slane %v2397, 1
      %v2459 = vrot.slane %v2399, 1
      %v2460 = vrot.slane %v2401, 1
      %v2461 = vrot.slane %v2403, 1
      %v2462 = vrot.slane %v2405, 1
      %v2463 = vrot.slane %v2407, 1
      %v2464 = vrot.slane %v2409, 1
      %v2465 = vrot.slane %v2411, 1
      %v2466 = vrot.slane %v2413, 1
      %v2467 = vrot.slane %v2415, 1
      %v2468 = vrot.slane %v2417, 1
      %v2469 = vrot.slane %v2419, 1
      %v2470 = vrot.slane %v2421, 1
      %v2471 = vrot.slane %v2423, 1
      %v2472 = vsel %vm1367, %v2470, %v2471
      %v2473 = vsel %vm1367, %v2469, %v2470
      %v2474 = vsel %vm1367, %v2468, %v2469
      %v2475 = vsel %vm1367, %v2467, %v2468
      %v2476 = vsel %vm1367, %v2466, %v2467
      %v2477 = vsel %vm1367, %v2465, %v2466
      %v2478 = vsel %vm1367, %v2464, %v2465
      %v2479 = vsel %vm1367, %v2463, %v2464
      %v2480 = vsel %vm1367, %v2462, %v2463
      %v2481 = vsel %vm1367, %v2461, %v2462
      %v2482 = vsel %vm1367, %v2460, %v2461
      %v2483 = vsel %vm1367, %v2459, %v2460
      %v2484 = vsel %vm1367, %v2458, %v2459
      %v2485 = vsel %vm1367, %v2457, %v2458
      %v2486 = vsel %vm1367, %v2456, %v2457
      %v2487 = vsel %vm1367, %v2455, %v2456
      %v2488 = vsel %vm1367, %v2454, %v2455
      %v2489 = vsel %vm1367, %v2453, %v2454
      %v2490 = vsel %vm1367, %v2452, %v2453
      %v2491 = vsel %vm1367, %v2451, %v2452
      %v2492 = vsel %vm1367, %v2450, %v2451
      %v2493 = vsel %vm1367, %v2449, %v2450
      %v2494 = vsel %vm1367, %v2448, %v2449
      %v2495 = vsel %vm1367, %v2471, %v2448
      %v2496 = vadd.f32 %v2352, %v2494
      %v2497 = vadd.f32 %v2353, %v2493
      %v2498 = vadd.f32 %v2354, %v2492
      %v2499 = vadd.f32 %v2355, %v2491
      %v2500 = vadd.f32 %v2356, %v2490
      %v2501 = vadd.f32 %v2357, %v2489
      %v2502 = vadd.f32 %v2358, %v2488
      %v2503 = vadd.f32 %v2359, %v2487
      %v2504 = vadd.f32 %v2360, %v2486
      %v2505 = vadd.f32 %v2361, %v2485
      %v2506 = vadd.f32 %v2362, %v2484
      %v2507 = vadd.f32 %v2363, %v2483
      %v2508 = vadd.f32 %v2364, %v2482
      %v2509 = vadd.f32 %v2365, %v2481
      %v2510 = vadd.f32 %v2366, %v2480
      %v2511 = vadd.f32 %v2367, %v2479
      %v2512 = vadd.f32 %v2368, %v2478
      %v2513 = vadd.f32 %v2369, %v2477
      %v2514 = vadd.f32 %v2370, %v2476
      %v2515 = vadd.f32 %v2371, %v2475
      %v2516 = vadd.f32 %v2372, %v2474
      %v2517 = vadd.f32 %v2373, %v2473
      %v2518 = vadd.f32 %v2374, %v2472
      %v2519 = vadd.f32 %v2375, %v2495
      %v2520 = vld [vmem:[%s606] sm:$0xf]
      %v2521 = vld [vmem:[%s606 + $0x4] sm:$0xf]
      %v2522 = vld [vmem:[%s606 + $0x8] sm:$0xf]
      %v2523 = vld [vmem:[%s606 + $0xc] sm:$0xf]
      %v2524 = vld [vmem:[%s606 + $0x10] sm:$0xf]
      %v2525 = vld [vmem:[%s606 + $0x14] sm:$0xf]
      %v2526 = vld [vmem:[%s606 + $0x18] sm:$0xf]
      %v2527 = vld [vmem:[%s606 + $0x1c] sm:$0xf]
      %v2528 = vld [vmem:[%s606 + $0x20] sm:$0xf]
      %v2529 = vld [vmem:[%s606 + $0x24] sm:$0xf]
      %v2530 = vld [vmem:[%s606 + $0x28] sm:$0xf]
      %v2531 = vld [vmem:[%s606 + $0x2c] sm:$0xf]
      %v2532 = vld [vmem:[%s606 + $0x30] sm:$0xf]
      %v2533 = vld [vmem:[%s606 + $0x34] sm:$0xf]
      %v2534 = vld [vmem:[%s606 + $0x38] sm:$0xf]
      %v2535 = vld [vmem:[%s606 + $0x3c] sm:$0xf]
      %v2536 = vld [vmem:[%s606 + $0x40] sm:$0xf]
      %v2537 = vld [vmem:[%s606 + $0x44] sm:$0xf]
      %v2538 = vld [vmem:[%s606 + $0x48] sm:$0xf]
      %v2539 = vld [vmem:[%s606 + $0x4c] sm:$0xf]
      %v2540 = vld [vmem:[%s606 + $0x50] sm:$0xf]
      %v2541 = vld [vmem:[%s606 + $0x54] sm:$0xf]
      %v2542 = vld [vmem:[%s606 + $0x58] sm:$0xf]
      %v2543 = vld [vmem:[%s606 + $0x5c] sm:$0xf]
      %v2544 = vunpack.c.l.bf16 %v2520
      %v2545 = vunpack.c.l.bf16 %v2521
      %v2546 = vunpack.c.l.bf16 %v2522
      %v2547 = vunpack.c.l.bf16 %v2523
      %v2548 = vunpack.c.l.bf16 %v2524
      %v2549 = vunpack.c.l.bf16 %v2525
      %v2550 = vunpack.c.l.bf16 %v2526
      %v2551 = vunpack.c.l.bf16 %v2527
      %v2552 = vunpack.c.l.bf16 %v2528
      %v2553 = vunpack.c.l.bf16 %v2529
      %v2554 = vunpack.c.l.bf16 %v2530
      %v2555 = vunpack.c.l.bf16 %v2531
      %v2556 = vunpack.c.l.bf16 %v2532
      %v2557 = vunpack.c.l.bf16 %v2533
      %v2558 = vunpack.c.l.bf16 %v2534
      %v2559 = vunpack.c.l.bf16 %v2535
      %v2560 = vunpack.c.l.bf16 %v2536
      %v2561 = vunpack.c.l.bf16 %v2537
      %v2562 = vunpack.c.l.bf16 %v2538
      %v2563 = vunpack.c.l.bf16 %v2539
      %v2564 = vunpack.c.l.bf16 %v2540
      %v2565 = vunpack.c.l.bf16 %v2541
      %v2566 = vunpack.c.l.bf16 %v2542
      %v2567 = vunpack.c.l.bf16 %v2543
      %v2568 = vld [vmem:[%s6] sm:$0x1]
      %v2570 = vperm.slane %v2568, 0
      %v2572 = vmul.f32 %v2496, %v2570
      %v2573 = vmul.f32 %v2497, %v2570
      %v2574 = vmul.f32 %v2498, %v2570
      %v2575 = vmul.f32 %v2499, %v2570
      %v2576 = vmul.f32 %v2500, %v2570
      %v2577 = vmul.f32 %v2501, %v2570
      %v2578 = vmul.f32 %v2502, %v2570
      %v2579 = vmul.f32 %v2503, %v2570
      %v2580 = vmul.f32 %v2504, %v2570
      %v2581 = vmul.f32 %v2505, %v2570
      %v2582 = vmul.f32 %v2506, %v2570
      %v2583 = vmul.f32 %v2507, %v2570
      %v2584 = vmul.f32 %v2508, %v2570
      %v2585 = vmul.f32 %v2509, %v2570
      %v2586 = vmul.f32 %v2510, %v2570
      %v2587 = vmul.f32 %v2511, %v2570
      %v2588 = vmul.f32 %v2512, %v2570
      %v2589 = vmul.f32 %v2513, %v2570
      %v2590 = vmul.f32 %v2514, %v2570
      %v2591 = vmul.f32 %v2515, %v2570
      %v2592 = vmul.f32 %v2516, %v2570
      %v2593 = vmul.f32 %v2517, %v2570
      %v2594 = vmul.f32 %v2518, %v2570
      %v2595 = vmul.f32 %v2519, %v2570
      %v2596 = vld [vmem:[%s7] sm:$0x1]
      %v2598 = vperm.slane %v2596, 0
      %v2600 = vadd.f32 %v2572, %v2598
      %v2601 = vadd.f32 %v2573, %v2598
      %v2602 = vadd.f32 %v2574, %v2598
      %v2603 = vadd.f32 %v2575, %v2598
      %v2604 = vadd.f32 %v2576, %v2598
      %v2605 = vadd.f32 %v2577, %v2598
      %v2606 = vadd.f32 %v2578, %v2598
      %v2607 = vadd.f32 %v2579, %v2598
      %v2608 = vadd.f32 %v2580, %v2598
      %v2609 = vadd.f32 %v2581, %v2598
      %v2610 = vadd.f32 %v2582, %v2598
      %v2611 = vadd.f32 %v2583, %v2598
      %v2612 = vadd.f32 %v2584, %v2598
      %v2613 = vadd.f32 %v2585, %v2598
      %v2614 = vadd.f32 %v2586, %v2598
      %v2615 = vadd.f32 %v2587, %v2598
      %v2616 = vadd.f32 %v2588, %v2598
      %v2617 = vadd.f32 %v2589, %v2598
      %v2618 = vadd.f32 %v2590, %v2598
      %v2619 = vadd.f32 %v2591, %v2598
      %v2620 = vadd.f32 %v2592, %v2598
      %v2621 = vadd.f32 %v2593, %v2598
      %v2622 = vadd.f32 %v2594, %v2598
      %v2623 = vadd.f32 %v2595, %v2598
      %v2624 = vadd.f32 %v2600, %v2544
      %v2625 = vadd.f32 %v2601, %v2545
      %v2626 = vadd.f32 %v2602, %v2546
      %v2627 = vadd.f32 %v2603, %v2547
      %v2628 = vadd.f32 %v2604, %v2548
      %v2629 = vadd.f32 %v2605, %v2549
      %v2630 = vadd.f32 %v2606, %v2550
      %v2631 = vadd.f32 %v2607, %v2551
      %v2632 = vadd.f32 %v2608, %v2552
      %v2633 = vadd.f32 %v2609, %v2553
      %v2634 = vadd.f32 %v2610, %v2554
      %v2635 = vadd.f32 %v2611, %v2555
      %v2636 = vadd.f32 %v2612, %v2556
      %v2637 = vadd.f32 %v2613, %v2557
      %v2638 = vadd.f32 %v2614, %v2558
      %v2639 = vadd.f32 %v2615, %v2559
      %v2640 = vadd.f32 %v2616, %v2560
      %v2641 = vadd.f32 %v2617, %v2561
      %v2642 = vadd.f32 %v2618, %v2562
      %v2643 = vadd.f32 %v2619, %v2563
      %v2644 = vadd.f32 %v2620, %v2564
      %v2645 = vadd.f32 %v2621, %v2565
      %v2646 = vadd.f32 %v2622, %v2566
      %v2647 = vadd.f32 %v2623, %v2567
      %v2648 = vmax.f32 %v2624, 0.0
      %v2649 = vmax.f32 %v2625, 0.0
      %v2650 = vmax.f32 %v2626, 0.0
      %v2651 = vmax.f32 %v2627, 0.0
      %v2652 = vmax.f32 %v2628, 0.0
      %v2653 = vmax.f32 %v2629, 0.0
      %v2654 = vmax.f32 %v2630, 0.0
      %v2655 = vmax.f32 %v2631, 0.0
      %v2656 = vmax.f32 %v2632, 0.0
      %v2657 = vmax.f32 %v2633, 0.0
      %v2658 = vmax.f32 %v2634, 0.0
      %v2659 = vmax.f32 %v2635, 0.0
      %v2660 = vmax.f32 %v2636, 0.0
      %v2661 = vmax.f32 %v2637, 0.0
      %v2662 = vmax.f32 %v2638, 0.0
      %v2663 = vmax.f32 %v2639, 0.0
      %v2664 = vmax.f32 %v2640, 0.0
      %v2665 = vmax.f32 %v2641, 0.0
      %v2666 = vmax.f32 %v2642, 0.0
      %v2667 = vmax.f32 %v2643, 0.0
      %v2668 = vmax.f32 %v2644, 0.0
      %v2669 = vmax.f32 %v2645, 0.0
      %v2670 = vmax.f32 %v2646, 0.0
      %v2671 = vmax.f32 %v2647, 0.0
      %v2672 = vpack.c.bf16 %v2648, %v2648
      %v2673 = vpack.c.bf16 %v2649, %v2649
      %v2674 = vpack.c.bf16 %v2650, %v2650
      %v2675 = vpack.c.bf16 %v2651, %v2651
      %v2676 = vpack.c.bf16 %v2652, %v2652
      %v2677 = vpack.c.bf16 %v2653, %v2653
      %v2678 = vpack.c.bf16 %v2654, %v2654
      %v2679 = vpack.c.bf16 %v2655, %v2655
      %v2680 = vpack.c.bf16 %v2656, %v2656
      %v2681 = vpack.c.bf16 %v2657, %v2657
      %v2682 = vpack.c.bf16 %v2658, %v2658
      %v2683 = vpack.c.bf16 %v2659, %v2659
      %v2684 = vpack.c.bf16 %v2660, %v2660
      %v2685 = vpack.c.bf16 %v2661, %v2661
      %v2686 = vpack.c.bf16 %v2662, %v2662
      %v2687 = vpack.c.bf16 %v2663, %v2663
      %v2688 = vpack.c.bf16 %v2664, %v2664
      %v2689 = vpack.c.bf16 %v2665, %v2665
      %v2690 = vpack.c.bf16 %v2666, %v2666
      %v2691 = vpack.c.bf16 %v2667, %v2667
      %v2692 = vpack.c.bf16 %v2668, %v2668
      %v2693 = vpack.c.bf16 %v2669, %v2669
      %v2694 = vpack.c.bf16 %v2670, %v2670
      %v2695 = vpack.c.bf16 %v2671, %v2671
      %2696 = vst.msk [vmem:[%s347] sm:$0xf] %vm385, %v2672
      %2697 = vst.msk [vmem:[%s347 + $0x4] sm:$0xf] %vm385, %v2673
      %2698 = vst.msk [vmem:[%s347 + $0x8] sm:$0xf] %vm385, %v2674
      %2699 = vst.msk [vmem:[%s347 + $0xc] sm:$0xf] %vm385, %v2675
      %2700 = vst.msk [vmem:[%s347 + $0x10] sm:$0xf] %vm385, %v2676
      %2701 = vst.msk [vmem:[%s347 + $0x14] sm:$0xf] %vm385, %v2677
      %2702 = vst.msk [vmem:[%s347 + $0x18] sm:$0xf] %vm385, %v2678
      %2703 = vst.msk [vmem:[%s347 + $0x1c] sm:$0xf] %vm385, %v2679
      %2704 = vst.msk [vmem:[%s347 + $0x20] sm:$0xf] %vm385, %v2680
      %2705 = vst.msk [vmem:[%s347 + $0x24] sm:$0xf] %vm385, %v2681
      %2706 = vst.msk [vmem:[%s347 + $0x28] sm:$0xf] %vm385, %v2682
      %2707 = vst.msk [vmem:[%s347 + $0x2c] sm:$0xf] %vm385, %v2683
      %2708 = vst.msk [vmem:[%s347 + $0x30] sm:$0xf] %vm385, %v2684
      %2709 = vst.msk [vmem:[%s347 + $0x34] sm:$0xf] %vm385, %v2685
      %2710 = vst.msk [vmem:[%s347 + $0x38] sm:$0xf] %vm385, %v2686
      %2711 = vst.msk [vmem:[%s347 + $0x3c] sm:$0xf] %vm385, %v2687
      %2712 = vst.msk [vmem:[%s347 + $0x40] sm:$0xf] %vm385, %v2688
      %2713 = vst.msk [vmem:[%s347 + $0x44] sm:$0xf] %vm385, %v2689
      %2714 = vst.msk [vmem:[%s347 + $0x48] sm:$0xf] %vm385, %v2690
      %2715 = vst.msk [vmem:[%s347 + $0x4c] sm:$0xf] %vm385, %v2691
      %2716 = vst.msk [vmem:[%s347 + $0x50] sm:$0xf] %vm385, %v2692
      %2717 = vst.msk [vmem:[%s347 + $0x54] sm:$0xf] %vm385, %v2693
      %2718 = vst.msk [vmem:[%s347 + $0x58] sm:$0xf] %vm385, %v2694
      %2719 = vst.msk [vmem:[%s347 + $0x5c] sm:$0xf] %vm385, %v2695
      %s2720 = smul.u32 24, %s24
      %p2721 = scmp.lt.s32.totalorder %s23, 1
      %s2722 = scalar_select %p2721, %s23, 1
      %p2723 = scmp.lt.s32.totalorder %s2720, 47
      %s2724 = scalar_select %p2723, %s2720, 47
      %s2725 = smul.addr %s2722, 48
      %s2726 = sadd.s32 %s2724, %s2725
      %s2727 = smul.addr %s2726, 4
      %s2728 = scalar_lea.vmem %s8, %s2727
      // Predicated region
      $region53: #{tpu_custom_call.1} parent=51 // pred_check
        %p2729 = pneg %p229
      $region54: #{tpu_custom_call.1} parent=51 // pred_check_branch
        %2731 = sbr.rel (%p2729) target = $region56
      $region55: #{tpu_custom_call.1} parent=51 // pred_region
        %s2732 = smul.u32 24, %s24
      $region56: #{tpu_custom_call.1} parent=51 // pred_fallthru
        _
    $region52: #{tpu_custom_call.1} parent=5 // pred_fallthru
      _
    %p2733 = scmp.le.s32.totalorder 2, %s14
    // Predicated region
    $region57: #{tpu_custom_call.1} parent=5 // pred_check
      %p2734 = pneg %p2733
    $region58: #{tpu_custom_call.1} parent=5 // pred_check_branch
      %2736 = sbr.rel (%p2734) target = $region60
    $region59: #{tpu_custom_call.1} parent=5 // pred_region
      %s2737 = ssub.s32 %s14, 2
      // Predicated region
      $region61: #{tpu_custom_call.1} parent=59 // pred_check
        %p2738 = pneg %p235
      $region62: #{tpu_custom_call.1} parent=59 // pred_check_branch
        %2740 = sbr.rel (%p2738) target = $region64
      $region63: #{tpu_custom_call.1} parent=59 // pred_region
        %s2741 = smul.u32 24, %s26
        %p2742 = scmp.lt.s32.totalorder %s25, 1
        %s2743 = scalar_select %p2742, %s25, 1
        %p2744 = scmp.lt.s32.totalorder %s2741, 47
        %s2745 = scalar_select %p2744, %s2741, 47
        %s2746 = smul.addr %s2743, 48
        %s2747 = sadd.s32 %s2745, %s2746
        %s2748 = smul.addr %s2747, 4
        %s2749 = scalar_lea.vmem %s8, %s2748
      $region64: #{tpu_custom_call.1} parent=59 // pred_fallthru
        _
    $region60: #{tpu_custom_call.1} parent=5 // pred_fallthru
      _
  $region6: #{tpu_custom_call.1} parent=0 // loop_footer
    %s18 = sadd.s32 1, %s14
  $region7: #{tpu_custom_call.1} parent=0 // loop_footer_branch
    %13 = sbr.rel target = $region3
  $region8: #{tpu_custom_call.1} parent=0 // loop_exit
    _

</llo_original>
